<compile_context>
chip_gen: v7x
topology: tpu7x:2x2x1
jax: 0.10.0
libtpu: 0.0.40
codegen_flags: <defaults>
</compile_context>

<pallas_src>
import functools

import numpy as np
import jax
import jax.numpy as jnp
from jax import lax
from jax.experimental import pallas as pl
from jax.experimental.pallas import tpu as pltpu


# ----------------------------------------------------------------------------
# Static helpers
# ----------------------------------------------------------------------------
def _band_placement(width):
    # P[kx, wi, w] = 1 iff wi == w + kx - 1 (3-tap 'same' conv band; taps that
    # fall outside the image are dropped == zero padding along W).
    P = np.zeros((3, width, width), np.float32)
    for kx in range(3):
        for w in range(width):
            wi = w + kx - 1
            if 0 <= wi < width:
                P[kx, wi, w] = 1.0
    return P


def _edge_masks(tb):
    # Boundary masks for the conv2 H-shifts (rows ordered (h4, b), b fastest):
    #   m[0]: zero for h4 == 0  (the "h2-1" tap of even-h2 output rows)
    #   m[1]: zero for h4 == 6  (the "h2+1" tap of odd-h2 output rows)
    m = np.ones((2, 7 * tb, 1), np.float32)
    m[0, : tb, :] = 0.0
    m[1, 6 * tb :, :] = 0.0
    return m


# ----------------------------------------------------------------------------
# The single fused Pallas kernel (one batch tile per grid step)
# ----------------------------------------------------------------------------
def _fused_net_kernel(
    x_ref,     # (TB*28, 84)      bf16 : kh-concatenated input rows, permuted
    a1_ref,    # (2, 84, 168)     bf16 : conv1 banded weights (even/odd W cols)
    b1_ref,    # (1, 168)         f32
    a2_ref,    # (2, 3, 168, 168) bf16 : conv2 banded weights [parity, kh]
    b2_ref,    # (1, 168)         f32
    m_ref,     # (2, TB*7, 1)     f32  : conv2 H-shift boundary masks
    wf1_ref,   # (7, 168, 64)     bf16 : fc1 weights, permuted to (h, (w,c), o)
    bf1_ref,   # (1, 64)          f32
    wf2_ref,   # (64, 128)        bf16 : fc2 weights, lane-padded 10 -> 128
    bf2_ref,   # (1, 128)         f32
    o_ref,     # (TB, 128)        f32
    *,
    tb,
):
    f32, bf16 = jnp.float32, jnp.bfloat16
    S = 7 * tb                                   # rows per (h4-major, b) slab

    x = x_ref[...]                               # (28*tb, 84)

    # ---- conv1 + bias + ReLU; W half of maxpool1 folded into the weights ----
    y_e = jnp.maximum(
        jnp.dot(x, a1_ref[0], preferred_element_type=f32) + b1_ref[...], 0.0)
    y_o = jnp.maximum(
        jnp.dot(x, a1_ref[1], preferred_element_type=f32) + b1_ref[...], 0.0)
    wp1 = jnp.maximum(y_e, y_o)                  # (28*tb, 168)

    # ---- H half of maxpool1: partners are exactly 14*tb rows apart ----------
    p1 = jnp.maximum(wp1[: 2 * S], wp1[2 * S :])  # (14*tb, 168); rows (q, h4, b)

    # ---- conv2 H-taps as contiguous row-window slices of p1 -----------------
    a_blk = p1[:S]                               # rows at h2 = 2*h4     (q = 0)
    b_blk = p1[S:]                               # rows at h2 = 2*h4 + 1 (q = 1)
    b_m1 = p1[6 * tb : 6 * tb + S] * m_ref[0]    # rows at h2 = 2*h4 - 1 (zero pad)
    a_p1 = p1[tb : tb + S] * m_ref[1]            # rows at h2 = 2*h4 + 2 (zero pad)

    a_bf, b_bf = a_blk.astype(bf16), b_blk.astype(bf16)
    bm_bf, ap_bf = b_m1.astype(bf16), a_p1.astype(bf16)
    taps_q0 = (bm_bf, a_bf, b_bf)                # inputs at h2-1, h2, h2+1
    taps_q1 = (a_bf, b_bf, ap_bf)

    # ---- conv2 + bias + ReLU (W-pool folded) and maxpool2 as elementwise max -
    p2 = None
    for taps in (taps_q0, taps_q1):
        for p in range(2):
            acc = jnp.dot(taps[0], a2_ref[p, 0], preferred_element_type=f32)
            acc = acc + jnp.dot(taps[1], a2_ref[p, 1], preferred_element_type=f32)
            acc = acc + jnp.dot(taps[2], a2_ref[p, 2], preferred_element_type=f32)
            y = jnp.maximum(acc + b2_ref[...], 0.0)          # (7*tb, 168)
            p2 = y if p2 is None else jnp.maximum(p2, y)

    # ---- fc1 (1176 -> 64) + ReLU; NCHW flatten folded into wf1's layout ------
    # Dropout(p=0.2) is the identity at inference time.
    accf = None
    for h in range(7):
        lhs = p2[h * tb : (h + 1) * tb].astype(bf16)         # (tb, 168)
        t = jnp.dot(lhs, wf1_ref[h], preferred_element_type=f32)
        accf = t if accf is None else accf + t
    hid = jnp.maximum(accf + bf1_ref[...], 0.0)              # (tb, 64)

    # ---- fc2 (64 -> 10), lane-padded to 128 for a dense store ----------------
    o_ref[...] = (jnp.dot(hid.astype(bf16), wf2_ref[...],
                          preferred_element_type=f32) + bf2_ref[...])


# ----------------------------------------------------------------------------
# Wrapper: weight preprocessing + single fused pallas_call
# ----------------------------------------------------------------------------
@functools.partial(jax.jit, static_argnames=("batch_tile",))
def network_forward(x_nchw, params, *, batch_tile=32):
    w1, b1, w2, b2, wf1, bf1, wf2, bf2 = params
    B = x_nchw.shape[0]
    assert x_nchw.shape[1:] == (1, 28, 28)

    if B <= batch_tile:
        TB, Bp = B, B
    else:
        assert batch_tile % 8 == 0, "batch_tile must be a multiple of 8 when tiling"
        TB = batch_tile
        Bp = ((B + TB - 1) // TB) * TB
    nt = Bp // TB
    # TODO(synk): on v7x, split small batches into >=2 tiles so both TensorCores work.

    # ---- input: squeeze channel, zero-pad H, lane-concat the 3 kh taps -------
    x = x_nchw.reshape(B, 28, 28).astype(jnp.float32)
    if Bp != B:
        x = jnp.pad(x, ((0, Bp - B), (0, 0), (0, 0)))
    xh = jnp.pad(x, ((0, 0), (1, 1), (0, 0)))                       # (Bp, 30, 28)
    xcat = jnp.concatenate([xh[:, 0:28], xh[:, 1:29], xh[:, 2:30]], axis=-1)
    # Row permutation within each tile: row order (parity, q, h4, b) with
    # h = 4*h4 + 2*q + parity, so both pool-H halves and the conv2 H-shifts
    # become contiguous row-block slices inside the kernel.
    xcat = xcat.reshape(nt, TB, 7, 2, 2, 84).transpose(0, 4, 3, 2, 1, 5)
    xcat = xcat.reshape(Bp * 28, 84).astype(jnp.bfloat16)

    # ---- conv weights: banded (W-conv + Cout in lanes), W-pool folded --------
    P1 = _band_placement(28)                                        # (3,28,28)
    A1 = jnp.einsum("xpw,chx->hpwc", P1, w1[:, 0, :, :])            # (kh,wi,w,c)
    A1cat = jnp.stack([A1[:, :, 0::2, :], A1[:, :, 1::2, :]], 0)    # (2,3,28,14,12)
    A1cat = A1cat.reshape(2, 84, 168).astype(jnp.bfloat16)

    P2 = _band_placement(14)                                        # (3,14,14)
    A2 = jnp.einsum("xpw,oihx->hpiwo", P2, w2)                      # (kh,wi,ci,w,co)
    A2f = jnp.stack([A2[:, :, :, 0::2, :], A2[:, :, :, 1::2, :]], 0)
    A2f = A2f.reshape(2, 3, 168, 168).astype(jnp.bfloat16)

    b1t = jnp.tile(b1, 14).reshape(1, 168).astype(jnp.float32)      # lanes (w2, c)
    b2t = jnp.tile(b2, 7).reshape(1, 168).astype(jnp.float32)       # lanes (w2, c)

    M = jnp.asarray(_edge_masks(TB))                                # (2, TB*7, 1)

    # fc1 permuted so the in-kernel (rows=(h,b), lanes=(w,c)) layout flattens
    # exactly like PyTorch's NCHW .view(); fc2 lane-padded to 128.
    wf1r = wf1.reshape(24, 7, 7, 64).transpose(1, 2, 0, 3).reshape(7, 168, 64)
    wf1r = wf1r.astype(jnp.bfloat16)
    bf1r = bf1.reshape(1, 64).astype(jnp.float32)
    wf2p = jnp.pad(wf2, ((0, 0), (0, 128 - 10))).astype(jnp.bfloat16)
    bf2p = jnp.pad(bf2, (0, 128 - 10)).reshape(1, 128).astype(jnp.float32)

    def _const_spec(a):
        return pl.BlockSpec(a.shape, lambda *_, n=a.ndim: (0,) * n)

    in_specs = [
        pl.BlockSpec((TB * 28, 84), lambda i: (i, 0)),              # streamed input
        _const_spec(A1cat), _const_spec(b1t), _const_spec(A2f), _const_spec(b2t),
        _const_spec(M), _const_spec(wf1r), _const_spec(bf1r),
        _const_spec(wf2p), _const_spec(bf2p),
    ]

    flops = Bp * (
        2 * 28 * 84 * 168 * 2          # conv1 (both W-pool parities)
        + 2 * 14 * 168 * 168 * 6       # conv2 (3 taps x 2 parities x 14 rows)
        + 2 * 1176 * 64 + 2 * 64 * 128)
    bytes_accessed = (
        xcat.size * 2 + Bp * 128 * 4
        + (A1cat.size + A2f.size + wf1r.size + wf2p.size) * 2
        + (b1t.size + b2t.size + M.size + bf1r.size + bf2p.size) * 4)
    cost = pl.CostEstimate(flops=flops, transcendentals=0,
                           bytes_accessed=bytes_accessed)

    out_full = pl.pallas_call(
        functools.partial(_fused_net_kernel, tb=TB),
        out_shape=jax.ShapeDtypeStruct((Bp, 128), jnp.float32),
        grid=(nt,),
        in_specs=in_specs,
        out_specs=pl.BlockSpec((TB, 128), lambda i: (i, 0)),
        compiler_params=pltpu.CompilerParams(
            dimension_semantics=("parallel",),
            vmem_limit_bytes=32 * 1024 * 1024,
        ),
        cost_estimate=cost,
    )(xcat, A1cat, b1t, A2f, b2t, M, wf1r, bf1r, wf2p, bf2p)

    return out_full[:B, :10]


# ----------------------------------------------------------------------------
# Pure-JAX f32 reference (independent path via lax.conv / reduce_window)
# ----------------------------------------------------------------------------
def reference_forward(x, params):
    w1, b1, w2, b2, wf1, bf1, wf2, bf2 = params
    dn = ("NCHW", "OIHW", "NCHW")
    y = lax.conv_general_dilated(x, w1, (1, 1), ((1, 1), (1, 1)),
                                 dimension_numbers=dn,
                                 precision=lax.Precision.HIGHEST)
    y = jnp.maximum(y + b1[None, :, None, None], 0.0)
    y = lax.reduce_window(y, -jnp.inf, lax.max, (1, 1, 2, 2), (1, 1, 2, 2), "VALID")
    y = lax.conv_general_dilated(y, w2, (1, 1), ((1, 1), (1, 1)),
                                 dimension_numbers=dn,
                                 precision=lax.Precision.HIGHEST)
    y = jnp.maximum(y + b2[None, :, None, None], 0.0)
    y = lax.reduce_window(y, -jnp.inf, lax.max, (1, 1, 2, 2), (1, 1, 2, 2), "VALID")
    y = y.reshape(y.shape[0], -1)
    y = jnp.maximum(jnp.dot(y, wf1, precision=lax.Precision.HIGHEST) + bf1, 0.0)
    y = jnp.dot(y, wf2, precision=lax.Precision.HIGHEST) + bf2
    return y


def init_params(key):
    ks = jax.random.split(key, 8)
    w1 = 0.1 * jax.random.normal(ks[0], (12, 1, 3, 3), jnp.float32)
    b1 = 0.1 * jax.random.normal(ks[1], (12,), jnp.float32)
    w2 = 0.1 * jax.random.normal(ks[2], (24, 12, 3, 3), jnp.float32)
    b2 = 0.1 * jax.random.normal(ks[3], (24,), jnp.float32)
    wf1 = 0.05 * jax.random.normal(ks[4], (24 * 7 * 7, 64), jnp.float32)
    bf1 = 0.05 * jax.random.normal(ks[5], (64,), jnp.float32)
    wf2 = 0.05 * jax.random.normal(ks[6], (64, 10), jnp.float32)
    bf2 = 0.05 * jax.random.normal(ks[7], (10,), jnp.float32)
    return (w1, b1, w2, b2, wf1, bf1, wf2, bf2)


if __name__ == "__main__":
    key = jax.random.PRNGKey(0)
    k_x, k_p = jax.random.split(key)
    # Input must be 28x28 so the flatten size is 24*7*7, as the module implies.
    x = jax.random.normal(k_x, (2, 1, 28, 28), jnp.float32)
    params = init_params(k_p)

    out = jax.block_until_ready(network_forward(x, params))
    ref = jax.block_until_ready(reference_forward(x, params))

    assert out.shape == (2, 10), out.shape
    assert bool(jnp.all(jnp.isfinite(out)))
    max_err = float(jnp.max(jnp.abs(out - ref)))
    assert bool(jnp.allclose(out, ref, rtol=2e-2, atol=2e-2)), (
        f"Pallas output does not match reference (max abs err {max_err})"
    )
    print("KERNEL_OK")
</pallas_src>

<mosaic_0001>
module attributes {stable_mosaic.version = 11 : i64} {
  func.func @_fused_net_kernel(%arg0: i32, %arg1: memref<56x84xbf16, #tpu.memory_space<vmem>>, %arg2: memref<2x84x168xbf16, #tpu.memory_space<vmem>>, %arg3: memref<1x168xf32, #tpu.memory_space<vmem>>, %arg4: memref<2x3x168x168xbf16, #tpu.memory_space<vmem>>, %arg5: memref<1x168xf32, #tpu.memory_space<vmem>>, %arg6: memref<2x14x1xf32, #tpu.memory_space<vmem>>, %arg7: memref<7x168x64xbf16, #tpu.memory_space<vmem>>, %arg8: memref<1x64xf32, #tpu.memory_space<vmem>>, %arg9: memref<64x128xbf16, #tpu.memory_space<vmem>>, %arg10: memref<1x128xf32, #tpu.memory_space<vmem>>, %arg11: memref<2x128xf32, #tpu.memory_space<vmem>>) attributes {dimension_semantics = [#tpu.dimension_semantics<parallel>], iteration_bounds = array<i64: 1>, scalar_prefetch = 0 : i64, scratch_operands = 0 : i64, tpu.core_type = #tpu.core_type<tc>, window_params = [{transform_indices = @transform_0, window_bounds = array<i64: 56, 84>}, {pipeline_mode = #tpu.pipeline_mode<synchronous>, transform_indices = @transform_1, window_bounds = array<i64: 2, 84, 168>}, {pipeline_mode = #tpu.pipeline_mode<synchronous>, transform_indices = @transform_2, window_bounds = array<i64: 1, 168>}, {pipeline_mode = #tpu.pipeline_mode<synchronous>, transform_indices = @transform_3, window_bounds = array<i64: 2, 3, 168, 168>}, {pipeline_mode = #tpu.pipeline_mode<synchronous>, transform_indices = @transform_4, window_bounds = array<i64: 1, 168>}, {pipeline_mode = #tpu.pipeline_mode<synchronous>, transform_indices = @transform_5, window_bounds = array<i64: 2, 14, 1>}, {pipeline_mode = #tpu.pipeline_mode<synchronous>, transform_indices = @transform_6, window_bounds = array<i64: 7, 168, 64>}, {pipeline_mode = #tpu.pipeline_mode<synchronous>, transform_indices = @transform_7, window_bounds = array<i64: 1, 64>}, {pipeline_mode = #tpu.pipeline_mode<synchronous>, transform_indices = @transform_8, window_bounds = array<i64: 64, 128>}, {pipeline_mode = #tpu.pipeline_mode<synchronous>, transform_indices = @transform_9, window_bounds = array<i64: 1, 128>}, {transform_indices = @transform_10, window_bounds = array<i64: 2, 128>}]} {
    %c0 = arith.constant 0 : index
    %c0_0 = arith.constant 0 : index
    %0 = vector.load %arg1[%c0, %c0_0] : memref<56x84xbf16, #tpu.memory_space<vmem>>, vector<56x84xbf16>
    %c0_1 = arith.constant 0 : index
    %c0_2 = arith.constant 0 : index
    %c0_3 = arith.constant 0 : index
    %1 = vector.load %arg2[%c0_1, %c0_2, %c0_3] : memref<2x84x168xbf16, #tpu.memory_space<vmem>>, vector<1x84x168xbf16>
    %2 = vector.shape_cast %1 : vector<1x84x168xbf16> to vector<84x168xbf16>
    %cst = arith.constant dense<0.000000e+00> : vector<56x168xf32>
    %3 = tpu.matmul %0, %2, %cst {dimension_numbers = #tpu.dot_dimension_numbers<[1], [0], [0], [1], [0, 0, 1, 1], [], []>} : vector<56x84xbf16>, vector<84x168xbf16>, vector<56x168xf32> -> vector<56x168xf32>
    %c0_4 = arith.constant 0 : index
    %c0_5 = arith.constant 0 : index
    %4 = vector.load %arg3[%c0_4, %c0_5] : memref<1x168xf32, #tpu.memory_space<vmem>>, vector<1x168xf32>
    %5 = vector.broadcast %4 : vector<1x168xf32> to vector<56x168xf32>
    %6 = arith.addf %3, %5 : vector<56x168xf32>
    %cst_6 = arith.constant 0.000000e+00 : f32
    %7 = vector.broadcast %cst_6 : f32 to vector<56x168xf32>
    %8 = arith.maximumf %6, %7 : vector<56x168xf32>
    %c1 = arith.constant 1 : index
    %c0_7 = arith.constant 0 : index
    %c0_8 = arith.constant 0 : index
    %9 = vector.load %arg2[%c1, %c0_7, %c0_8] : memref<2x84x168xbf16, #tpu.memory_space<vmem>>, vector<1x84x168xbf16>
    %10 = vector.shape_cast %9 : vector<1x84x168xbf16> to vector<84x168xbf16>
    %cst_9 = arith.constant dense<0.000000e+00> : vector<56x168xf32>
    %11 = tpu.matmul %0, %10, %cst_9 {dimension_numbers = #tpu.dot_dimension_numbers<[1], [0], [0], [1], [0, 0, 1, 1], [], []>} : vector<56x84xbf16>, vector<84x168xbf16>, vector<56x168xf32> -> vector<56x168xf32>
    %c0_10 = arith.constant 0 : index
    %c0_11 = arith.constant 0 : index
    %12 = vector.load %arg3[%c0_10, %c0_11] : memref<1x168xf32, #tpu.memory_space<vmem>>, vector<1x168xf32>
    %13 = vector.broadcast %12 : vector<1x168xf32> to vector<56x168xf32>
    %14 = arith.addf %11, %13 : vector<56x168xf32>
    %cst_12 = arith.constant 0.000000e+00 : f32
    %15 = vector.broadcast %cst_12 : f32 to vector<56x168xf32>
    %16 = arith.maximumf %14, %15 : vector<56x168xf32>
    %17 = arith.maximumf %8, %16 : vector<56x168xf32>
    %18 = vector.extract_strided_slice %17 {offsets = [0, 0], sizes = [28, 168], strides = [1, 1]} : vector<56x168xf32> to vector<28x168xf32>
    %19 = vector.extract_strided_slice %17 {offsets = [28, 0], sizes = [28, 168], strides = [1, 1]} : vector<56x168xf32> to vector<28x168xf32>
    %20 = arith.maximumf %18, %19 : vector<28x168xf32>
    %21 = vector.extract_strided_slice %20 {offsets = [0, 0], sizes = [14, 168], strides = [1, 1]} : vector<28x168xf32> to vector<14x168xf32>
    %22 = vector.extract_strided_slice %20 {offsets = [14, 0], sizes = [14, 168], strides = [1, 1]} : vector<28x168xf32> to vector<14x168xf32>
    %23 = vector.extract_strided_slice %20 {offsets = [12, 0], sizes = [14, 168], strides = [1, 1]} : vector<28x168xf32> to vector<14x168xf32>
    %c0_13 = arith.constant 0 : index
    %c0_14 = arith.constant 0 : index
    %c0_15 = arith.constant 0 : index
    %24 = vector.load %arg6[%c0_13, %c0_14, %c0_15] : memref<2x14x1xf32, #tpu.memory_space<vmem>>, vector<1x14x1xf32>
    %25 = vector.shape_cast %24 : vector<1x14x1xf32> to vector<14x1xf32>
    %26 = vector.broadcast %25 : vector<14x1xf32> to vector<14x168xf32>
    %27 = arith.mulf %23, %26 : vector<14x168xf32>
    %28 = vector.extract_strided_slice %20 {offsets = [2, 0], sizes = [14, 168], strides = [1, 1]} : vector<28x168xf32> to vector<14x168xf32>
    %c1_16 = arith.constant 1 : index
    %c0_17 = arith.constant 0 : index
    %c0_18 = arith.constant 0 : index
    %29 = vector.load %arg6[%c1_16, %c0_17, %c0_18] : memref<2x14x1xf32, #tpu.memory_space<vmem>>, vector<1x14x1xf32>
    %30 = vector.shape_cast %29 : vector<1x14x1xf32> to vector<14x1xf32>
    %31 = vector.broadcast %30 : vector<14x1xf32> to vector<14x168xf32>
    %32 = arith.mulf %28, %31 : vector<14x168xf32>
    %33 = arith.truncf %21 : vector<14x168xf32> to vector<14x168xbf16>
    %34 = arith.truncf %22 : vector<14x168xf32> to vector<14x168xbf16>
    %35 = arith.truncf %27 : vector<14x168xf32> to vector<14x168xbf16>
    %36 = arith.truncf %32 : vector<14x168xf32> to vector<14x168xbf16>
    %c0_19 = arith.constant 0 : index
    %c0_20 = arith.constant 0 : index
    %c0_21 = arith.constant 0 : index
    %c0_22 = arith.constant 0 : index
    %37 = vector.load %arg4[%c0_19, %c0_20, %c0_21, %c0_22] : memref<2x3x168x168xbf16, #tpu.memory_space<vmem>>, vector<1x1x168x168xbf16>
    %38 = vector.shape_cast %37 : vector<1x1x168x168xbf16> to vector<168x168xbf16>
    %cst_23 = arith.constant dense<0.000000e+00> : vector<14x168xf32>
    %39 = tpu.matmul %35, %38, %cst_23 {dimension_numbers = #tpu.dot_dimension_numbers<[1], [0], [0], [1], [0, 0, 1, 1], [], []>} : vector<14x168xbf16>, vector<168x168xbf16>, vector<14x168xf32> -> vector<14x168xf32>
    %c0_24 = arith.constant 0 : index
    %c1_25 = arith.constant 1 : index
    %c0_26 = arith.constant 0 : index
    %c0_27 = arith.constant 0 : index
    %40 = vector.load %arg4[%c0_24, %c1_25, %c0_26, %c0_27] : memref<2x3x168x168xbf16, #tpu.memory_space<vmem>>, vector<1x1x168x168xbf16>
    %41 = vector.shape_cast %40 : vector<1x1x168x168xbf16> to vector<168x168xbf16>
    %cst_28 = arith.constant dense<0.000000e+00> : vector<14x168xf32>
    %42 = tpu.matmul %33, %41, %cst_28 {dimension_numbers = #tpu.dot_dimension_numbers<[1], [0], [0], [1], [0, 0, 1, 1], [], []>} : vector<14x168xbf16>, vector<168x168xbf16>, vector<14x168xf32> -> vector<14x168xf32>
    %43 = arith.addf %39, %42 : vector<14x168xf32>
    %c0_29 = arith.constant 0 : index
    %c2 = arith.constant 2 : index
    %c0_30 = arith.constant 0 : index
    %c0_31 = arith.constant 0 : index
    %44 = vector.load %arg4[%c0_29, %c2, %c0_30, %c0_31] : memref<2x3x168x168xbf16, #tpu.memory_space<vmem>>, vector<1x1x168x168xbf16>
    %45 = vector.shape_cast %44 : vector<1x1x168x168xbf16> to vector<168x168xbf16>
    %cst_32 = arith.constant dense<0.000000e+00> : vector<14x168xf32>
    %46 = tpu.matmul %34, %45, %cst_32 {dimension_numbers = #tpu.dot_dimension_numbers<[1], [0], [0], [1], [0, 0, 1, 1], [], []>} : vector<14x168xbf16>, vector<168x168xbf16>, vector<14x168xf32> -> vector<14x168xf32>
    %47 = arith.addf %43, %46 : vector<14x168xf32>
    %c0_33 = arith.constant 0 : index
    %c0_34 = arith.constant 0 : index
    %48 = vector.load %arg5[%c0_33, %c0_34] : memref<1x168xf32, #tpu.memory_space<vmem>>, vector<1x168xf32>
    %49 = vector.broadcast %48 : vector<1x168xf32> to vector<14x168xf32>
    %50 = arith.addf %47, %49 : vector<14x168xf32>
    %cst_35 = arith.constant 0.000000e+00 : f32
    %51 = vector.broadcast %cst_35 : f32 to vector<14x168xf32>
    %52 = arith.maximumf %50, %51 : vector<14x168xf32>
    %c1_36 = arith.constant 1 : index
    %c0_37 = arith.constant 0 : index
    %c0_38 = arith.constant 0 : index
    %c0_39 = arith.constant 0 : index
    %53 = vector.load %arg4[%c1_36, %c0_37, %c0_38, %c0_39] : memref<2x3x168x168xbf16, #tpu.memory_space<vmem>>, vector<1x1x168x168xbf16>
    %54 = vector.shape_cast %53 : vector<1x1x168x168xbf16> to vector<168x168xbf16>
    %cst_40 = arith.constant dense<0.000000e+00> : vector<14x168xf32>
    %55 = tpu.matmul %35, %54, %cst_40 {dimension_numbers = #tpu.dot_dimension_numbers<[1], [0], [0], [1], [0, 0, 1, 1], [], []>} : vector<14x168xbf16>, vector<168x168xbf16>, vector<14x168xf32> -> vector<14x168xf32>
    %c1_41 = arith.constant 1 : index
    %c1_42 = arith.constant 1 : index
    %c0_43 = arith.constant 0 : index
    %c0_44 = arith.constant 0 : index
    %56 = vector.load %arg4[%c1_41, %c1_42, %c0_43, %c0_44] : memref<2x3x168x168xbf16, #tpu.memory_space<vmem>>, vector<1x1x168x168xbf16>
    %57 = vector.shape_cast %56 : vector<1x1x168x168xbf16> to vector<168x168xbf16>
    %cst_45 = arith.constant dense<0.000000e+00> : vector<14x168xf32>
    %58 = tpu.matmul %33, %57, %cst_45 {dimension_numbers = #tpu.dot_dimension_numbers<[1], [0], [0], [1], [0, 0, 1, 1], [], []>} : vector<14x168xbf16>, vector<168x168xbf16>, vector<14x168xf32> -> vector<14x168xf32>
    %59 = arith.addf %55, %58 : vector<14x168xf32>
    %c1_46 = arith.constant 1 : index
    %c2_47 = arith.constant 2 : index
    %c0_48 = arith.constant 0 : index
    %c0_49 = arith.constant 0 : index
    %60 = vector.load %arg4[%c1_46, %c2_47, %c0_48, %c0_49] : memref<2x3x168x168xbf16, #tpu.memory_space<vmem>>, vector<1x1x168x168xbf16>
    %61 = vector.shape_cast %60 : vector<1x1x168x168xbf16> to vector<168x168xbf16>
    %cst_50 = arith.constant dense<0.000000e+00> : vector<14x168xf32>
    %62 = tpu.matmul %34, %61, %cst_50 {dimension_numbers = #tpu.dot_dimension_numbers<[1], [0], [0], [1], [0, 0, 1, 1], [], []>} : vector<14x168xbf16>, vector<168x168xbf16>, vector<14x168xf32> -> vector<14x168xf32>
    %63 = arith.addf %59, %62 : vector<14x168xf32>
    %c0_51 = arith.constant 0 : index
    %c0_52 = arith.constant 0 : index
    %64 = vector.load %arg5[%c0_51, %c0_52] : memref<1x168xf32, #tpu.memory_space<vmem>>, vector<1x168xf32>
    %65 = vector.broadcast %64 : vector<1x168xf32> to vector<14x168xf32>
    %66 = arith.addf %63, %65 : vector<14x168xf32>
    %cst_53 = arith.constant 0.000000e+00 : f32
    %67 = vector.broadcast %cst_53 : f32 to vector<14x168xf32>
    %68 = arith.maximumf %66, %67 : vector<14x168xf32>
    %69 = arith.maximumf %52, %68 : vector<14x168xf32>
    %c0_54 = arith.constant 0 : index
    %c0_55 = arith.constant 0 : index
    %c0_56 = arith.constant 0 : index
    %c0_57 = arith.constant 0 : index
    %70 = vector.load %arg4[%c0_54, %c0_55, %c0_56, %c0_57] : memref<2x3x168x168xbf16, #tpu.memory_space<vmem>>, vector<1x1x168x168xbf16>
    %71 = vector.shape_cast %70 : vector<1x1x168x168xbf16> to vector<168x168xbf16>
    %cst_58 = arith.constant dense<0.000000e+00> : vector<14x168xf32>
    %72 = tpu.matmul %33, %71, %cst_58 {dimension_numbers = #tpu.dot_dimension_numbers<[1], [0], [0], [1], [0, 0, 1, 1], [], []>} : vector<14x168xbf16>, vector<168x168xbf16>, vector<14x168xf32> -> vector<14x168xf32>
    %c0_59 = arith.constant 0 : index
    %c1_60 = arith.constant 1 : index
    %c0_61 = arith.constant 0 : index
    %c0_62 = arith.constant 0 : index
    %73 = vector.load %arg4[%c0_59, %c1_60, %c0_61, %c0_62] : memref<2x3x168x168xbf16, #tpu.memory_space<vmem>>, vector<1x1x168x168xbf16>
    %74 = vector.shape_cast %73 : vector<1x1x168x168xbf16> to vector<168x168xbf16>
    %cst_63 = arith.constant dense<0.000000e+00> : vector<14x168xf32>
    %75 = tpu.matmul %34, %74, %cst_63 {dimension_numbers = #tpu.dot_dimension_numbers<[1], [0], [0], [1], [0, 0, 1, 1], [], []>} : vector<14x168xbf16>, vector<168x168xbf16>, vector<14x168xf32> -> vector<14x168xf32>
    %76 = arith.addf %72, %75 : vector<14x168xf32>
    %c0_64 = arith.constant 0 : index
    %c2_65 = arith.constant 2 : index
    %c0_66 = arith.constant 0 : index
    %c0_67 = arith.constant 0 : index
    %77 = vector.load %arg4[%c0_64, %c2_65, %c0_66, %c0_67] : memref<2x3x168x168xbf16, #tpu.memory_space<vmem>>, vector<1x1x168x168xbf16>
    %78 = vector.shape_cast %77 : vector<1x1x168x168xbf16> to vector<168x168xbf16>
    %cst_68 = arith.constant dense<0.000000e+00> : vector<14x168xf32>
    %79 = tpu.matmul %36, %78, %cst_68 {dimension_numbers = #tpu.dot_dimension_numbers<[1], [0], [0], [1], [0, 0, 1, 1], [], []>} : vector<14x168xbf16>, vector<168x168xbf16>, vector<14x168xf32> -> vector<14x168xf32>
    %80 = arith.addf %76, %79 : vector<14x168xf32>
    %c0_69 = arith.constant 0 : index
    %c0_70 = arith.constant 0 : index
    %81 = vector.load %arg5[%c0_69, %c0_70] : memref<1x168xf32, #tpu.memory_space<vmem>>, vector<1x168xf32>
    %82 = vector.broadcast %81 : vector<1x168xf32> to vector<14x168xf32>
    %83 = arith.addf %80, %82 : vector<14x168xf32>
    %cst_71 = arith.constant 0.000000e+00 : f32
    %84 = vector.broadcast %cst_71 : f32 to vector<14x168xf32>
    %85 = arith.maximumf %83, %84 : vector<14x168xf32>
    %86 = arith.maximumf %69, %85 : vector<14x168xf32>
    %c1_72 = arith.constant 1 : index
    %c0_73 = arith.constant 0 : index
    %c0_74 = arith.constant 0 : index
    %c0_75 = arith.constant 0 : index
    %87 = vector.load %arg4[%c1_72, %c0_73, %c0_74, %c0_75] : memref<2x3x168x168xbf16, #tpu.memory_space<vmem>>, vector<1x1x168x168xbf16>
    %88 = vector.shape_cast %87 : vector<1x1x168x168xbf16> to vector<168x168xbf16>
    %cst_76 = arith.constant dense<0.000000e+00> : vector<14x168xf32>
    %89 = tpu.matmul %33, %88, %cst_76 {dimension_numbers = #tpu.dot_dimension_numbers<[1], [0], [0], [1], [0, 0, 1, 1], [], []>} : vector<14x168xbf16>, vector<168x168xbf16>, vector<14x168xf32> -> vector<14x168xf32>
    %c1_77 = arith.constant 1 : index
    %c1_78 = arith.constant 1 : index
    %c0_79 = arith.constant 0 : index
    %c0_80 = arith.constant 0 : index
    %90 = vector.load %arg4[%c1_77, %c1_78, %c0_79, %c0_80] : memref<2x3x168x168xbf16, #tpu.memory_space<vmem>>, vector<1x1x168x168xbf16>
    %91 = vector.shape_cast %90 : vector<1x1x168x168xbf16> to vector<168x168xbf16>
    %cst_81 = arith.constant dense<0.000000e+00> : vector<14x168xf32>
    %92 = tpu.matmul %34, %91, %cst_81 {dimension_numbers = #tpu.dot_dimension_numbers<[1], [0], [0], [1], [0, 0, 1, 1], [], []>} : vector<14x168xbf16>, vector<168x168xbf16>, vector<14x168xf32> -> vector<14x168xf32>
    %93 = arith.addf %89, %92 : vector<14x168xf32>
    %c1_82 = arith.constant 1 : index
    %c2_83 = arith.constant 2 : index
    %c0_84 = arith.constant 0 : index
    %c0_85 = arith.constant 0 : index
    %94 = vector.load %arg4[%c1_82, %c2_83, %c0_84, %c0_85] : memref<2x3x168x168xbf16, #tpu.memory_space<vmem>>, vector<1x1x168x168xbf16>
    %95 = vector.shape_cast %94 : vector<1x1x168x168xbf16> to vector<168x168xbf16>
    %cst_86 = arith.constant dense<0.000000e+00> : vector<14x168xf32>
    %96 = tpu.matmul %36, %95, %cst_86 {dimension_numbers = #tpu.dot_dimension_numbers<[1], [0], [0], [1], [0, 0, 1, 1], [], []>} : vector<14x168xbf16>, vector<168x168xbf16>, vector<14x168xf32> -> vector<14x168xf32>
    %97 = arith.addf %93, %96 : vector<14x168xf32>
    %c0_87 = arith.constant 0 : index
    %c0_88 = arith.constant 0 : index
    %98 = vector.load %arg5[%c0_87, %c0_88] : memref<1x168xf32, #tpu.memory_space<vmem>>, vector<1x168xf32>
    %99 = vector.broadcast %98 : vector<1x168xf32> to vector<14x168xf32>
    %100 = arith.addf %97, %99 : vector<14x168xf32>
    %cst_89 = arith.constant 0.000000e+00 : f32
    %101 = vector.broadcast %cst_89 : f32 to vector<14x168xf32>
    %102 = arith.maximumf %100, %101 : vector<14x168xf32>
    %103 = arith.maximumf %86, %102 : vector<14x168xf32>
    %104 = vector.extract_strided_slice %103 {offsets = [0, 0], sizes = [2, 168], strides = [1, 1]} : vector<14x168xf32> to vector<2x168xf32>
    %105 = arith.truncf %104 : vector<2x168xf32> to vector<2x168xbf16>
    %c0_90 = arith.constant 0 : index
    %c0_91 = arith.constant 0 : index
    %c0_92 = arith.constant 0 : index
    %106 = vector.load %arg7[%c0_90, %c0_91, %c0_92] : memref<7x168x64xbf16, #tpu.memory_space<vmem>>, vector<1x168x64xbf16>
    %107 = vector.shape_cast %106 : vector<1x168x64xbf16> to vector<168x64xbf16>
    %cst_93 = arith.constant dense<0.000000e+00> : vector<2x64xf32>
    %108 = tpu.matmul %105, %107, %cst_93 {dimension_numbers = #tpu.dot_dimension_numbers<[1], [0], [0], [1], [0, 0, 1, 1], [], []>} : vector<2x168xbf16>, vector<168x64xbf16>, vector<2x64xf32> -> vector<2x64xf32>
    %109 = vector.extract_strided_slice %103 {offsets = [2, 0], sizes = [2, 168], strides = [1, 1]} : vector<14x168xf32> to vector<2x168xf32>
    %110 = arith.truncf %109 : vector<2x168xf32> to vector<2x168xbf16>
    %c1_94 = arith.constant 1 : index
    %c0_95 = arith.constant 0 : index
    %c0_96 = arith.constant 0 : index
    %111 = vector.load %arg7[%c1_94, %c0_95, %c0_96] : memref<7x168x64xbf16, #tpu.memory_space<vmem>>, vector<1x168x64xbf16>
    %112 = vector.shape_cast %111 : vector<1x168x64xbf16> to vector<168x64xbf16>
    %cst_97 = arith.constant dense<0.000000e+00> : vector<2x64xf32>
    %113 = tpu.matmul %110, %112, %cst_97 {dimension_numbers = #tpu.dot_dimension_numbers<[1], [0], [0], [1], [0, 0, 1, 1], [], []>} : vector<2x168xbf16>, vector<168x64xbf16>, vector<2x64xf32> -> vector<2x64xf32>
    %114 = arith.addf %108, %113 : vector<2x64xf32>
    %115 = vector.extract_strided_slice %103 {offsets = [4, 0], sizes = [2, 168], strides = [1, 1]} : vector<14x168xf32> to vector<2x168xf32>
    %116 = arith.truncf %115 : vector<2x168xf32> to vector<2x168xbf16>
    %c2_98 = arith.constant 2 : index
    %c0_99 = arith.constant 0 : index
    %c0_100 = arith.constant 0 : index
    %117 = vector.load %arg7[%c2_98, %c0_99, %c0_100] : memref<7x168x64xbf16, #tpu.memory_space<vmem>>, vector<1x168x64xbf16>
    %118 = vector.shape_cast %117 : vector<1x168x64xbf16> to vector<168x64xbf16>
    %cst_101 = arith.constant dense<0.000000e+00> : vector<2x64xf32>
    %119 = tpu.matmul %116, %118, %cst_101 {dimension_numbers = #tpu.dot_dimension_numbers<[1], [0], [0], [1], [0, 0, 1, 1], [], []>} : vector<2x168xbf16>, vector<168x64xbf16>, vector<2x64xf32> -> vector<2x64xf32>
    %120 = arith.addf %114, %119 : vector<2x64xf32>
    %121 = vector.extract_strided_slice %103 {offsets = [6, 0], sizes = [2, 168], strides = [1, 1]} : vector<14x168xf32> to vector<2x168xf32>
    %122 = arith.truncf %121 : vector<2x168xf32> to vector<2x168xbf16>
    %c3 = arith.constant 3 : index
    %c0_102 = arith.constant 0 : index
    %c0_103 = arith.constant 0 : index
    %123 = vector.load %arg7[%c3, %c0_102, %c0_103] : memref<7x168x64xbf16, #tpu.memory_space<vmem>>, vector<1x168x64xbf16>
    %124 = vector.shape_cast %123 : vector<1x168x64xbf16> to vector<168x64xbf16>
    %cst_104 = arith.constant dense<0.000000e+00> : vector<2x64xf32>
    %125 = tpu.matmul %122, %124, %cst_104 {dimension_numbers = #tpu.dot_dimension_numbers<[1], [0], [0], [1], [0, 0, 1, 1], [], []>} : vector<2x168xbf16>, vector<168x64xbf16>, vector<2x64xf32> -> vector<2x64xf32>
    %126 = arith.addf %120, %125 : vector<2x64xf32>
    %127 = vector.extract_strided_slice %103 {offsets = [8, 0], sizes = [2, 168], strides = [1, 1]} : vector<14x168xf32> to vector<2x168xf32>
    %128 = arith.truncf %127 : vector<2x168xf32> to vector<2x168xbf16>
    %c4 = arith.constant 4 : index
    %c0_105 = arith.constant 0 : index
    %c0_106 = arith.constant 0 : index
    %129 = vector.load %arg7[%c4, %c0_105, %c0_106] : memref<7x168x64xbf16, #tpu.memory_space<vmem>>, vector<1x168x64xbf16>
    %130 = vector.shape_cast %129 : vector<1x168x64xbf16> to vector<168x64xbf16>
    %cst_107 = arith.constant dense<0.000000e+00> : vector<2x64xf32>
    %131 = tpu.matmul %128, %130, %cst_107 {dimension_numbers = #tpu.dot_dimension_numbers<[1], [0], [0], [1], [0, 0, 1, 1], [], []>} : vector<2x168xbf16>, vector<168x64xbf16>, vector<2x64xf32> -> vector<2x64xf32>
    %132 = arith.addf %126, %131 : vector<2x64xf32>
    %133 = vector.extract_strided_slice %103 {offsets = [10, 0], sizes = [2, 168], strides = [1, 1]} : vector<14x168xf32> to vector<2x168xf32>
    %134 = arith.truncf %133 : vector<2x168xf32> to vector<2x168xbf16>
    %c5 = arith.constant 5 : index
    %c0_108 = arith.constant 0 : index
    %c0_109 = arith.constant 0 : index
    %135 = vector.load %arg7[%c5, %c0_108, %c0_109] : memref<7x168x64xbf16, #tpu.memory_space<vmem>>, vector<1x168x64xbf16>
    %136 = vector.shape_cast %135 : vector<1x168x64xbf16> to vector<168x64xbf16>
    %cst_110 = arith.constant dense<0.000000e+00> : vector<2x64xf32>
    %137 = tpu.matmul %134, %136, %cst_110 {dimension_numbers = #tpu.dot_dimension_numbers<[1], [0], [0], [1], [0, 0, 1, 1], [], []>} : vector<2x168xbf16>, vector<168x64xbf16>, vector<2x64xf32> -> vector<2x64xf32>
    %138 = arith.addf %132, %137 : vector<2x64xf32>
    %139 = vector.extract_strided_slice %103 {offsets = [12, 0], sizes = [2, 168], strides = [1, 1]} : vector<14x168xf32> to vector<2x168xf32>
    %140 = arith.truncf %139 : vector<2x168xf32> to vector<2x168xbf16>
    %c6 = arith.constant 6 : index
    %c0_111 = arith.constant 0 : index
    %c0_112 = arith.constant 0 : index
    %141 = vector.load %arg7[%c6, %c0_111, %c0_112] : memref<7x168x64xbf16, #tpu.memory_space<vmem>>, vector<1x168x64xbf16>
    %142 = vector.shape_cast %141 : vector<1x168x64xbf16> to vector<168x64xbf16>
    %cst_113 = arith.constant dense<0.000000e+00> : vector<2x64xf32>
    %143 = tpu.matmul %140, %142, %cst_113 {dimension_numbers = #tpu.dot_dimension_numbers<[1], [0], [0], [1], [0, 0, 1, 1], [], []>} : vector<2x168xbf16>, vector<168x64xbf16>, vector<2x64xf32> -> vector<2x64xf32>
    %144 = arith.addf %138, %143 : vector<2x64xf32>
    %c0_114 = arith.constant 0 : index
    %c0_115 = arith.constant 0 : index
    %145 = vector.load %arg8[%c0_114, %c0_115] : memref<1x64xf32, #tpu.memory_space<vmem>>, vector<1x64xf32>
    %146 = vector.broadcast %145 : vector<1x64xf32> to vector<2x64xf32>
    %147 = arith.addf %144, %146 : vector<2x64xf32>
    %cst_116 = arith.constant 0.000000e+00 : f32
    %148 = vector.broadcast %cst_116 : f32 to vector<2x64xf32>
    %149 = arith.maximumf %147, %148 : vector<2x64xf32>
    %150 = arith.truncf %149 : vector<2x64xf32> to vector<2x64xbf16>
    %c0_117 = arith.constant 0 : index
    %c0_118 = arith.constant 0 : index
    %151 = vector.load %arg9[%c0_117, %c0_118] : memref<64x128xbf16, #tpu.memory_space<vmem>>, vector<64x128xbf16>
    %cst_119 = arith.constant dense<0.000000e+00> : vector<2x128xf32>
    %152 = tpu.matmul %150, %151, %cst_119 {dimension_numbers = #tpu.dot_dimension_numbers<[1], [0], [0], [1], [0, 0, 1, 1], [], []>} : vector<2x64xbf16>, vector<64x128xbf16>, vector<2x128xf32> -> vector<2x128xf32>
    %c0_120 = arith.constant 0 : index
    %c0_121 = arith.constant 0 : index
    %153 = vector.load %arg10[%c0_120, %c0_121] : memref<1x128xf32, #tpu.memory_space<vmem>>, vector<1x128xf32>
    %154 = vector.broadcast %153 : vector<1x128xf32> to vector<2x128xf32>
    %155 = arith.addf %152, %154 : vector<2x128xf32>
    %c0_122 = arith.constant 0 : index
    %c0_123 = arith.constant 0 : index
    %156 = vector.load %arg11[%c0_122, %c0_123] : memref<2x128xf32, #tpu.memory_space<vmem>>, vector<2x128xf32>
    tpu.vector_store %arg11[%c0_122, %c0_123], %155 {strides = array<i32>} : memref<2x128xf32, #tpu.memory_space<vmem>>, vector<2x128xf32>,
    return
  }
  func.func @transform_0(%arg0: i32) -> (i32, i32) {
    %c0_i32 = arith.constant 0 : i32
    %c0_i32_0 = arith.constant 0 : i32
    return %arg0, %c0_i32 : i32, i32
  }
  func.func @transform_1(%arg0: i32) -> (i32, i32, i32) {
    %c0_i32 = arith.constant 0 : i32
    %c0_i32_0 = arith.constant 0 : i32
    %c0_i32_1 = arith.constant 0 : i32
    %c0_i32_2 = arith.constant 0 : i32
    return %c0_i32, %c0_i32_0, %c0_i32_1 : i32, i32, i32
  }
  func.func @transform_2(%arg0: i32) -> (i32, i32) {
    %c0_i32 = arith.constant 0 : i32
    %c0_i32_0 = arith.constant 0 : i32
    %c0_i32_1 = arith.constant 0 : i32
    return %c0_i32, %c0_i32_0 : i32, i32
  }
  func.func @transform_3(%arg0: i32) -> (i32, i32, i32, i32) {
    %c0_i32 = arith.constant 0 : i32
    %c0_i32_0 = arith.constant 0 : i32
    %c0_i32_1 = arith.constant 0 : i32
    %c0_i32_2 = arith.constant 0 : i32
    %c0_i32_3 = arith.constant 0 : i32
    return %c0_i32, %c0_i32_0, %c0_i32_1, %c0_i32_2 : i32, i32, i32, i32
  }
  func.func @transform_4(%arg0: i32) -> (i32, i32) {
    %c0_i32 = arith.constant 0 : i32
    %c0_i32_0 = arith.constant 0 : i32
    %c0_i32_1 = arith.constant 0 : i32
    return %c0_i32, %c0_i32_0 : i32, i32
  }
  func.func @transform_5(%arg0: i32) -> (i32, i32, i32) {
    %c0_i32 = arith.constant 0 : i32
    %c0_i32_0 = arith.constant 0 : i32
    %c0_i32_1 = arith.constant 0 : i32
    %c0_i32_2 = arith.constant 0 : i32
    return %c0_i32, %c0_i32_0, %c0_i32_1 : i32, i32, i32
  }
  func.func @transform_6(%arg0: i32) -> (i32, i32, i32) {
    %c0_i32 = arith.constant 0 : i32
    %c0_i32_0 = arith.constant 0 : i32
    %c0_i32_1 = arith.constant 0 : i32
    %c0_i32_2 = arith.constant 0 : i32
    return %c0_i32, %c0_i32_0, %c0_i32_1 : i32, i32, i32
  }
  func.func @transform_7(%arg0: i32) -> (i32, i32) {
    %c0_i32 = arith.constant 0 : i32
    %c0_i32_0 = arith.constant 0 : i32
    %c0_i32_1 = arith.constant 0 : i32
    return %c0_i32, %c0_i32_0 : i32, i32
  }
  func.func @transform_8(%arg0: i32) -> (i32, i32) {
    %c0_i32 = arith.constant 0 : i32
    %c0_i32_0 = arith.constant 0 : i32
    %c0_i32_1 = arith.constant 0 : i32
    return %c0_i32, %c0_i32_0 : i32, i32
  }
  func.func @transform_9(%arg0: i32) -> (i32, i32) {
    %c0_i32 = arith.constant 0 : i32
    %c0_i32_0 = arith.constant 0 : i32
    %c0_i32_1 = arith.constant 0 : i32
    return %c0_i32, %c0_i32_0 : i32, i32
  }
  func.func @transform_10(%arg0: i32) -> (i32, i32) {
    %c0_i32 = arith.constant 0 : i32
    %c0_i32_0 = arith.constant 0 : i32
    return %arg0, %c0_i32 : i32, i32
  }
}

</mosaic_0001>

<llo_original>
// kernel: tile.13
$region0: #{tile.13}
  #allocation0 [shape = 's32[1]{0}', space=sflag, size = 0x4, scoped, tag = 'scoped memory for tile.13']
  %s0 = inlined_call_operand.vmem [shape: f32[12], index: 0, kind: input, shape index: {}]
  %s1 = inlined_call_operand.vmem [shape: f32[14,12], index: 1, kind: output, shape index: {}]
  // Predicated region
  $region2: #{tile.13} parent=0 // pred_check
    _
  $region3: #{tile.13} parent=0 // pred_check_branch
    %3 = sbr.rel (0) target = $region5
  $region4: #{tile.13} parent=0 // pred_region
    _
  $region5: #{tile.13} parent=0 // pred_fallthru
    _
  %v4 = vld [vmem:[%s0] ss:$0 sm:$0xff]
  %5 = vst [vmem:[%s1] sm:$0xff] %v4
  %s6 = scalar_lea.vmem %s1, 8
  %7 = vst [vmem:[%s6] sm:$0xff] %v4

// kernel: tile.14
$region0: #{tile.14}
  %s0 = inlined_call_operand.vmem [shape: f32[14,12], index: 0, kind: input, shape index: {}]
  %s1 = inlined_call_operand.vmem [shape: f32[1,168], index: 1, kind: output, shape index: {}]
  $region1: #{tile.14} parent=0
    #allocation0 [shape = 'u8[8192]{0}', space=vmem, size = 0x2000, scoped, tag = 'scoped mem for output reshape']
    %v2 = vld [vmem:[%s0] sm:$0x1]
    %vm3 = vcmask 97280
    %4 = vst.msk [vmem:[#allocation0] sm:$0x1] %vm3, %v2
    %s5 = scalar_lea.vmem %s0, 10
    %v6 = vld [vmem:[%s5] sm:$0x1]
    %s7 = scalar_lea.vmem %s0, 10
    %v8 = vld [vmem:[%s7] sm:$0x1]
    %vm9 = vcmask 64512
    %v10 = vsel %vm9, %v8, %v6
    %11 = vrot.lane.b32.xlu0 %v10, 120
    %v12 = vpop.permute.xlu0 %11
    %vm13 = vcmask 31744
    %s14 = scalar_lea.vmem [#allocation0], 8
    %15 = vst.msk [vmem:[%s14] sm:$0x1] %vm13, %v12
    %vm16 = vcmask 1048512
    %17 = vst.msk [vmem:[#allocation0] sm:$0x1] %vm16, %v12
    %s18 = scalar_lea.vmem %s0, 9
    %v19 = vld [vmem:[%s18] sm:$0x1]
    %20 = vrot.lane.b32.xlu0 %v19, 108
    %v21 = vpop.permute.xlu0 %20
    %vm22 = vcmask 982880
    %23 = vst.msk [vmem:[#allocation0] sm:$0x1] %vm22, %v21
    %s24 = scalar_lea.vmem %s0, 8
    %v25 = vld [vmem:[%s24] sm:$0x1]
    %26 = vrot.lane.b32.xlu0 %v25, 96
    %v27 = vpop.permute.xlu0 %26
    %vm28 = vcmask 884480
    %29 = vst.msk [vmem:[#allocation0] sm:$0x1] %vm28, %v27
    %s30 = scalar_lea.vmem %s0, 7
    %v31 = vld [vmem:[%s30] sm:$0x1]
    %32 = vrot.lane.b32.xlu0 %v31, 84
    %v33 = vpop.permute.xlu0 %32
    %vm34 = vcmask 786080
    %35 = vst.msk [vmem:[#allocation0] sm:$0x1] %vm34, %v33
    %s36 = scalar_lea.vmem %s0, 6
    %v37 = vld [vmem:[%s36] sm:$0x1]
    %38 = vrot.lane.b32.xlu0 %v37, 72
    %v39 = vpop.permute.xlu0 %38
    %vm40 = vcmask 687680
    %41 = vst.msk [vmem:[#allocation0] sm:$0x1] %vm40, %v39
    %s42 = scalar_lea.vmem %s0, 5
    %v43 = vld [vmem:[%s42] sm:$0x1]
    %44 = vrot.lane.b32.xlu0 %v43, 60
    %v45 = vpop.permute.xlu0 %44
    %vm46 = vcmask 589280
    %47 = vst.msk [vmem:[#allocation0] sm:$0x1] %vm46, %v45
    %s48 = scalar_lea.vmem %s0, 4
    %v49 = vld [vmem:[%s48] sm:$0x1]
    %50 = vrot.lane.b32.xlu0 %v49, 48
    %v51 = vpop.permute.xlu0 %50
    %vm52 = vcmask 490880
    %53 = vst.msk [vmem:[#allocation0] sm:$0x1] %vm52, %v51
    %s54 = scalar_lea.vmem %s0, 3
    %v55 = vld [vmem:[%s54] sm:$0x1]
    %56 = vrot.lane.b32.xlu0 %v55, 36
    %v57 = vpop.permute.xlu0 %56
    %vm58 = vcmask 392480
    %59 = vst.msk [vmem:[#allocation0] sm:$0x1] %vm58, %v57
    %s60 = scalar_lea.vmem %s0, 13
    %v61 = vld [vmem:[%s60] sm:$0x1]
    %62 = vrot.lane.b32.xlu0 %v61, 28
    %v63 = vpop.permute.xlu0 %62
    %vm64 = vcmask 326880
    %s65 = scalar_lea.vmem [#allocation0], 8
    %66 = vst.msk [vmem:[%s65] sm:$0x1] %vm64, %v63
    %s67 = scalar_lea.vmem %s0, 2
    %v68 = vld [vmem:[%s67] sm:$0x1]
    %69 = vrot.lane.b32.xlu0 %v68, 24
    %v70 = vpop.permute.xlu0 %69
    %vm71 = vcmask 294080
    %72 = vst.msk [vmem:[#allocation0] sm:$0x1] %vm71, %v70
    %s73 = scalar_lea.vmem %s0, 12
    %v74 = vld [vmem:[%s73] sm:$0x1]
    %75 = vrot.lane.b32.xlu0 %v74, 16
    %v76 = vpop.permute.xlu0 %75
    %vm77 = vcmask 228480
    %s78 = scalar_lea.vmem [#allocation0], 8
    %79 = vst.msk [vmem:[%s78] sm:$0x1] %vm77, %v76
    %s80 = scalar_lea.vmem %s0, 1
    %v81 = vld [vmem:[%s80] sm:$0x1]
    %82 = vrot.lane.b32.xlu0 %v81, 12
    %v83 = vpop.permute.xlu0 %82
    %vm84 = vcmask 195680
    %85 = vst.msk [vmem:[#allocation0] sm:$0x1] %vm84, %v83
    %s86 = scalar_lea.vmem %s0, 11
    %v87 = vld [vmem:[%s86] sm:$0x1]
    %88 = vrot.lane.b32.xlu0 %v87, 4
    %v89 = vpop.permute.xlu0 %88
    %vm90 = vcmask 130080
    %s91 = scalar_lea.vmem [#allocation0], 8
    %92 = vst.msk [vmem:[%s91] sm:$0x1] %vm90, %v89
    %s94 = sshllo.u32 0, 1
    %v96 = vld [vmem:[#allocation0] sm:%s94]
    %s97 = sshllo.u32 0, 1
    %98 = vst [vmem:[%s1] sm:%s97] %v96
    %s99 = scalar_lea.vmem [#allocation0], 8
    %v100 = vld [vmem:[%s99] sm:%s94]
    %s101 = sshllo.u32 0, 1
    %s102 = scalar_lea.vmem %s1, 1
    %103 = vst [vmem:[%s102] sm:%s101] %v100

// kernel: tile.18
$region0: #{tile.18}
  #allocation0 [shape = 's32[1]{0}', space=sflag, size = 0x4, scoped, tag = 'scoped memory for tile.18']
  %s0 = inlined_call_operand.vmem [shape: f32[24], index: 0, kind: input, shape index: {}]
  %s1 = inlined_call_operand.vmem [shape: f32[7,24], index: 1, kind: output, shape index: {}]
  // Predicated region
  $region2: #{tile.18} parent=0 // pred_check
    _
  $region3: #{tile.18} parent=0 // pred_check_branch
    %3 = sbr.rel (0) target = $region5
  $region4: #{tile.18} parent=0 // pred_region
    _
  $region5: #{tile.18} parent=0 // pred_fallthru
    _
  %v4 = vld [vmem:[%s0] ss:$0 sm:$0xff]
  %5 = vst [vmem:[%s1] sm:$0xff] %v4

// kernel: tile.19
$region0: #{tile.19}
  %s0 = inlined_call_operand.vmem [shape: f32[7,24], index: 0, kind: input, shape index: {}]
  %s1 = inlined_call_operand.vmem [shape: f32[1,168], index: 1, kind: output, shape index: {}]
  $region1: #{tile.19} parent=0
    #allocation0 [shape = 'u8[8192]{0}', space=vmem, size = 0x2000, scoped, tag = 'scoped mem for output reshape']
    %v2 = vld [vmem:[%s0] sm:$0x1]
    %vm3 = vcmask 195584
    %4 = vst.msk [vmem:[#allocation0] sm:$0x1] %vm3, %v2
    %s5 = scalar_lea.vmem %s0, 5
    %v6 = vld [vmem:[%s5] sm:$0x1]
    %s7 = scalar_lea.vmem %s0, 5
    %v8 = vld [vmem:[%s7] sm:$0x1]
    %vm9 = vcmask 64512
    %v10 = vsel %vm9, %v8, %v6
    %11 = vrot.lane.b32.xlu0 %v10, 120
    %v12 = vpop.permute.xlu0 %11
    %vm13 = vcmask 130048
    %s14 = scalar_lea.vmem [#allocation0], 8
    %15 = vst.msk [vmem:[%s14] sm:$0x1] %vm13, %v12
    %vm16 = vcmask 1048512
    %17 = vst.msk [vmem:[#allocation0] sm:$0x1] %vm16, %v12
    %s18 = scalar_lea.vmem %s0, 4
    %v19 = vld [vmem:[%s18] sm:$0x1]
    %20 = vrot.lane.b32.xlu0 %v19, 96
    %v21 = vpop.permute.xlu0 %20
    %vm22 = vcmask 982784
    %23 = vst.msk [vmem:[#allocation0] sm:$0x1] %vm22, %v21
    %s24 = scalar_lea.vmem %s0, 3
    %v25 = vld [vmem:[%s24] sm:$0x1]
    %26 = vrot.lane.b32.xlu0 %v25, 72
    %v27 = vpop.permute.xlu0 %26
    %vm28 = vcmask 785984
    %29 = vst.msk [vmem:[#allocation0] sm:$0x1] %vm28, %v27
    %s30 = scalar_lea.vmem %s0, 2
    %v31 = vld [vmem:[%s30] sm:$0x1]
    %32 = vrot.lane.b32.xlu0 %v31, 48
    %v33 = vpop.permute.xlu0 %32
    %vm34 = vcmask 589184
    %35 = vst.msk [vmem:[#allocation0] sm:$0x1] %vm34, %v33
    %s36 = scalar_lea.vmem %s0, 1
    %v37 = vld [vmem:[%s36] sm:$0x1]
    %38 = vrot.lane.b32.xlu0 %v37, 24
    %v39 = vpop.permute.xlu0 %38
    %vm40 = vcmask 392384
    %41 = vst.msk [vmem:[#allocation0] sm:$0x1] %vm40, %v39
    %s42 = scalar_lea.vmem %s0, 6
    %v43 = vld [vmem:[%s42] sm:$0x1]
    %44 = vrot.lane.b32.xlu0 %v43, 16
    %v45 = vpop.permute.xlu0 %44
    %vm46 = vcmask 326784
    %s47 = scalar_lea.vmem [#allocation0], 8
    %48 = vst.msk [vmem:[%s47] sm:$0x1] %vm46, %v45
    %s50 = sshllo.u32 0, 1
    %v52 = vld [vmem:[#allocation0] sm:%s50]
    %s53 = sshllo.u32 0, 1
    %54 = vst [vmem:[%s1] sm:%s53] %v52
    %s55 = scalar_lea.vmem [#allocation0], 8
    %v56 = vld [vmem:[%s55] sm:%s50]
    %s57 = sshllo.u32 0, 1
    %s58 = scalar_lea.vmem %s1, 1
    %59 = vst [vmem:[%s58] sm:%s57] %v56

// kernel: network_forward.1
$region0: #{network_forward.1}
  #allocation0 [shape = 'u32[]', space=smem, size = 0x4, offset = 0x4, fixed_abs, tag = 'smem constant byte address 0x4 - core index']
  #allocation1 [shape = 'u32[144,128]{1,0:T(1,128)}', space=vmem, size = 0x12000, scoped, tag = 'internal scratch']
  %s0 = inlined_call_operand.vmem [shape: bf16[56,84], index: 0, kind: input, shape index: {}]
  %s1 = inlined_call_operand.vmem [shape: bf16[2,84,168], index: 1, kind: input, shape index: {}]
  %s2 = inlined_call_operand.vmem [shape: f32[1,168], index: 2, kind: input, shape index: {}]
  %s3 = inlined_call_operand.vmem [shape: bf16[2,3,168,168], index: 3, kind: input, shape index: {}]
  %s4 = inlined_call_operand.vmem [shape: f32[1,168], index: 4, kind: input, shape index: {}]
  %s5 = inlined_call_operand.vmem [shape: f32[2,14,1], index: 5, kind: input, shape index: {}]
  %s6 = inlined_call_operand.vmem [shape: bf16[7,168,64], index: 6, kind: input, shape index: {}]
  %s7 = inlined_call_operand.vmem [shape: f32[1,64], index: 7, kind: input, shape index: {}]
  %s8 = inlined_call_operand.vmem [shape: bf16[64,128], index: 8, kind: input, shape index: {}]
  %s9 = inlined_call_operand.vmem [shape: f32[1,128], index: 9, kind: input, shape index: {}]
  %s10 = inlined_call_operand.hbm [shape: f32[2,128], index: 10, kind: output, shape index: {}]
  %s11 = sld [smem:[#allocation0]]
  $region50: #{network_forward.1} parent=0
    _
  %s13 = ssub.s32 1, %s11
  %s14 = scalar_select 0, %s13, %s11
  $region1: #{network_forward.1} parent=0
    #allocation2 [shape = 'u8[1024]{0}', space=vmem, size = 0x400, scoped, tag = 'output window, operand 0, single buffered']
    #allocation3 [shape = 's32[1]{0}', space=sflag, size = 0x4, scoped, tag = 'scoped memory for network_forward.1']
    %15 = vsyncpa [#allocation3], 0
    // Predicated region
    $region2: #{network_forward.1} parent=1 // pred_check
      _
    $region3: #{network_forward.1} parent=1 // pred_check_branch
      %17 = sbr.rel (0) target = $region5
    $region4: #{network_forward.1} parent=1 // pred_region
      _
    $region5: #{network_forward.1} parent=1 // pred_fallthru
      _
    // Predicated region
    $region6: #{network_forward.1} parent=1 // pred_check
      _
    $region7: #{network_forward.1} parent=1 // pred_check_branch
      %19 = sbr.rel (0) target = $region9
    $region8: #{network_forward.1} parent=1 // pred_region
      _
    $region9: #{network_forward.1} parent=1 // pred_fallthru
      _
    // Predicated region
    $region10: #{network_forward.1} parent=1 // pred_check
      _
    $region11: #{network_forward.1} parent=1 // pred_check_branch
      %21 = sbr.rel (0) target = $region13
    $region12: #{network_forward.1} parent=1 // pred_region
      _
    $region13: #{network_forward.1} parent=1 // pred_fallthru
      _
    // Predicated region
    $region14: #{network_forward.1} parent=1 // pred_check
      _
    $region15: #{network_forward.1} parent=1 // pred_check_branch
      %23 = sbr.rel (0) target = $region17
    $region16: #{network_forward.1} parent=1 // pred_region
      _
    $region17: #{network_forward.1} parent=1 // pred_fallthru
      _
    // Predicated region
    $region18: #{network_forward.1} parent=1 // pred_check
      _
    $region19: #{network_forward.1} parent=1 // pred_check_branch
      %25 = sbr.rel (0) target = $region21
    $region20: #{network_forward.1} parent=1 // pred_region
      _
    $region21: #{network_forward.1} parent=1 // pred_fallthru
      _
    // Predicated region
    $region22: #{network_forward.1} parent=1 // pred_check
      _
    $region23: #{network_forward.1} parent=1 // pred_check_branch
      %27 = sbr.rel (0) target = $region25
    $region24: #{network_forward.1} parent=1 // pred_region
      _
    $region25: #{network_forward.1} parent=1 // pred_fallthru
      _
    // Predicated region
    $region26: #{network_forward.1} parent=1 // pred_check
      _
    $region27: #{network_forward.1} parent=1 // pred_check_branch
      %29 = sbr.rel (0) target = $region29
    $region28: #{network_forward.1} parent=1 // pred_region
      _
    $region29: #{network_forward.1} parent=1 // pred_fallthru
      _
    // Predicated region
    $region30: #{network_forward.1} parent=1 // pred_check
      _
    $region31: #{network_forward.1} parent=1 // pred_check_branch
      %31 = sbr.rel (0) target = $region33
    $region32: #{network_forward.1} parent=1 // pred_region
      _
    $region33: #{network_forward.1} parent=1 // pred_fallthru
      _
    // Predicated region
    $region34: #{network_forward.1} parent=1 // pred_check
      _
    $region35: #{network_forward.1} parent=1 // pred_check_branch
      %33 = sbr.rel (0) target = $region37
    $region36: #{network_forward.1} parent=1 // pred_region
      _
    $region37: #{network_forward.1} parent=1 // pred_fallthru
      _
    // Predicated region
    $region38: #{network_forward.1} parent=1 // pred_check
      _
    $region39: #{network_forward.1} parent=1 // pred_check_branch
      %35 = sbr.rel (0) target = $region41
    $region40: #{network_forward.1} parent=1 // pred_region
      _
    $region41: #{network_forward.1} parent=1 // pred_fallthru
      _
    %v37 = vld [vmem:[%s0] sm:$0xf]
    %v38 = vld [vmem:[%s0 + $0x4] sm:$0xf]
    %v39 = vld [vmem:[%s0 + $0x8] sm:$0xf]
    %v40 = vld [vmem:[%s0 + $0xc] sm:$0xf]
    %v41 = vld [vmem:[%s0 + $0x10] sm:$0xf]
    %v42 = vld [vmem:[%s0 + $0x14] sm:$0xf]
    %v43 = vld [vmem:[%s0 + $0x18] sm:$0xf]
    %v44 = vld [vmem:[%s1] sm:$0xff]
    %v45 = vld [vmem:[%s1 + $0x8] sm:$0xff]
    %v46 = vld [vmem:[%s1 + $0x10] sm:$0xff]
    %v47 = vld [vmem:[%s1 + $0x18] sm:$0xff]
    %v48 = vld [vmem:[%s1 + $0x20] sm:$0xff]
    %v49 = vld [vmem:[%s1 + $0x28] sm:$0xff]
    %v50 = vld [vmem:[%s1 + $0x30] sm:$0xff]
    %v51 = vld [vmem:[%s1 + $0x38] sm:$0xff]
    %v52 = vld [vmem:[%s1 + $0x40] sm:$0xff]
    %v53 = vld [vmem:[%s1 + $0x48] sm:$0xff]
    %v54 = vld [vmem:[%s1 + $0x50] sm:$0x33]
    %v55 = vld [vmem:[%s2] sm:$0x3]
    %v57 = vlaneseq
    %v58 = vshrl.u32 %v57, 7
    %v59 = vsub.s32 0, %v58
    %v60 = vrot.slane %v55, %v59
    %v61 = vlaneseq
    %v62 = vshrl.u32 %v61, 7
    %v63 = vsub.s32 1, %v62
    %v64 = vrot.slane %v55, %v63
    %v74 = vunpack.c.l.b16 %v37
    %v75 = vunpack.c.l.b16 %v38
    %v76 = vunpack.c.l.b16 %v39
    %v77 = vunpack.c.l.b16 %v40
    %v78 = vunpack.c.l.b16 %v41
    %v79 = vunpack.c.l.b16 %v42
    %v80 = vunpack.c.l.b16 %v43
    %v81 = vpack.c.b16 %v75, %v74
    %v82 = vpack.c.b16 %v77, %v76
    %v83 = vpack.c.b16 %v79, %v78
    %v84 = vpack.c.b16 %v80, %v80
    %v96 = vunpack.c.l.b16 %v44
    %v97 = vunpack.c.h.b16 %v44
    %v98 = vunpack.c.l.b16 %v45
    %v99 = vunpack.c.h.b16 %v45
    %v100 = vunpack.c.l.b16 %v46
    %v101 = vunpack.c.h.b16 %v46
    %v102 = vunpack.c.l.b16 %v47
    %v103 = vunpack.c.h.b16 %v47
    %v104 = vunpack.c.l.b16 %v48
    %v105 = vunpack.c.h.b16 %v48
    %v106 = vunpack.c.l.b16 %v49
    %v107 = vunpack.c.h.b16 %v49
    %v108 = vunpack.c.l.b16 %v50
    %v109 = vunpack.c.h.b16 %v50
    %v110 = vunpack.c.l.b16 %v51
    %v111 = vunpack.c.h.b16 %v51
    %v112 = vunpack.c.l.b16 %v52
    %v113 = vunpack.c.h.b16 %v52
    %v114 = vunpack.c.l.b16 %v53
    %v115 = vunpack.c.h.b16 %v53
    %v116 = vunpack.c.l.b16 %v54
    %v117 = vunpack.c.h.b16 %v54
    %v118 = vpack.c.b16 %v98, %v96
    %v119 = vpack.c.b16 %v99, %v97
    %v120 = vpack.c.b16 %v102, %v100
    %v121 = vpack.c.b16 %v103, %v101
    %v122 = vpack.c.b16 %v106, %v104
    %v123 = vpack.c.b16 %v107, %v105
    %v124 = vpack.c.b16 %v110, %v108
    %v125 = vpack.c.b16 %v111, %v109
    %v126 = vpack.c.b16 %v114, %v112
    %v127 = vpack.c.b16 %v115, %v113
    %v128 = vpack.c.b16 %v116, %v116
    %v129 = vpack.c.b16 %v117, %v117
    %vm140 = vcmask 687104
    %v142 = vsel %vm140, %v81, 0
    %v145 = vsel %vm140, %v82, 0
    %v148 = vsel %vm140, %v83, 0
    %v151 = vsel %vm140, %v84, 0
    %vm153 = vcmask 1041408
    %v155 = vsel %vm153, %v128, 0
    %v158 = vsel %vm153, %v129, 0
    %160 = vmatprep.subr.bf16.mxu0 %v119
    %161 = vmatpush1.bf16.msra.mxu0 %v118
    %162 = vmatprep.subr.bf16.mxu0 %v121
    %163 = vmatpush1.bf16.msra.mxu0 %v120
    %164 = vmatprep.subr.bf16.mxu0 %v123
    %165 = vmatpush1.bf16.msra.mxu0 %v122
    %166 = vmatprep.subr.bf16.mxu0 %v125
    %167 = vmatpush1.bf16.msra.mxu0 %v124
    %168 = vmatprep.subr.bf16.mxu0 %v127
    %169 = vmatpush1.bf16.msra.mxu0 %v126
    %170 = vmatprep.subr.bf16.mxu0 %v158
    %171 = vmatpush1.bf16.msra.mxu0 %v155
    %172 = vmatprep.subr.bf16.mxu0 0
    %173 = vmatpush1.bf16.msra.mxu0 0
    %174 = vmatprep.subr.bf16.mxu0 0
    %175 = vmatpush1.bf16.msra.mxu0 0
    %176 = vmatprep.subr.bf16.mxu0 0
    %177 = vmatpush1.bf16.msra.mxu0 0
    %178 = vmatprep.subr.bf16.mxu0 0
    %179 = vmatpush1.bf16.msra.mxu0 0
    %180 = vmatprep.subr.bf16.mxu0 0
    %181 = vmatpush1.bf16.msra.mxu0 0
    %182 = vmatprep.subr.bf16.mxu0 0
    %183 = vmatpush1.bf16.msra.mxu0 0
    %184 = vmatprep.subr.bf16.mxu0 0
    %185 = vmatpush1.bf16.msra.mxu0 0
    %186 = vmatprep.subr.bf16.mxu0 0
    %187 = vmatpush1.bf16.msra.mxu0 0
    %188 = vmatprep.subr.bf16.mxu0 0
    %189 = vmatpush1.bf16.msra.mxu0 0
    %190 = vmatprep.subr.bf16.mxu0 0
    %191 = vmatpush1.bf16.msra.mxu0 0
    %192 = vmatprep.mubr.bf16.mxu0 0
    %193 = vmatmul.mubr.bf16.gmra.mrb[0].mxu0 %v142
    %v194 = vpop.f32.mrb[0].mxu0
    %v195 = vadd.f32 %v60, %v194
    %v196 = vpop.f32.mrb[0].mxu0
    %v197 = vadd.f32 %v64, %v196
    %v198 = vpop.f32.mrb[0].mxu0
    %v199 = vadd.f32 %v60, %v198
    %v200 = vpop.f32.mrb[0].mxu0
    %v201 = vadd.f32 %v64, %v200
    %202 = vmatprep.mubr.bf16.mxu0 0
    %203 = vmatmul.mubr.bf16.gmra.mrb[0].mxu0 %v145
    %v204 = vpop.f32.mrb[0].mxu0
    %v205 = vadd.f32 %v60, %v204
    %v206 = vpop.f32.mrb[0].mxu0
    %v207 = vadd.f32 %v64, %v206
    %v208 = vpop.f32.mrb[0].mxu0
    %v209 = vadd.f32 %v60, %v208
    %v210 = vpop.f32.mrb[0].mxu0
    %v211 = vadd.f32 %v64, %v210
    %212 = vmatprep.mubr.bf16.mxu0 0
    %213 = vmatmul.mubr.bf16.gmra.mrb[0].mxu0 %v148
    %v214 = vpop.f32.mrb[0].mxu0
    %v215 = vadd.f32 %v60, %v214
    %v216 = vpop.f32.mrb[0].mxu0
    %v217 = vadd.f32 %v64, %v216
    %v218 = vpop.f32.mrb[0].mxu0
    %v219 = vadd.f32 %v60, %v218
    %v220 = vpop.f32.mrb[0].mxu0
    %v221 = vadd.f32 %v64, %v220
    %222 = vmatprep.mubr.bf16.mxu0 0
    %223 = vmatmul.mubr.bf16.gmra.mrb[0].mxu0 %v151
    %v224 = vpop.f32.mrb[0].mxu0
    %v225 = vadd.f32 %v60, %v224
    %v226 = vpop.f32.mrb[0].mxu0
    %v227 = vadd.f32 %v64, %v226
    %v228 = vpop.f32.mrb[0].mxu0
    %v229 = vpop.f32.mrb[0].mxu0
    %230 = vdwg.mxu0
    %v231 = vmax.f32 %v195, 0.0
    %v232 = vmax.f32 %v197, 0.0
    %v233 = vmax.f32 %v199, 0.0
    %v234 = vmax.f32 %v201, 0.0
    %v235 = vmax.f32 %v205, 0.0
    %v236 = vmax.f32 %v207, 0.0
    %v237 = vmax.f32 %v209, 0.0
    %v238 = vmax.f32 %v211, 0.0
    %v239 = vmax.f32 %v215, 0.0
    %v240 = vmax.f32 %v217, 0.0
    %v241 = vmax.f32 %v219, 0.0
    %v242 = vmax.f32 %v221, 0.0
    %v243 = vmax.f32 %v225, 0.0
    %v244 = vmax.f32 %v227, 0.0
    %s245 = scalar_lea.vmem %s1, 88
    %v246 = vld [vmem:[%s245] sm:$0xff]
    %v247 = vld [vmem:[%s245 + $0x8] sm:$0xff]
    %v248 = vld [vmem:[%s245 + $0x10] sm:$0xff]
    %v249 = vld [vmem:[%s245 + $0x18] sm:$0xff]
    %v250 = vld [vmem:[%s245 + $0x20] sm:$0xff]
    %v251 = vld [vmem:[%s245 + $0x28] sm:$0xff]
    %v252 = vld [vmem:[%s245 + $0x30] sm:$0xff]
    %v253 = vld [vmem:[%s245 + $0x38] sm:$0xff]
    %v254 = vld [vmem:[%s245 + $0x40] sm:$0xff]
    %v255 = vld [vmem:[%s245 + $0x48] sm:$0xff]
    %v256 = vld [vmem:[%s245 + $0x50] sm:$0x33]
    %v268 = vunpack.c.l.b16 %v246
    %v269 = vunpack.c.h.b16 %v246
    %v270 = vunpack.c.l.b16 %v247
    %v271 = vunpack.c.h.b16 %v247
    %v272 = vunpack.c.l.b16 %v248
    %v273 = vunpack.c.h.b16 %v248
    %v274 = vunpack.c.l.b16 %v249
    %v275 = vunpack.c.h.b16 %v249
    %v276 = vunpack.c.l.b16 %v250
    %v277 = vunpack.c.h.b16 %v250
    %v278 = vunpack.c.l.b16 %v251
    %v279 = vunpack.c.h.b16 %v251
    %v280 = vunpack.c.l.b16 %v252
    %v281 = vunpack.c.h.b16 %v252
    %v282 = vunpack.c.l.b16 %v253
    %v283 = vunpack.c.h.b16 %v253
    %v284 = vunpack.c.l.b16 %v254
    %v285 = vunpack.c.h.b16 %v254
    %v286 = vunpack.c.l.b16 %v255
    %v287 = vunpack.c.h.b16 %v255
    %v288 = vunpack.c.l.b16 %v256
    %v289 = vunpack.c.h.b16 %v256
    %v290 = vpack.c.b16 %v270, %v268
    %v291 = vpack.c.b16 %v271, %v269
    %v292 = vpack.c.b16 %v274, %v272
    %v293 = vpack.c.b16 %v275, %v273
    %v294 = vpack.c.b16 %v278, %v276
    %v295 = vpack.c.b16 %v279, %v277
    %v296 = vpack.c.b16 %v282, %v280
    %v297 = vpack.c.b16 %v283, %v281
    %v298 = vpack.c.b16 %v286, %v284
    %v299 = vpack.c.b16 %v287, %v285
    %v300 = vpack.c.b16 %v288, %v288
    %v301 = vpack.c.b16 %v289, %v289
    %v313 = vsel %vm153, %v300, 0
    %v316 = vsel %vm153, %v301, 0
    %318 = vmatprep.subr.bf16.mxu0 %v291
    %319 = vmatpush1.bf16.msra.mxu0 %v290
    %320 = vmatprep.subr.bf16.mxu0 %v293
    %321 = vmatpush1.bf16.msra.mxu0 %v292
    %322 = vmatprep.subr.bf16.mxu0 %v295
    %323 = vmatpush1.bf16.msra.mxu0 %v294
    %324 = vmatprep.subr.bf16.mxu0 %v297
    %325 = vmatpush1.bf16.msra.mxu0 %v296
    %326 = vmatprep.subr.bf16.mxu0 %v299
    %327 = vmatpush1.bf16.msra.mxu0 %v298
    %328 = vmatprep.subr.bf16.mxu0 %v316
    %329 = vmatpush1.bf16.msra.mxu0 %v313
    %330 = vmatprep.subr.bf16.mxu0 0
    %331 = vmatpush1.bf16.msra.mxu0 0
    %332 = vmatprep.subr.bf16.mxu0 0
    %333 = vmatpush1.bf16.msra.mxu0 0
    %334 = vmatprep.subr.bf16.mxu0 0
    %335 = vmatpush1.bf16.msra.mxu0 0
    %336 = vmatprep.subr.bf16.mxu0 0
    %337 = vmatpush1.bf16.msra.mxu0 0
    %338 = vmatprep.subr.bf16.mxu0 0
    %339 = vmatpush1.bf16.msra.mxu0 0
    %340 = vmatprep.subr.bf16.mxu0 0
    %341 = vmatpush1.bf16.msra.mxu0 0
    %342 = vmatprep.subr.bf16.mxu0 0
    %343 = vmatpush1.bf16.msra.mxu0 0
    %344 = vmatprep.subr.bf16.mxu0 0
    %345 = vmatpush1.bf16.msra.mxu0 0
    %346 = vmatprep.subr.bf16.mxu0 0
    %347 = vmatpush1.bf16.msra.mxu0 0
    %348 = vmatprep.subr.bf16.mxu0 0
    %349 = vmatpush1.bf16.msra.mxu0 0
    %350 = vmatprep.mubr.bf16.mxu0 0
    %351 = vmatmul.mubr.bf16.gmra.mrb[0].mxu0 %v142
    %v352 = vpop.f32.mrb[0].mxu0
    %v353 = vadd.f32 %v60, %v352
    %v354 = vpop.f32.mrb[0].mxu0
    %v355 = vadd.f32 %v64, %v354
    %v356 = vpop.f32.mrb[0].mxu0
    %v357 = vadd.f32 %v60, %v356
    %v358 = vpop.f32.mrb[0].mxu0
    %v359 = vadd.f32 %v64, %v358
    %360 = vmatprep.mubr.bf16.mxu0 0
    %361 = vmatmul.mubr.bf16.gmra.mrb[0].mxu0 %v145
    %v362 = vpop.f32.mrb[0].mxu0
    %v363 = vadd.f32 %v60, %v362
    %v364 = vpop.f32.mrb[0].mxu0
    %v365 = vadd.f32 %v64, %v364
    %v366 = vpop.f32.mrb[0].mxu0
    %v367 = vadd.f32 %v60, %v366
    %v368 = vpop.f32.mrb[0].mxu0
    %v369 = vadd.f32 %v64, %v368
    %370 = vmatprep.mubr.bf16.mxu0 0
    %371 = vmatmul.mubr.bf16.gmra.mrb[0].mxu0 %v148
    %v372 = vpop.f32.mrb[0].mxu0
    %v373 = vadd.f32 %v60, %v372
    %v374 = vpop.f32.mrb[0].mxu0
    %v375 = vadd.f32 %v64, %v374
    %v376 = vpop.f32.mrb[0].mxu0
    %v377 = vadd.f32 %v60, %v376
    %v378 = vpop.f32.mrb[0].mxu0
    %v379 = vadd.f32 %v64, %v378
    %380 = vmatprep.mubr.bf16.mxu0 0
    %381 = vmatmul.mubr.bf16.gmra.mrb[0].mxu0 %v151
    %v382 = vpop.f32.mrb[0].mxu0
    %v383 = vadd.f32 %v60, %v382
    %v384 = vpop.f32.mrb[0].mxu0
    %v385 = vadd.f32 %v64, %v384
    %v386 = vpop.f32.mrb[0].mxu0
    %v387 = vpop.f32.mrb[0].mxu0
    %388 = vdwg.mxu0
    %v389 = vmax.f32 %v353, 0.0
    %v390 = vmax.f32 %v355, 0.0
    %v391 = vmax.f32 %v357, 0.0
    %v392 = vmax.f32 %v359, 0.0
    %v393 = vmax.f32 %v363, 0.0
    %v394 = vmax.f32 %v365, 0.0
    %v395 = vmax.f32 %v367, 0.0
    %v396 = vmax.f32 %v369, 0.0
    %v397 = vmax.f32 %v373, 0.0
    %v398 = vmax.f32 %v375, 0.0
    %v399 = vmax.f32 %v377, 0.0
    %v400 = vmax.f32 %v379, 0.0
    %v401 = vmax.f32 %v383, 0.0
    %v402 = vmax.f32 %v385, 0.0
    %v403 = vmax.f32 %v231, %v389
    %v404 = vmax.f32 %v232, %v390
    %v405 = vmax.f32 %v233, %v391
    %v406 = vmax.f32 %v234, %v392
    %v407 = vmax.f32 %v235, %v393
    %v408 = vmax.f32 %v236, %v394
    %v409 = vmax.f32 %v237, %v395
    %v410 = vmax.f32 %v238, %v396
    %v411 = vmax.f32 %v239, %v397
    %v412 = vmax.f32 %v240, %v398
    %v413 = vmax.f32 %v241, %v399
    %v414 = vmax.f32 %v242, %v400
    %v415 = vmax.f32 %v243, %v401
    %v416 = vmax.f32 %v244, %v402
    %vm425 = vcmask 1043456
    %v426 = vrot.slane %v409, 4
    %v427 = vrot.slane %v411, 4
    %v428 = vsel %vm425, %v426, %v427
    %v429 = vrot.slane %v410, 4
    %v430 = vrot.slane %v412, 4
    %v431 = vsel %vm425, %v429, %v430
    %v432 = vrot.slane %v413, 4
    %v433 = vsel %vm425, %v427, %v432
    %v434 = vrot.slane %v414, 4
    %v435 = vsel %vm425, %v430, %v434
    %v436 = vrot.slane %v415, 4
    %v437 = vsel %vm425, %v432, %v436
    %v438 = vrot.slane %v416, 4
    %v439 = vsel %vm425, %v434, %v438
    %v448 = vmax.f32 %v403, %v428
    %v449 = vmax.f32 %v404, %v431
    %v450 = vmax.f32 %v405, %v433
    %v451 = vmax.f32 %v406, %v435
    %v452 = vmax.f32 %v407, %v437
    %v453 = vmax.f32 %v408, %v439
    %v454 = vmax.f32 %v409, %v436
    %v455 = vmax.f32 %v410, %v438
    %v456 = vld [vmem:[%s5] sm:$0xff]
    %v457 = vld [vmem:[%s5 + $0x8] sm:$0x3f]
    %459 = vset.pattern.permute.xlu0 0
    %460 = vperm.xlu0 %459, %v456
    %v461 = vpop.permute.xlu0 %460
    %463 = vset.pattern.permute.xlu0 0
    %464 = vperm.xlu0 %463, %v457
    %v465 = vpop.permute.xlu0 %464
    %v466 = vrot.slane %v461, 4
    %v467 = vrot.slane %v465, 4
    %v468 = vsel %vm425, %v466, %v467
    %v472 = vmul.f32 %v450, %v466
    %v473 = vmul.f32 %v451, %v466
    %v474 = vmul.f32 %v452, %v468
    %v475 = vmul.f32 %v453, %v468
    %v476 = vmul.f32 %v454, %v467
    %v477 = vmul.f32 %v455, %v467
    %s478 = scalar_lea.vmem %s5, 16
    %v479 = vld [vmem:[%s478] sm:$0xff]
    %v480 = vld [vmem:[%s478 + $0x8] sm:$0x3f]
    %482 = vset.pattern.permute.xlu0 0
    %483 = vperm.xlu0 %482, %v479
    %v484 = vpop.permute.xlu0 %483
    %486 = vset.pattern.permute.xlu0 0
    %487 = vperm.xlu0 %486, %v480
    %v488 = vpop.permute.xlu0 %487
    %v489 = vrot.slane %v484, 6
    %v490 = vrot.slane %v488, 6
    %v491 = vsel %vm153, %v489, %v490
    %v494 = vmul.f32 %v448, %v489
    %v495 = vmul.f32 %v449, %v489
    %v496 = vmul.f32 %v450, %v491
    %v497 = vmul.f32 %v451, %v491
    %v498 = vpack.c.bf16 %v450, %v448
    %v499 = vpack.c.bf16 %v451, %v449
    %v500 = vpack.c.bf16 %v452, %v450
    %v501 = vpack.c.bf16 %v453, %v451
    %v502 = vpack.c.bf16 %v454, %v454
    %v503 = vpack.c.bf16 %v455, %v455
    %v504 = vpack.c.bf16 %v474, %v472
    %v505 = vpack.c.bf16 %v475, %v473
    %v506 = vpack.c.bf16 %v476, %v476
    %v507 = vpack.c.bf16 %v477, %v477
    %v508 = vpack.c.bf16 %v496, %v494
    %v509 = vpack.c.bf16 %v497, %v495
    %v510 = vld [vmem:[%s3] sm:$0xff]
    %v511 = vld [vmem:[%s3 + $0x8] sm:$0xff]
    %v512 = vld [vmem:[%s3 + $0x10] sm:$0xff]
    %v513 = vld [vmem:[%s3 + $0x18] sm:$0xff]
    %v514 = vld [vmem:[%s3 + $0x20] sm:$0xff]
    %v515 = vld [vmem:[%s3 + $0x28] sm:$0xff]
    %v516 = vld [vmem:[%s3 + $0x30] sm:$0xff]
    %v517 = vld [vmem:[%s3 + $0x38] sm:$0xff]
    %v518 = vld [vmem:[%s3 + $0x40] sm:$0xff]
    %v519 = vld [vmem:[%s3 + $0x48] sm:$0xff]
    %v520 = vld [vmem:[%s3 + $0x50] sm:$0xff]
    %v521 = vld [vmem:[%s3 + $0x58] sm:$0xff]
    %v522 = vld [vmem:[%s3 + $0x60] sm:$0xff]
    %v523 = vld [vmem:[%s3 + $0x68] sm:$0xff]
    %v524 = vld [vmem:[%s3 + $0x70] sm:$0xff]
    %v525 = vld [vmem:[%s3 + $0x78] sm:$0xff]
    %v526 = vld [vmem:[%s3 + $0x80] sm:$0xff]
    %v527 = vld [vmem:[%s3 + $0x88] sm:$0xff]
    %v528 = vld [vmem:[%s3 + $0x90] sm:$0xff]
    %v529 = vld [vmem:[%s3 + $0x98] sm:$0xff]
    %v530 = vld [vmem:[%s3 + $0xa0] sm:$0xff]
    %s531 = scalar_lea.vmem %s3, 168
    %v532 = vld [vmem:[%s531] sm:$0xff]
    %v533 = vld [vmem:[%s531 + $0x8] sm:$0xff]
    %v534 = vld [vmem:[%s531 + $0x10] sm:$0xff]
    %v535 = vld [vmem:[%s531 + $0x18] sm:$0xff]
    %v536 = vld [vmem:[%s531 + $0x20] sm:$0xff]
    %v537 = vld [vmem:[%s531 + $0x28] sm:$0xff]
    %v538 = vld [vmem:[%s531 + $0x30] sm:$0xff]
    %v539 = vld [vmem:[%s531 + $0x38] sm:$0xff]
    %v540 = vld [vmem:[%s531 + $0x40] sm:$0xff]
    %v541 = vld [vmem:[%s531 + $0x48] sm:$0xff]
    %v542 = vld [vmem:[%s531 + $0x50] sm:$0xff]
    %v543 = vld [vmem:[%s531 + $0x58] sm:$0xff]
    %v544 = vld [vmem:[%s531 + $0x60] sm:$0xff]
    %v545 = vld [vmem:[%s531 + $0x68] sm:$0xff]
    %v546 = vld [vmem:[%s531 + $0x70] sm:$0xff]
    %v547 = vld [vmem:[%s531 + $0x78] sm:$0xff]
    %v548 = vld [vmem:[%s531 + $0x80] sm:$0xff]
    %v549 = vld [vmem:[%s531 + $0x88] sm:$0xff]
    %v550 = vld [vmem:[%s531 + $0x90] sm:$0xff]
    %v551 = vld [vmem:[%s531 + $0x98] sm:$0xff]
    %v552 = vld [vmem:[%s531 + $0xa0] sm:$0xff]
    %v574 = vunpack.c.l.b16 %v532
    %v575 = vunpack.c.h.b16 %v532
    %v576 = vunpack.c.l.b16 %v533
    %v577 = vunpack.c.h.b16 %v533
    %v578 = vunpack.c.l.b16 %v534
    %v579 = vunpack.c.h.b16 %v534
    %v580 = vunpack.c.l.b16 %v535
    %v581 = vunpack.c.h.b16 %v535
    %v582 = vunpack.c.l.b16 %v536
    %v583 = vunpack.c.h.b16 %v536
    %v584 = vunpack.c.l.b16 %v537
    %v585 = vunpack.c.h.b16 %v537
    %v586 = vunpack.c.l.b16 %v538
    %v587 = vunpack.c.h.b16 %v538
    %v588 = vunpack.c.l.b16 %v539
    %v589 = vunpack.c.h.b16 %v539
    %v590 = vunpack.c.l.b16 %v540
    %v591 = vunpack.c.h.b16 %v540
    %v592 = vunpack.c.l.b16 %v541
    %v593 = vunpack.c.h.b16 %v541
    %v594 = vunpack.c.l.b16 %v542
    %v595 = vunpack.c.h.b16 %v542
    %v596 = vunpack.c.l.b16 %v543
    %v597 = vunpack.c.h.b16 %v543
    %v598 = vunpack.c.l.b16 %v544
    %v599 = vunpack.c.h.b16 %v544
    %v600 = vunpack.c.l.b16 %v545
    %v601 = vunpack.c.h.b16 %v545
    %v602 = vunpack.c.l.b16 %v546
    %v603 = vunpack.c.h.b16 %v546
    %v604 = vunpack.c.l.b16 %v547
    %v605 = vunpack.c.h.b16 %v547
    %v606 = vunpack.c.l.b16 %v548
    %v607 = vunpack.c.h.b16 %v548
    %v608 = vunpack.c.l.b16 %v549
    %v609 = vunpack.c.h.b16 %v549
    %v610 = vunpack.c.l.b16 %v550
    %v611 = vunpack.c.h.b16 %v550
    %v612 = vunpack.c.l.b16 %v551
    %v613 = vunpack.c.h.b16 %v551
    %v614 = vunpack.c.l.b16 %v552
    %v615 = vunpack.c.h.b16 %v552
    %v616 = vpack.c.b16 %v576, %v574
    %v617 = vpack.c.b16 %v577, %v575
    %v618 = vpack.c.b16 %v580, %v578
    %v619 = vpack.c.b16 %v581, %v579
    %v620 = vpack.c.b16 %v584, %v582
    %v621 = vpack.c.b16 %v585, %v583
    %v622 = vpack.c.b16 %v588, %v586
    %v623 = vpack.c.b16 %v589, %v587
    %v624 = vpack.c.b16 %v592, %v590
    %v625 = vpack.c.b16 %v593, %v591
    %v626 = vpack.c.b16 %v596, %v594
    %v627 = vpack.c.b16 %v597, %v595
    %v628 = vpack.c.b16 %v600, %v598
    %v629 = vpack.c.b16 %v601, %v599
    %v630 = vpack.c.b16 %v604, %v602
    %v631 = vpack.c.b16 %v605, %v603
    %v632 = vpack.c.b16 %v608, %v606
    %v633 = vpack.c.b16 %v609, %v607
    %v634 = vpack.c.b16 %v612, %v610
    %v635 = vpack.c.b16 %v613, %v611
    %v636 = vpack.c.b16 %v614, %v614
    %v637 = vpack.c.b16 %v615, %v615
    %vm658 = vcmask 326656
    %v660 = vsel %vm658, %v499, 0
    %v663 = vsel %vm425, %v636, 0
    %v666 = vsel %vm425, %v637, 0
    %668 = vmatprep.subr.bf16.mxu0 %v617
    %669 = vmatpush1.bf16.msra.mxu0 %v616
    %670 = vmatprep.subr.bf16.mxu0 %v619
    %671 = vmatpush1.bf16.msra.mxu0 %v618
    %672 = vmatprep.subr.bf16.mxu0 %v621
    %673 = vmatpush1.bf16.msra.mxu0 %v620
    %674 = vmatprep.subr.bf16.mxu0 %v623
    %675 = vmatpush1.bf16.msra.mxu0 %v622
    %676 = vmatprep.subr.bf16.mxu0 %v625
    %677 = vmatpush1.bf16.msra.mxu0 %v624
    %678 = vmatprep.subr.bf16.mxu0 %v627
    %679 = vmatpush1.bf16.msra.mxu0 %v626
    %680 = vmatprep.subr.bf16.mxu0 %v629
    %681 = vmatpush1.bf16.msra.mxu0 %v628
    %682 = vmatprep.subr.bf16.mxu0 %v631
    %683 = vmatpush1.bf16.msra.mxu0 %v630
    %684 = vmatprep.subr.bf16.mxu0 %v633
    %685 = vmatpush1.bf16.msra.mxu0 %v632
    %686 = vmatprep.subr.bf16.mxu0 %v635
    %687 = vmatpush1.bf16.msra.mxu0 %v634
    %688 = vmatprep.subr.bf16.mxu0 %v666
    %689 = vmatpush1.bf16.msra.mxu0 %v663
    %690 = vmatprep.subr.bf16.mxu0 0
    %691 = vmatpush1.bf16.msra.mxu0 0
    %692 = vmatprep.subr.bf16.mxu0 0
    %693 = vmatpush1.bf16.msra.mxu0 0
    %694 = vmatprep.subr.bf16.mxu0 0
    %695 = vmatpush1.bf16.msra.mxu0 0
    %696 = vmatprep.subr.bf16.mxu0 0
    %697 = vmatpush1.bf16.msra.mxu0 0
    %698 = vmatprep.subr.bf16.mxu0 0
    %699 = vmatpush1.bf16.msra.mxu0 0
    %700 = vmatprep.mubr.bf16.mxu0 %v660
    %701 = vmatmul.mubr.bf16.gmra.mrb[0].mxu0 %v498
    %v702 = vpop.f32.mrb[0].mxu0
    %v703 = vadd.f32 0.0, %v702
    %v704 = vpop.f32.mrb[0].mxu0
    %v705 = vadd.f32 0.0, %v704
    %v706 = vpop.f32.mrb[0].mxu0
    %v707 = vadd.f32 0.0, %v706
    %v708 = vpop.f32.mrb[0].mxu0
    %v709 = vadd.f32 0.0, %v708
    %710 = vdwg.mxu0
    %vm715 = vcmask 1045504
    %v716 = vrot.slane %v504, 2
    %v717 = vrot.slane %v506, 2
    %v718 = vsel %vm715, %v716, %v717
    %v719 = vrot.slane %v505, 2
    %v720 = vrot.slane %v507, 2
    %v721 = vsel %vm715, %v719, %v720
    %v744 = vunpack.c.l.b16 %v510
    %v745 = vunpack.c.h.b16 %v510
    %v746 = vunpack.c.l.b16 %v511
    %v747 = vunpack.c.h.b16 %v511
    %v748 = vunpack.c.l.b16 %v512
    %v749 = vunpack.c.h.b16 %v512
    %v750 = vunpack.c.l.b16 %v513
    %v751 = vunpack.c.h.b16 %v513
    %v752 = vunpack.c.l.b16 %v514
    %v753 = vunpack.c.h.b16 %v514
    %v754 = vunpack.c.l.b16 %v515
    %v755 = vunpack.c.h.b16 %v515
    %v756 = vunpack.c.l.b16 %v516
    %v757 = vunpack.c.h.b16 %v516
    %v758 = vunpack.c.l.b16 %v517
    %v759 = vunpack.c.h.b16 %v517
    %v760 = vunpack.c.l.b16 %v518
    %v761 = vunpack.c.h.b16 %v518
    %v762 = vunpack.c.l.b16 %v519
    %v763 = vunpack.c.h.b16 %v519
    %v764 = vunpack.c.l.b16 %v520
    %v765 = vunpack.c.h.b16 %v520
    %v766 = vunpack.c.l.b16 %v521
    %v767 = vunpack.c.h.b16 %v521
    %v768 = vunpack.c.l.b16 %v522
    %v769 = vunpack.c.h.b16 %v522
    %v770 = vunpack.c.l.b16 %v523
    %v771 = vunpack.c.h.b16 %v523
    %v772 = vunpack.c.l.b16 %v524
    %v773 = vunpack.c.h.b16 %v524
    %v774 = vunpack.c.l.b16 %v525
    %v775 = vunpack.c.h.b16 %v525
    %v776 = vunpack.c.l.b16 %v526
    %v777 = vunpack.c.h.b16 %v526
    %v778 = vunpack.c.l.b16 %v527
    %v779 = vunpack.c.h.b16 %v527
    %v780 = vunpack.c.l.b16 %v528
    %v781 = vunpack.c.h.b16 %v528
    %v782 = vunpack.c.l.b16 %v529
    %v783 = vunpack.c.h.b16 %v529
    %v784 = vunpack.c.l.b16 %v530
    %v785 = vunpack.c.h.b16 %v530
    %v786 = vpack.c.b16 %v746, %v744
    %v787 = vpack.c.b16 %v747, %v745
    %v788 = vpack.c.b16 %v750, %v748
    %v789 = vpack.c.b16 %v751, %v749
    %v790 = vpack.c.b16 %v754, %v752
    %v791 = vpack.c.b16 %v755, %v753
    %v792 = vpack.c.b16 %v758, %v756
    %v793 = vpack.c.b16 %v759, %v757
    %v794 = vpack.c.b16 %v762, %v760
    %v795 = vpack.c.b16 %v763, %v761
    %v796 = vpack.c.b16 %v766, %v764
    %v797 = vpack.c.b16 %v767, %v765
    %v798 = vpack.c.b16 %v770, %v768
    %v799 = vpack.c.b16 %v771, %v769
    %v800 = vpack.c.b16 %v774, %v772
    %v801 = vpack.c.b16 %v775, %v773
    %v802 = vpack.c.b16 %v778, %v776
    %v803 = vpack.c.b16 %v779, %v777
    %v804 = vpack.c.b16 %v782, %v780
    %v805 = vpack.c.b16 %v783, %v781
    %v806 = vpack.c.b16 %v784, %v784
    %v807 = vpack.c.b16 %v785, %v785
    %v829 = vsel %vm658, %v721, 0
    %v832 = vsel %vm425, %v806, 0
    %v835 = vsel %vm425, %v807, 0
    %837 = vmatprep.subr.bf16.mxu0 %v787
    %838 = vmatpush1.bf16.msra.mxu0 %v786
    %839 = vmatprep.subr.bf16.mxu0 %v789
    %840 = vmatpush1.bf16.msra.mxu0 %v788
    %841 = vmatprep.subr.bf16.mxu0 %v791
    %842 = vmatpush1.bf16.msra.mxu0 %v790
    %843 = vmatprep.subr.bf16.mxu0 %v793
    %844 = vmatpush1.bf16.msra.mxu0 %v792
    %845 = vmatprep.subr.bf16.mxu0 %v795
    %846 = vmatpush1.bf16.msra.mxu0 %v794
    %847 = vmatprep.subr.bf16.mxu0 %v797
    %848 = vmatpush1.bf16.msra.mxu0 %v796
    %849 = vmatprep.subr.bf16.mxu0 %v799
    %850 = vmatpush1.bf16.msra.mxu0 %v798
    %851 = vmatprep.subr.bf16.mxu0 %v801
    %852 = vmatpush1.bf16.msra.mxu0 %v800
    %853 = vmatprep.subr.bf16.mxu0 %v803
    %854 = vmatpush1.bf16.msra.mxu0 %v802
    %855 = vmatprep.subr.bf16.mxu0 %v805
    %856 = vmatpush1.bf16.msra.mxu0 %v804
    %857 = vmatprep.subr.bf16.mxu0 %v835
    %858 = vmatpush1.bf16.msra.mxu0 %v832
    %859 = vmatprep.subr.bf16.mxu0 0
    %860 = vmatpush1.bf16.msra.mxu0 0
    %861 = vmatprep.subr.bf16.mxu0 0
    %862 = vmatpush1.bf16.msra.mxu0 0
    %863 = vmatprep.subr.bf16.mxu0 0
    %864 = vmatpush1.bf16.msra.mxu0 0
    %865 = vmatprep.subr.bf16.mxu0 0
    %866 = vmatpush1.bf16.msra.mxu0 0
    %867 = vmatprep.subr.bf16.mxu0 0
    %868 = vmatpush1.bf16.msra.mxu0 0
    %869 = vmatprep.mubr.bf16.mxu0 %v829
    %870 = vmatmul.mubr.bf16.gmra.mrb[0].mxu0 %v718
    %v871 = vpop.f32.mrb[0].mxu0
    %v872 = vadd.f32 %v703, %v871
    %v873 = vpop.f32.mrb[0].mxu0
    %v874 = vadd.f32 %v705, %v873
    %v875 = vpop.f32.mrb[0].mxu0
    %v876 = vadd.f32 %v707, %v875
    %v877 = vpop.f32.mrb[0].mxu0
    %v878 = vadd.f32 %v709, %v877
    %879 = vdwg.mxu0
    %s880 = scalar_lea.vmem %s3, 336
    %v881 = vld [vmem:[%s880] sm:$0xff]
    %v882 = vld [vmem:[%s880 + $0x8] sm:$0xff]
    %v883 = vld [vmem:[%s880 + $0x10] sm:$0xff]
    %v884 = vld [vmem:[%s880 + $0x18] sm:$0xff]
    %v885 = vld [vmem:[%s880 + $0x20] sm:$0xff]
    %v886 = vld [vmem:[%s880 + $0x28] sm:$0xff]
    %v887 = vld [vmem:[%s880 + $0x30] sm:$0xff]
    %v888 = vld [vmem:[%s880 + $0x38] sm:$0xff]
    %v889 = vld [vmem:[%s880 + $0x40] sm:$0xff]
    %v890 = vld [vmem:[%s880 + $0x48] sm:$0xff]
    %v891 = vld [vmem:[%s880 + $0x50] sm:$0xff]
    %v892 = vld [vmem:[%s880 + $0x58] sm:$0xff]
    %v893 = vld [vmem:[%s880 + $0x60] sm:$0xff]
    %v894 = vld [vmem:[%s880 + $0x68] sm:$0xff]
    %v895 = vld [vmem:[%s880 + $0x70] sm:$0xff]
    %v896 = vld [vmem:[%s880 + $0x78] sm:$0xff]
    %v897 = vld [vmem:[%s880 + $0x80] sm:$0xff]
    %v898 = vld [vmem:[%s880 + $0x88] sm:$0xff]
    %v899 = vld [vmem:[%s880 + $0x90] sm:$0xff]
    %v900 = vld [vmem:[%s880 + $0x98] sm:$0xff]
    %v901 = vld [vmem:[%s880 + $0xa0] sm:$0xff]
    %vm906 = vcmask 1044480
    %v907 = vrot.slane %v500, 3
    %v908 = vrot.slane %v502, 3
    %v909 = vsel %vm906, %v907, %v908
    %v910 = vrot.slane %v501, 3
    %v911 = vrot.slane %v503, 3
    %v912 = vsel %vm906, %v910, %v911
    %v935 = vunpack.c.l.b16 %v881
    %v936 = vunpack.c.h.b16 %v881
    %v937 = vunpack.c.l.b16 %v882
    %v938 = vunpack.c.h.b16 %v882
    %v939 = vunpack.c.l.b16 %v883
    %v940 = vunpack.c.h.b16 %v883
    %v941 = vunpack.c.l.b16 %v884
    %v942 = vunpack.c.h.b16 %v884
    %v943 = vunpack.c.l.b16 %v885
    %v944 = vunpack.c.h.b16 %v885
    %v945 = vunpack.c.l.b16 %v886
    %v946 = vunpack.c.h.b16 %v886
    %v947 = vunpack.c.l.b16 %v887
    %v948 = vunpack.c.h.b16 %v887
    %v949 = vunpack.c.l.b16 %v888
    %v950 = vunpack.c.h.b16 %v888
    %v951 = vunpack.c.l.b16 %v889
    %v952 = vunpack.c.h.b16 %v889
    %v953 = vunpack.c.l.b16 %v890
    %v954 = vunpack.c.h.b16 %v890
    %v955 = vunpack.c.l.b16 %v891
    %v956 = vunpack.c.h.b16 %v891
    %v957 = vunpack.c.l.b16 %v892
    %v958 = vunpack.c.h.b16 %v892
    %v959 = vunpack.c.l.b16 %v893
    %v960 = vunpack.c.h.b16 %v893
    %v961 = vunpack.c.l.b16 %v894
    %v962 = vunpack.c.h.b16 %v894
    %v963 = vunpack.c.l.b16 %v895
    %v964 = vunpack.c.h.b16 %v895
    %v965 = vunpack.c.l.b16 %v896
    %v966 = vunpack.c.h.b16 %v896
    %v967 = vunpack.c.l.b16 %v897
    %v968 = vunpack.c.h.b16 %v897
    %v969 = vunpack.c.l.b16 %v898
    %v970 = vunpack.c.h.b16 %v898
    %v971 = vunpack.c.l.b16 %v899
    %v972 = vunpack.c.h.b16 %v899
    %v973 = vunpack.c.l.b16 %v900
    %v974 = vunpack.c.h.b16 %v900
    %v975 = vunpack.c.l.b16 %v901
    %v976 = vunpack.c.h.b16 %v901
    %v977 = vpack.c.b16 %v937, %v935
    %v978 = vpack.c.b16 %v938, %v936
    %v979 = vpack.c.b16 %v941, %v939
    %v980 = vpack.c.b16 %v942, %v940
    %v981 = vpack.c.b16 %v945, %v943
    %v982 = vpack.c.b16 %v946, %v944
    %v983 = vpack.c.b16 %v949, %v947
    %v984 = vpack.c.b16 %v950, %v948
    %v985 = vpack.c.b16 %v953, %v951
    %v986 = vpack.c.b16 %v954, %v952
    %v987 = vpack.c.b16 %v957, %v955
    %v988 = vpack.c.b16 %v958, %v956
    %v989 = vpack.c.b16 %v961, %v959
    %v990 = vpack.c.b16 %v962, %v960
    %v991 = vpack.c.b16 %v965, %v963
    %v992 = vpack.c.b16 %v966, %v964
    %v993 = vpack.c.b16 %v969, %v967
    %v994 = vpack.c.b16 %v970, %v968
    %v995 = vpack.c.b16 %v973, %v971
    %v996 = vpack.c.b16 %v974, %v972
    %v997 = vpack.c.b16 %v975, %v975
    %v998 = vpack.c.b16 %v976, %v976
    %v1020 = vsel %vm658, %v912, 0
    %v1023 = vsel %vm425, %v997, 0
    %v1026 = vsel %vm425, %v998, 0
    %1028 = vmatprep.subr.bf16.mxu0 %v978
    %1029 = vmatpush1.bf16.msra.mxu0 %v977
    %1030 = vmatprep.subr.bf16.mxu0 %v980
    %1031 = vmatpush1.bf16.msra.mxu0 %v979
    %1032 = vmatprep.subr.bf16.mxu0 %v982
    %1033 = vmatpush1.bf16.msra.mxu0 %v981
    %1034 = vmatprep.subr.bf16.mxu0 %v984
    %1035 = vmatpush1.bf16.msra.mxu0 %v983
    %1036 = vmatprep.subr.bf16.mxu0 %v986
    %1037 = vmatpush1.bf16.msra.mxu0 %v985
    %1038 = vmatprep.subr.bf16.mxu0 %v988
    %1039 = vmatpush1.bf16.msra.mxu0 %v987
    %1040 = vmatprep.subr.bf16.mxu0 %v990
    %1041 = vmatpush1.bf16.msra.mxu0 %v989
    %1042 = vmatprep.subr.bf16.mxu0 %v992
    %1043 = vmatpush1.bf16.msra.mxu0 %v991
    %1044 = vmatprep.subr.bf16.mxu0 %v994
    %1045 = vmatpush1.bf16.msra.mxu0 %v993
    %1046 = vmatprep.subr.bf16.mxu0 %v996
    %1047 = vmatpush1.bf16.msra.mxu0 %v995
    %1048 = vmatprep.subr.bf16.mxu0 %v1026
    %1049 = vmatpush1.bf16.msra.mxu0 %v1023
    %1050 = vmatprep.subr.bf16.mxu0 0
    %1051 = vmatpush1.bf16.msra.mxu0 0
    %1052 = vmatprep.subr.bf16.mxu0 0
    %1053 = vmatpush1.bf16.msra.mxu0 0
    %1054 = vmatprep.subr.bf16.mxu0 0
    %1055 = vmatpush1.bf16.msra.mxu0 0
    %1056 = vmatprep.subr.bf16.mxu0 0
    %1057 = vmatpush1.bf16.msra.mxu0 0
    %1058 = vmatprep.subr.bf16.mxu0 0
    %1059 = vmatpush1.bf16.msra.mxu0 0
    %1060 = vmatprep.mubr.bf16.mxu0 %v1020
    %1061 = vmatmul.mubr.bf16.gmra.mrb[0].mxu0 %v909
    %v1062 = vpop.f32.mrb[0].mxu0
    %v1063 = vadd.f32 0.0, %v1062
    %v1064 = vpop.f32.mrb[0].mxu0
    %v1065 = vadd.f32 0.0, %v1064
    %v1066 = vpop.f32.mrb[0].mxu0
    %v1067 = vadd.f32 0.0, %v1066
    %v1068 = vpop.f32.mrb[0].mxu0
    %v1069 = vadd.f32 0.0, %v1068
    %1070 = vdwg.mxu0
    %v1071 = vadd.f32 %v872, %v1063
    %v1072 = vadd.f32 %v874, %v1065
    %v1073 = vadd.f32 %v876, %v1067
    %v1074 = vadd.f32 %v878, %v1069
    %v1075 = vld [vmem:[%s4] sm:$0x3]
    %v1077 = vlaneseq
    %v1078 = vshrl.u32 %v1077, 7
    %v1079 = vsub.s32 0, %v1078
    %v1080 = vrot.slane %v1075, %v1079
    %v1081 = vlaneseq
    %v1082 = vshrl.u32 %v1081, 7
    %v1083 = vsub.s32 1, %v1082
    %v1084 = vrot.slane %v1075, %v1083
    %v1087 = vadd.f32 %v1071, %v1080
    %v1088 = vadd.f32 %v1072, %v1084
    %v1089 = vadd.f32 %v1073, %v1080
    %v1090 = vadd.f32 %v1074, %v1084
    %v1091 = vmax.f32 %v1087, 0.0
    %v1092 = vmax.f32 %v1088, 0.0
    %v1093 = vmax.f32 %v1089, 0.0
    %v1094 = vmax.f32 %v1090, 0.0
    %s1095 = scalar_lea.vmem %s3, 504
    %v1096 = vld [vmem:[%s1095] sm:$0xff]
    %v1097 = vld [vmem:[%s1095 + $0x8] sm:$0xff]
    %v1098 = vld [vmem:[%s1095 + $0x10] sm:$0xff]
    %v1099 = vld [vmem:[%s1095 + $0x18] sm:$0xff]
    %v1100 = vld [vmem:[%s1095 + $0x20] sm:$0xff]
    %v1101 = vld [vmem:[%s1095 + $0x28] sm:$0xff]
    %v1102 = vld [vmem:[%s1095 + $0x30] sm:$0xff]
    %v1103 = vld [vmem:[%s1095 + $0x38] sm:$0xff]
    %v1104 = vld [vmem:[%s1095 + $0x40] sm:$0xff]
    %v1105 = vld [vmem:[%s1095 + $0x48] sm:$0xff]
    %v1106 = vld [vmem:[%s1095 + $0x50] sm:$0xff]
    %v1107 = vld [vmem:[%s1095 + $0x58] sm:$0xff]
    %v1108 = vld [vmem:[%s1095 + $0x60] sm:$0xff]
    %v1109 = vld [vmem:[%s1095 + $0x68] sm:$0xff]
    %v1110 = vld [vmem:[%s1095 + $0x70] sm:$0xff]
    %v1111 = vld [vmem:[%s1095 + $0x78] sm:$0xff]
    %v1112 = vld [vmem:[%s1095 + $0x80] sm:$0xff]
    %v1113 = vld [vmem:[%s1095 + $0x88] sm:$0xff]
    %v1114 = vld [vmem:[%s1095 + $0x90] sm:$0xff]
    %v1115 = vld [vmem:[%s1095 + $0x98] sm:$0xff]
    %v1116 = vld [vmem:[%s1095 + $0xa0] sm:$0xff]
    %s1117 = scalar_lea.vmem %s3, 672
    %v1118 = vld [vmem:[%s1117] sm:$0xff]
    %v1119 = vld [vmem:[%s1117 + $0x8] sm:$0xff]
    %v1120 = vld [vmem:[%s1117 + $0x10] sm:$0xff]
    %v1121 = vld [vmem:[%s1117 + $0x18] sm:$0xff]
    %v1122 = vld [vmem:[%s1117 + $0x20] sm:$0xff]
    %v1123 = vld [vmem:[%s1117 + $0x28] sm:$0xff]
    %v1124 = vld [vmem:[%s1117 + $0x30] sm:$0xff]
    %v1125 = vld [vmem:[%s1117 + $0x38] sm:$0xff]
    %v1126 = vld [vmem:[%s1117 + $0x40] sm:$0xff]
    %v1127 = vld [vmem:[%s1117 + $0x48] sm:$0xff]
    %v1128 = vld [vmem:[%s1117 + $0x50] sm:$0xff]
    %v1129 = vld [vmem:[%s1117 + $0x58] sm:$0xff]
    %v1130 = vld [vmem:[%s1117 + $0x60] sm:$0xff]
    %v1131 = vld [vmem:[%s1117 + $0x68] sm:$0xff]
    %v1132 = vld [vmem:[%s1117 + $0x70] sm:$0xff]
    %v1133 = vld [vmem:[%s1117 + $0x78] sm:$0xff]
    %v1134 = vld [vmem:[%s1117 + $0x80] sm:$0xff]
    %v1135 = vld [vmem:[%s1117 + $0x88] sm:$0xff]
    %v1136 = vld [vmem:[%s1117 + $0x90] sm:$0xff]
    %v1137 = vld [vmem:[%s1117 + $0x98] sm:$0xff]
    %v1138 = vld [vmem:[%s1117 + $0xa0] sm:$0xff]
    %v1160 = vunpack.c.l.b16 %v1118
    %v1161 = vunpack.c.h.b16 %v1118
    %v1162 = vunpack.c.l.b16 %v1119
    %v1163 = vunpack.c.h.b16 %v1119
    %v1164 = vunpack.c.l.b16 %v1120
    %v1165 = vunpack.c.h.b16 %v1120
    %v1166 = vunpack.c.l.b16 %v1121
    %v1167 = vunpack.c.h.b16 %v1121
    %v1168 = vunpack.c.l.b16 %v1122
    %v1169 = vunpack.c.h.b16 %v1122
    %v1170 = vunpack.c.l.b16 %v1123
    %v1171 = vunpack.c.h.b16 %v1123
    %v1172 = vunpack.c.l.b16 %v1124
    %v1173 = vunpack.c.h.b16 %v1124
    %v1174 = vunpack.c.l.b16 %v1125
    %v1175 = vunpack.c.h.b16 %v1125
    %v1176 = vunpack.c.l.b16 %v1126
    %v1177 = vunpack.c.h.b16 %v1126
    %v1178 = vunpack.c.l.b16 %v1127
    %v1179 = vunpack.c.h.b16 %v1127
    %v1180 = vunpack.c.l.b16 %v1128
    %v1181 = vunpack.c.h.b16 %v1128
    %v1182 = vunpack.c.l.b16 %v1129
    %v1183 = vunpack.c.h.b16 %v1129
    %v1184 = vunpack.c.l.b16 %v1130
    %v1185 = vunpack.c.h.b16 %v1130
    %v1186 = vunpack.c.l.b16 %v1131
    %v1187 = vunpack.c.h.b16 %v1131
    %v1188 = vunpack.c.l.b16 %v1132
    %v1189 = vunpack.c.h.b16 %v1132
    %v1190 = vunpack.c.l.b16 %v1133
    %v1191 = vunpack.c.h.b16 %v1133
    %v1192 = vunpack.c.l.b16 %v1134
    %v1193 = vunpack.c.h.b16 %v1134
    %v1194 = vunpack.c.l.b16 %v1135
    %v1195 = vunpack.c.h.b16 %v1135
    %v1196 = vunpack.c.l.b16 %v1136
    %v1197 = vunpack.c.h.b16 %v1136
    %v1198 = vunpack.c.l.b16 %v1137
    %v1199 = vunpack.c.h.b16 %v1137
    %v1200 = vunpack.c.l.b16 %v1138
    %v1201 = vunpack.c.h.b16 %v1138
    %v1202 = vpack.c.b16 %v1162, %v1160
    %v1203 = vpack.c.b16 %v1163, %v1161
    %v1204 = vpack.c.b16 %v1166, %v1164
    %v1205 = vpack.c.b16 %v1167, %v1165
    %v1206 = vpack.c.b16 %v1170, %v1168
    %v1207 = vpack.c.b16 %v1171, %v1169
    %v1208 = vpack.c.b16 %v1174, %v1172
    %v1209 = vpack.c.b16 %v1175, %v1173
    %v1210 = vpack.c.b16 %v1178, %v1176
    %v1211 = vpack.c.b16 %v1179, %v1177
    %v1212 = vpack.c.b16 %v1182, %v1180
    %v1213 = vpack.c.b16 %v1183, %v1181
    %v1214 = vpack.c.b16 %v1186, %v1184
    %v1215 = vpack.c.b16 %v1187, %v1185
    %v1216 = vpack.c.b16 %v1190, %v1188
    %v1217 = vpack.c.b16 %v1191, %v1189
    %v1218 = vpack.c.b16 %v1194, %v1192
    %v1219 = vpack.c.b16 %v1195, %v1193
    %v1220 = vpack.c.b16 %v1198, %v1196
    %v1221 = vpack.c.b16 %v1199, %v1197
    %v1222 = vpack.c.b16 %v1200, %v1200
    %v1223 = vpack.c.b16 %v1201, %v1201
    %v1245 = vsel %vm425, %v1222, 0
    %v1248 = vsel %vm425, %v1223, 0
    %1250 = vmatprep.subr.bf16.mxu0 %v1203
    %1251 = vmatpush1.bf16.msra.mxu0 %v1202
    %1252 = vmatprep.subr.bf16.mxu0 %v1205
    %1253 = vmatpush1.bf16.msra.mxu0 %v1204
    %1254 = vmatprep.subr.bf16.mxu0 %v1207
    %1255 = vmatpush1.bf16.msra.mxu0 %v1206
    %1256 = vmatprep.subr.bf16.mxu0 %v1209
    %1257 = vmatpush1.bf16.msra.mxu0 %v1208
    %1258 = vmatprep.subr.bf16.mxu0 %v1211
    %1259 = vmatpush1.bf16.msra.mxu0 %v1210
    %1260 = vmatprep.subr.bf16.mxu0 %v1213
    %1261 = vmatpush1.bf16.msra.mxu0 %v1212
    %1262 = vmatprep.subr.bf16.mxu0 %v1215
    %1263 = vmatpush1.bf16.msra.mxu0 %v1214
    %1264 = vmatprep.subr.bf16.mxu0 %v1217
    %1265 = vmatpush1.bf16.msra.mxu0 %v1216
    %1266 = vmatprep.subr.bf16.mxu0 %v1219
    %1267 = vmatpush1.bf16.msra.mxu0 %v1218
    %1268 = vmatprep.subr.bf16.mxu0 %v1221
    %1269 = vmatpush1.bf16.msra.mxu0 %v1220
    %1270 = vmatprep.subr.bf16.mxu0 %v1248
    %1271 = vmatpush1.bf16.msra.mxu0 %v1245
    %1272 = vmatprep.subr.bf16.mxu0 0
    %1273 = vmatpush1.bf16.msra.mxu0 0
    %1274 = vmatprep.subr.bf16.mxu0 0
    %1275 = vmatpush1.bf16.msra.mxu0 0
    %1276 = vmatprep.subr.bf16.mxu0 0
    %1277 = vmatpush1.bf16.msra.mxu0 0
    %1278 = vmatprep.subr.bf16.mxu0 0
    %1279 = vmatpush1.bf16.msra.mxu0 0
    %1280 = vmatprep.subr.bf16.mxu0 0
    %1281 = vmatpush1.bf16.msra.mxu0 0
    %1282 = vmatprep.mubr.bf16.mxu0 %v660
    %1283 = vmatmul.mubr.bf16.gmra.mrb[0].mxu0 %v498
    %v1284 = vpop.f32.mrb[0].mxu0
    %v1285 = vadd.f32 0.0, %v1284
    %v1286 = vpop.f32.mrb[0].mxu0
    %v1287 = vadd.f32 0.0, %v1286
    %v1288 = vpop.f32.mrb[0].mxu0
    %v1289 = vadd.f32 0.0, %v1288
    %v1290 = vpop.f32.mrb[0].mxu0
    %v1291 = vadd.f32 0.0, %v1290
    %1292 = vdwg.mxu0
    %v1314 = vunpack.c.l.b16 %v1096
    %v1315 = vunpack.c.h.b16 %v1096
    %v1316 = vunpack.c.l.b16 %v1097
    %v1317 = vunpack.c.h.b16 %v1097
    %v1318 = vunpack.c.l.b16 %v1098
    %v1319 = vunpack.c.h.b16 %v1098
    %v1320 = vunpack.c.l.b16 %v1099
    %v1321 = vunpack.c.h.b16 %v1099
    %v1322 = vunpack.c.l.b16 %v1100
    %v1323 = vunpack.c.h.b16 %v1100
    %v1324 = vunpack.c.l.b16 %v1101
    %v1325 = vunpack.c.h.b16 %v1101
    %v1326 = vunpack.c.l.b16 %v1102
    %v1327 = vunpack.c.h.b16 %v1102
    %v1328 = vunpack.c.l.b16 %v1103
    %v1329 = vunpack.c.h.b16 %v1103
    %v1330 = vunpack.c.l.b16 %v1104
    %v1331 = vunpack.c.h.b16 %v1104
    %v1332 = vunpack.c.l.b16 %v1105
    %v1333 = vunpack.c.h.b16 %v1105
    %v1334 = vunpack.c.l.b16 %v1106
    %v1335 = vunpack.c.h.b16 %v1106
    %v1336 = vunpack.c.l.b16 %v1107
    %v1337 = vunpack.c.h.b16 %v1107
    %v1338 = vunpack.c.l.b16 %v1108
    %v1339 = vunpack.c.h.b16 %v1108
    %v1340 = vunpack.c.l.b16 %v1109
    %v1341 = vunpack.c.h.b16 %v1109
    %v1342 = vunpack.c.l.b16 %v1110
    %v1343 = vunpack.c.h.b16 %v1110
    %v1344 = vunpack.c.l.b16 %v1111
    %v1345 = vunpack.c.h.b16 %v1111
    %v1346 = vunpack.c.l.b16 %v1112
    %v1347 = vunpack.c.h.b16 %v1112
    %v1348 = vunpack.c.l.b16 %v1113
    %v1349 = vunpack.c.h.b16 %v1113
    %v1350 = vunpack.c.l.b16 %v1114
    %v1351 = vunpack.c.h.b16 %v1114
    %v1352 = vunpack.c.l.b16 %v1115
    %v1353 = vunpack.c.h.b16 %v1115
    %v1354 = vunpack.c.l.b16 %v1116
    %v1355 = vunpack.c.h.b16 %v1116
    %v1356 = vpack.c.b16 %v1316, %v1314
    %v1357 = vpack.c.b16 %v1317, %v1315
    %v1358 = vpack.c.b16 %v1320, %v1318
    %v1359 = vpack.c.b16 %v1321, %v1319
    %v1360 = vpack.c.b16 %v1324, %v1322
    %v1361 = vpack.c.b16 %v1325, %v1323
    %v1362 = vpack.c.b16 %v1328, %v1326
    %v1363 = vpack.c.b16 %v1329, %v1327
    %v1364 = vpack.c.b16 %v1332, %v1330
    %v1365 = vpack.c.b16 %v1333, %v1331
    %v1366 = vpack.c.b16 %v1336, %v1334
    %v1367 = vpack.c.b16 %v1337, %v1335
    %v1368 = vpack.c.b16 %v1340, %v1338
    %v1369 = vpack.c.b16 %v1341, %v1339
    %v1370 = vpack.c.b16 %v1344, %v1342
    %v1371 = vpack.c.b16 %v1345, %v1343
    %v1372 = vpack.c.b16 %v1348, %v1346
    %v1373 = vpack.c.b16 %v1349, %v1347
    %v1374 = vpack.c.b16 %v1352, %v1350
    %v1375 = vpack.c.b16 %v1353, %v1351
    %v1376 = vpack.c.b16 %v1354, %v1354
    %v1377 = vpack.c.b16 %v1355, %v1355
    %v1399 = vsel %vm425, %v1376, 0
    %v1402 = vsel %vm425, %v1377, 0
    %1404 = vmatprep.subr.bf16.mxu0 %v1357
    %1405 = vmatpush1.bf16.msra.mxu0 %v1356
    %1406 = vmatprep.subr.bf16.mxu0 %v1359
    %1407 = vmatpush1.bf16.msra.mxu0 %v1358
    %1408 = vmatprep.subr.bf16.mxu0 %v1361
    %1409 = vmatpush1.bf16.msra.mxu0 %v1360
    %1410 = vmatprep.subr.bf16.mxu0 %v1363
    %1411 = vmatpush1.bf16.msra.mxu0 %v1362
    %1412 = vmatprep.subr.bf16.mxu0 %v1365
    %1413 = vmatpush1.bf16.msra.mxu0 %v1364
    %1414 = vmatprep.subr.bf16.mxu0 %v1367
    %1415 = vmatpush1.bf16.msra.mxu0 %v1366
    %1416 = vmatprep.subr.bf16.mxu0 %v1369
    %1417 = vmatpush1.bf16.msra.mxu0 %v1368
    %1418 = vmatprep.subr.bf16.mxu0 %v1371
    %1419 = vmatpush1.bf16.msra.mxu0 %v1370
    %1420 = vmatprep.subr.bf16.mxu0 %v1373
    %1421 = vmatpush1.bf16.msra.mxu0 %v1372
    %1422 = vmatprep.subr.bf16.mxu0 %v1375
    %1423 = vmatpush1.bf16.msra.mxu0 %v1374
    %1424 = vmatprep.subr.bf16.mxu0 %v1402
    %1425 = vmatpush1.bf16.msra.mxu0 %v1399
    %1426 = vmatprep.subr.bf16.mxu0 0
    %1427 = vmatpush1.bf16.msra.mxu0 0
    %1428 = vmatprep.subr.bf16.mxu0 0
    %1429 = vmatpush1.bf16.msra.mxu0 0
    %1430 = vmatprep.subr.bf16.mxu0 0
    %1431 = vmatpush1.bf16.msra.mxu0 0
    %1432 = vmatprep.subr.bf16.mxu0 0
    %1433 = vmatpush1.bf16.msra.mxu0 0
    %1434 = vmatprep.subr.bf16.mxu0 0
    %1435 = vmatpush1.bf16.msra.mxu0 0
    %1436 = vmatprep.mubr.bf16.mxu0 %v829
    %1437 = vmatmul.mubr.bf16.gmra.mrb[0].mxu0 %v718
    %v1438 = vpop.f32.mrb[0].mxu0
    %v1439 = vadd.f32 %v1285, %v1438
    %v1440 = vpop.f32.mrb[0].mxu0
    %v1441 = vadd.f32 %v1287, %v1440
    %v1442 = vpop.f32.mrb[0].mxu0
    %v1443 = vadd.f32 %v1289, %v1442
    %v1444 = vpop.f32.mrb[0].mxu0
    %v1445 = vadd.f32 %v1291, %v1444
    %1446 = vdwg.mxu0
    %s1447 = scalar_lea.vmem %s3, 840
    %v1448 = vld [vmem:[%s1447] sm:$0xff]
    %v1449 = vld [vmem:[%s1447 + $0x8] sm:$0xff]
    %v1450 = vld [vmem:[%s1447 + $0x10] sm:$0xff]
    %v1451 = vld [vmem:[%s1447 + $0x18] sm:$0xff]
    %v1452 = vld [vmem:[%s1447 + $0x20] sm:$0xff]
    %v1453 = vld [vmem:[%s1447 + $0x28] sm:$0xff]
    %v1454 = vld [vmem:[%s1447 + $0x30] sm:$0xff]
    %v1455 = vld [vmem:[%s1447 + $0x38] sm:$0xff]
    %v1456 = vld [vmem:[%s1447 + $0x40] sm:$0xff]
    %v1457 = vld [vmem:[%s1447 + $0x48] sm:$0xff]
    %v1458 = vld [vmem:[%s1447 + $0x50] sm:$0xff]
    %v1459 = vld [vmem:[%s1447 + $0x58] sm:$0xff]
    %v1460 = vld [vmem:[%s1447 + $0x60] sm:$0xff]
    %v1461 = vld [vmem:[%s1447 + $0x68] sm:$0xff]
    %v1462 = vld [vmem:[%s1447 + $0x70] sm:$0xff]
    %v1463 = vld [vmem:[%s1447 + $0x78] sm:$0xff]
    %v1464 = vld [vmem:[%s1447 + $0x80] sm:$0xff]
    %v1465 = vld [vmem:[%s1447 + $0x88] sm:$0xff]
    %v1466 = vld [vmem:[%s1447 + $0x90] sm:$0xff]
    %v1467 = vld [vmem:[%s1447 + $0x98] sm:$0xff]
    %v1468 = vld [vmem:[%s1447 + $0xa0] sm:$0xff]
    %v1490 = vunpack.c.l.b16 %v1448
    %v1491 = vunpack.c.h.b16 %v1448
    %v1492 = vunpack.c.l.b16 %v1449
    %v1493 = vunpack.c.h.b16 %v1449
    %v1494 = vunpack.c.l.b16 %v1450
    %v1495 = vunpack.c.h.b16 %v1450
    %v1496 = vunpack.c.l.b16 %v1451
    %v1497 = vunpack.c.h.b16 %v1451
    %v1498 = vunpack.c.l.b16 %v1452
    %v1499 = vunpack.c.h.b16 %v1452
    %v1500 = vunpack.c.l.b16 %v1453
    %v1501 = vunpack.c.h.b16 %v1453
    %v1502 = vunpack.c.l.b16 %v1454
    %v1503 = vunpack.c.h.b16 %v1454
    %v1504 = vunpack.c.l.b16 %v1455
    %v1505 = vunpack.c.h.b16 %v1455
    %v1506 = vunpack.c.l.b16 %v1456
    %v1507 = vunpack.c.h.b16 %v1456
    %v1508 = vunpack.c.l.b16 %v1457
    %v1509 = vunpack.c.h.b16 %v1457
    %v1510 = vunpack.c.l.b16 %v1458
    %v1511 = vunpack.c.h.b16 %v1458
    %v1512 = vunpack.c.l.b16 %v1459
    %v1513 = vunpack.c.h.b16 %v1459
    %v1514 = vunpack.c.l.b16 %v1460
    %v1515 = vunpack.c.h.b16 %v1460
    %v1516 = vunpack.c.l.b16 %v1461
    %v1517 = vunpack.c.h.b16 %v1461
    %v1518 = vunpack.c.l.b16 %v1462
    %v1519 = vunpack.c.h.b16 %v1462
    %v1520 = vunpack.c.l.b16 %v1463
    %v1521 = vunpack.c.h.b16 %v1463
    %v1522 = vunpack.c.l.b16 %v1464
    %v1523 = vunpack.c.h.b16 %v1464
    %v1524 = vunpack.c.l.b16 %v1465
    %v1525 = vunpack.c.h.b16 %v1465
    %v1526 = vunpack.c.l.b16 %v1466
    %v1527 = vunpack.c.h.b16 %v1466
    %v1528 = vunpack.c.l.b16 %v1467
    %v1529 = vunpack.c.h.b16 %v1467
    %v1530 = vunpack.c.l.b16 %v1468
    %v1531 = vunpack.c.h.b16 %v1468
    %v1532 = vpack.c.b16 %v1492, %v1490
    %v1533 = vpack.c.b16 %v1493, %v1491
    %v1534 = vpack.c.b16 %v1496, %v1494
    %v1535 = vpack.c.b16 %v1497, %v1495
    %v1536 = vpack.c.b16 %v1500, %v1498
    %v1537 = vpack.c.b16 %v1501, %v1499
    %v1538 = vpack.c.b16 %v1504, %v1502
    %v1539 = vpack.c.b16 %v1505, %v1503
    %v1540 = vpack.c.b16 %v1508, %v1506
    %v1541 = vpack.c.b16 %v1509, %v1507
    %v1542 = vpack.c.b16 %v1512, %v1510
    %v1543 = vpack.c.b16 %v1513, %v1511
    %v1544 = vpack.c.b16 %v1516, %v1514
    %v1545 = vpack.c.b16 %v1517, %v1515
    %v1546 = vpack.c.b16 %v1520, %v1518
    %v1547 = vpack.c.b16 %v1521, %v1519
    %v1548 = vpack.c.b16 %v1524, %v1522
    %v1549 = vpack.c.b16 %v1525, %v1523
    %v1550 = vpack.c.b16 %v1528, %v1526
    %v1551 = vpack.c.b16 %v1529, %v1527
    %v1552 = vpack.c.b16 %v1530, %v1530
    %v1553 = vpack.c.b16 %v1531, %v1531
    %v1575 = vsel %vm425, %v1552, 0
    %v1578 = vsel %vm425, %v1553, 0
    %1580 = vmatprep.subr.bf16.mxu0 %v1533
    %1581 = vmatpush1.bf16.msra.mxu0 %v1532
    %1582 = vmatprep.subr.bf16.mxu0 %v1535
    %1583 = vmatpush1.bf16.msra.mxu0 %v1534
    %1584 = vmatprep.subr.bf16.mxu0 %v1537
    %1585 = vmatpush1.bf16.msra.mxu0 %v1536
    %1586 = vmatprep.subr.bf16.mxu0 %v1539
    %1587 = vmatpush1.bf16.msra.mxu0 %v1538
    %1588 = vmatprep.subr.bf16.mxu0 %v1541
    %1589 = vmatpush1.bf16.msra.mxu0 %v1540
    %1590 = vmatprep.subr.bf16.mxu0 %v1543
    %1591 = vmatpush1.bf16.msra.mxu0 %v1542
    %1592 = vmatprep.subr.bf16.mxu0 %v1545
    %1593 = vmatpush1.bf16.msra.mxu0 %v1544
    %1594 = vmatprep.subr.bf16.mxu0 %v1547
    %1595 = vmatpush1.bf16.msra.mxu0 %v1546
    %1596 = vmatprep.subr.bf16.mxu0 %v1549
    %1597 = vmatpush1.bf16.msra.mxu0 %v1548
    %1598 = vmatprep.subr.bf16.mxu0 %v1551
    %1599 = vmatpush1.bf16.msra.mxu0 %v1550
    %1600 = vmatprep.subr.bf16.mxu0 %v1578
    %1601 = vmatpush1.bf16.msra.mxu0 %v1575
    %1602 = vmatprep.subr.bf16.mxu0 0
    %1603 = vmatpush1.bf16.msra.mxu0 0
    %1604 = vmatprep.subr.bf16.mxu0 0
    %1605 = vmatpush1.bf16.msra.mxu0 0
    %1606 = vmatprep.subr.bf16.mxu0 0
    %1607 = vmatpush1.bf16.msra.mxu0 0
    %1608 = vmatprep.subr.bf16.mxu0 0
    %1609 = vmatpush1.bf16.msra.mxu0 0
    %1610 = vmatprep.subr.bf16.mxu0 0
    %1611 = vmatpush1.bf16.msra.mxu0 0
    %1612 = vmatprep.mubr.bf16.mxu0 %v1020
    %1613 = vmatmul.mubr.bf16.gmra.mrb[0].mxu0 %v909
    %v1614 = vpop.f32.mrb[0].mxu0
    %v1615 = vadd.f32 0.0, %v1614
    %v1616 = vpop.f32.mrb[0].mxu0
    %v1617 = vadd.f32 0.0, %v1616
    %v1618 = vpop.f32.mrb[0].mxu0
    %v1619 = vadd.f32 0.0, %v1618
    %v1620 = vpop.f32.mrb[0].mxu0
    %v1621 = vadd.f32 0.0, %v1620
    %1622 = vdwg.mxu0
    %v1623 = vadd.f32 %v1439, %v1615
    %v1624 = vadd.f32 %v1441, %v1617
    %v1625 = vadd.f32 %v1443, %v1619
    %v1626 = vadd.f32 %v1445, %v1621
    %v1627 = vadd.f32 %v1623, %v1080
    %v1628 = vadd.f32 %v1624, %v1084
    %v1629 = vadd.f32 %v1625, %v1080
    %v1630 = vadd.f32 %v1626, %v1084
    %v1631 = vmax.f32 %v1627, 0.0
    %v1632 = vmax.f32 %v1628, 0.0
    %v1633 = vmax.f32 %v1629, 0.0
    %v1634 = vmax.f32 %v1630, 0.0
    %v1635 = vmax.f32 %v1091, %v1631
    %v1636 = vmax.f32 %v1092, %v1632
    %v1637 = vmax.f32 %v1093, %v1633
    %v1638 = vmax.f32 %v1094, %v1634
    %1639 = vmatprep.subr.bf16.mxu0 %v617
    %1640 = vmatpush1.bf16.msra.mxu0 %v616
    %1641 = vmatprep.subr.bf16.mxu0 %v619
    %1642 = vmatpush1.bf16.msra.mxu0 %v618
    %1643 = vmatprep.subr.bf16.mxu0 %v621
    %1644 = vmatpush1.bf16.msra.mxu0 %v620
    %1645 = vmatprep.subr.bf16.mxu0 %v623
    %1646 = vmatpush1.bf16.msra.mxu0 %v622
    %1647 = vmatprep.subr.bf16.mxu0 %v625
    %1648 = vmatpush1.bf16.msra.mxu0 %v624
    %1649 = vmatprep.subr.bf16.mxu0 %v627
    %1650 = vmatpush1.bf16.msra.mxu0 %v626
    %1651 = vmatprep.subr.bf16.mxu0 %v629
    %1652 = vmatpush1.bf16.msra.mxu0 %v628
    %1653 = vmatprep.subr.bf16.mxu0 %v631
    %1654 = vmatpush1.bf16.msra.mxu0 %v630
    %1655 = vmatprep.subr.bf16.mxu0 %v633
    %1656 = vmatpush1.bf16.msra.mxu0 %v632
    %1657 = vmatprep.subr.bf16.mxu0 %v635
    %1658 = vmatpush1.bf16.msra.mxu0 %v634
    %1659 = vmatprep.subr.bf16.mxu0 %v666
    %1660 = vmatpush1.bf16.msra.mxu0 %v663
    %1661 = vmatprep.subr.bf16.mxu0 0
    %1662 = vmatpush1.bf16.msra.mxu0 0
    %1663 = vmatprep.subr.bf16.mxu0 0
    %1664 = vmatpush1.bf16.msra.mxu0 0
    %1665 = vmatprep.subr.bf16.mxu0 0
    %1666 = vmatpush1.bf16.msra.mxu0 0
    %1667 = vmatprep.subr.bf16.mxu0 0
    %1668 = vmatpush1.bf16.msra.mxu0 0
    %1669 = vmatprep.subr.bf16.mxu0 0
    %1670 = vmatpush1.bf16.msra.mxu0 0
    %1671 = vmatprep.mubr.bf16.mxu0 %v1020
    %1672 = vmatmul.mubr.bf16.gmra.mrb[0].mxu0 %v909
    %v1673 = vpop.f32.mrb[0].mxu0
    %v1674 = vadd.f32 0.0, %v1673
    %v1675 = vpop.f32.mrb[0].mxu0
    %v1676 = vadd.f32 0.0, %v1675
    %v1677 = vpop.f32.mrb[0].mxu0
    %v1678 = vadd.f32 0.0, %v1677
    %v1679 = vpop.f32.mrb[0].mxu0
    %v1680 = vadd.f32 0.0, %v1679
    %1681 = vdwg.mxu0
    %1682 = vmatprep.subr.bf16.mxu0 %v787
    %1683 = vmatpush1.bf16.msra.mxu0 %v786
    %1684 = vmatprep.subr.bf16.mxu0 %v789
    %1685 = vmatpush1.bf16.msra.mxu0 %v788
    %1686 = vmatprep.subr.bf16.mxu0 %v791
    %1687 = vmatpush1.bf16.msra.mxu0 %v790
    %1688 = vmatprep.subr.bf16.mxu0 %v793
    %1689 = vmatpush1.bf16.msra.mxu0 %v792
    %1690 = vmatprep.subr.bf16.mxu0 %v795
    %1691 = vmatpush1.bf16.msra.mxu0 %v794
    %1692 = vmatprep.subr.bf16.mxu0 %v797
    %1693 = vmatpush1.bf16.msra.mxu0 %v796
    %1694 = vmatprep.subr.bf16.mxu0 %v799
    %1695 = vmatpush1.bf16.msra.mxu0 %v798
    %1696 = vmatprep.subr.bf16.mxu0 %v801
    %1697 = vmatpush1.bf16.msra.mxu0 %v800
    %1698 = vmatprep.subr.bf16.mxu0 %v803
    %1699 = vmatpush1.bf16.msra.mxu0 %v802
    %1700 = vmatprep.subr.bf16.mxu0 %v805
    %1701 = vmatpush1.bf16.msra.mxu0 %v804
    %1702 = vmatprep.subr.bf16.mxu0 %v835
    %1703 = vmatpush1.bf16.msra.mxu0 %v832
    %1704 = vmatprep.subr.bf16.mxu0 0
    %1705 = vmatpush1.bf16.msra.mxu0 0
    %1706 = vmatprep.subr.bf16.mxu0 0
    %1707 = vmatpush1.bf16.msra.mxu0 0
    %1708 = vmatprep.subr.bf16.mxu0 0
    %1709 = vmatpush1.bf16.msra.mxu0 0
    %1710 = vmatprep.subr.bf16.mxu0 0
    %1711 = vmatpush1.bf16.msra.mxu0 0
    %1712 = vmatprep.subr.bf16.mxu0 0
    %1713 = vmatpush1.bf16.msra.mxu0 0
    %1714 = vmatprep.mubr.bf16.mxu0 %v660
    %1715 = vmatmul.mubr.bf16.gmra.mrb[0].mxu0 %v498
    %v1716 = vpop.f32.mrb[0].mxu0
    %v1717 = vadd.f32 %v1674, %v1716
    %v1718 = vpop.f32.mrb[0].mxu0
    %v1719 = vadd.f32 %v1676, %v1718
    %v1720 = vpop.f32.mrb[0].mxu0
    %v1721 = vadd.f32 %v1678, %v1720
    %v1722 = vpop.f32.mrb[0].mxu0
    %v1723 = vadd.f32 %v1680, %v1722
    %1724 = vdwg.mxu0
    %v1727 = vrot.slane %v508, 1
    %v1728 = vrot.slane %v509, 1
    %v1731 = vsel %vm658, %v1728, 0
    %1733 = vmatprep.subr.bf16.mxu0 %v978
    %1734 = vmatpush1.bf16.msra.mxu0 %v977
    %1735 = vmatprep.subr.bf16.mxu0 %v980
    %1736 = vmatpush1.bf16.msra.mxu0 %v979
    %1737 = vmatprep.subr.bf16.mxu0 %v982
    %1738 = vmatpush1.bf16.msra.mxu0 %v981
    %1739 = vmatprep.subr.bf16.mxu0 %v984
    %1740 = vmatpush1.bf16.msra.mxu0 %v983
    %1741 = vmatprep.subr.bf16.mxu0 %v986
    %1742 = vmatpush1.bf16.msra.mxu0 %v985
    %1743 = vmatprep.subr.bf16.mxu0 %v988
    %1744 = vmatpush1.bf16.msra.mxu0 %v987
    %1745 = vmatprep.subr.bf16.mxu0 %v990
    %1746 = vmatpush1.bf16.msra.mxu0 %v989
    %1747 = vmatprep.subr.bf16.mxu0 %v992
    %1748 = vmatpush1.bf16.msra.mxu0 %v991
    %1749 = vmatprep.subr.bf16.mxu0 %v994
    %1750 = vmatpush1.bf16.msra.mxu0 %v993
    %1751 = vmatprep.subr.bf16.mxu0 %v996
    %1752 = vmatpush1.bf16.msra.mxu0 %v995
    %1753 = vmatprep.subr.bf16.mxu0 %v1026
    %1754 = vmatpush1.bf16.msra.mxu0 %v1023
    %1755 = vmatprep.subr.bf16.mxu0 0
    %1756 = vmatpush1.bf16.msra.mxu0 0
    %1757 = vmatprep.subr.bf16.mxu0 0
    %1758 = vmatpush1.bf16.msra.mxu0 0
    %1759 = vmatprep.subr.bf16.mxu0 0
    %1760 = vmatpush1.bf16.msra.mxu0 0
    %1761 = vmatprep.subr.bf16.mxu0 0
    %1762 = vmatpush1.bf16.msra.mxu0 0
    %1763 = vmatprep.subr.bf16.mxu0 0
    %1764 = vmatpush1.bf16.msra.mxu0 0
    %1765 = vmatprep.mubr.bf16.mxu0 %v1731
    %1766 = vmatmul.mubr.bf16.gmra.mrb[0].mxu0 %v1727
    %v1767 = vpop.f32.mrb[0].mxu0
    %v1768 = vadd.f32 0.0, %v1767
    %v1769 = vpop.f32.mrb[0].mxu0
    %v1770 = vadd.f32 0.0, %v1769
    %v1771 = vpop.f32.mrb[0].mxu0
    %v1772 = vadd.f32 0.0, %v1771
    %v1773 = vpop.f32.mrb[0].mxu0
    %v1774 = vadd.f32 0.0, %v1773
    %1775 = vdwg.mxu0
    %v1776 = vadd.f32 %v1717, %v1768
    %v1777 = vadd.f32 %v1719, %v1770
    %v1778 = vadd.f32 %v1721, %v1772
    %v1779 = vadd.f32 %v1723, %v1774
    %v1780 = vadd.f32 %v1776, %v1080
    %v1781 = vadd.f32 %v1777, %v1084
    %v1782 = vadd.f32 %v1778, %v1080
    %v1783 = vadd.f32 %v1779, %v1084
    %v1784 = vmax.f32 %v1780, 0.0
    %v1785 = vmax.f32 %v1781, 0.0
    %v1786 = vmax.f32 %v1782, 0.0
    %v1787 = vmax.f32 %v1783, 0.0
    %v1788 = vmax.f32 %v1635, %v1784
    %v1789 = vmax.f32 %v1636, %v1785
    %v1790 = vmax.f32 %v1637, %v1786
    %v1791 = vmax.f32 %v1638, %v1787
    %1792 = vmatprep.subr.bf16.mxu0 %v1203
    %1793 = vmatpush1.bf16.msra.mxu0 %v1202
    %1794 = vmatprep.subr.bf16.mxu0 %v1205
    %1795 = vmatpush1.bf16.msra.mxu0 %v1204
    %1796 = vmatprep.subr.bf16.mxu0 %v1207
    %1797 = vmatpush1.bf16.msra.mxu0 %v1206
    %1798 = vmatprep.subr.bf16.mxu0 %v1209
    %1799 = vmatpush1.bf16.msra.mxu0 %v1208
    %1800 = vmatprep.subr.bf16.mxu0 %v1211
    %1801 = vmatpush1.bf16.msra.mxu0 %v1210
    %1802 = vmatprep.subr.bf16.mxu0 %v1213
    %1803 = vmatpush1.bf16.msra.mxu0 %v1212
    %1804 = vmatprep.subr.bf16.mxu0 %v1215
    %1805 = vmatpush1.bf16.msra.mxu0 %v1214
    %1806 = vmatprep.subr.bf16.mxu0 %v1217
    %1807 = vmatpush1.bf16.msra.mxu0 %v1216
    %1808 = vmatprep.subr.bf16.mxu0 %v1219
    %1809 = vmatpush1.bf16.msra.mxu0 %v1218
    %1810 = vmatprep.subr.bf16.mxu0 %v1221
    %1811 = vmatpush1.bf16.msra.mxu0 %v1220
    %1812 = vmatprep.subr.bf16.mxu0 %v1248
    %1813 = vmatpush1.bf16.msra.mxu0 %v1245
    %1814 = vmatprep.subr.bf16.mxu0 0
    %1815 = vmatpush1.bf16.msra.mxu0 0
    %1816 = vmatprep.subr.bf16.mxu0 0
    %1817 = vmatpush1.bf16.msra.mxu0 0
    %1818 = vmatprep.subr.bf16.mxu0 0
    %1819 = vmatpush1.bf16.msra.mxu0 0
    %1820 = vmatprep.subr.bf16.mxu0 0
    %1821 = vmatpush1.bf16.msra.mxu0 0
    %1822 = vmatprep.subr.bf16.mxu0 0
    %1823 = vmatpush1.bf16.msra.mxu0 0
    %1824 = vmatprep.mubr.bf16.mxu0 %v1020
    %1825 = vmatmul.mubr.bf16.gmra.mrb[0].mxu0 %v909
    %v1826 = vpop.f32.mrb[0].mxu0
    %v1827 = vadd.f32 0.0, %v1826
    %v1828 = vpop.f32.mrb[0].mxu0
    %v1829 = vadd.f32 0.0, %v1828
    %v1830 = vpop.f32.mrb[0].mxu0
    %v1831 = vadd.f32 0.0, %v1830
    %v1832 = vpop.f32.mrb[0].mxu0
    %v1833 = vadd.f32 0.0, %v1832
    %1834 = vdwg.mxu0
    %1835 = vmatprep.subr.bf16.mxu0 %v1357
    %1836 = vmatpush1.bf16.msra.mxu0 %v1356
    %1837 = vmatprep.subr.bf16.mxu0 %v1359
    %1838 = vmatpush1.bf16.msra.mxu0 %v1358
    %1839 = vmatprep.subr.bf16.mxu0 %v1361
    %1840 = vmatpush1.bf16.msra.mxu0 %v1360
    %1841 = vmatprep.subr.bf16.mxu0 %v1363
    %1842 = vmatpush1.bf16.msra.mxu0 %v1362
    %1843 = vmatprep.subr.bf16.mxu0 %v1365
    %1844 = vmatpush1.bf16.msra.mxu0 %v1364
    %1845 = vmatprep.subr.bf16.mxu0 %v1367
    %1846 = vmatpush1.bf16.msra.mxu0 %v1366
    %1847 = vmatprep.subr.bf16.mxu0 %v1369
    %1848 = vmatpush1.bf16.msra.mxu0 %v1368
    %1849 = vmatprep.subr.bf16.mxu0 %v1371
    %1850 = vmatpush1.bf16.msra.mxu0 %v1370
    %1851 = vmatprep.subr.bf16.mxu0 %v1373
    %1852 = vmatpush1.bf16.msra.mxu0 %v1372
    %1853 = vmatprep.subr.bf16.mxu0 %v1375
    %1854 = vmatpush1.bf16.msra.mxu0 %v1374
    %1855 = vmatprep.subr.bf16.mxu0 %v1402
    %1856 = vmatpush1.bf16.msra.mxu0 %v1399
    %1857 = vmatprep.subr.bf16.mxu0 0
    %1858 = vmatpush1.bf16.msra.mxu0 0
    %1859 = vmatprep.subr.bf16.mxu0 0
    %1860 = vmatpush1.bf16.msra.mxu0 0
    %1861 = vmatprep.subr.bf16.mxu0 0
    %1862 = vmatpush1.bf16.msra.mxu0 0
    %1863 = vmatprep.subr.bf16.mxu0 0
    %1864 = vmatpush1.bf16.msra.mxu0 0
    %1865 = vmatprep.subr.bf16.mxu0 0
    %1866 = vmatpush1.bf16.msra.mxu0 0
    %1867 = vmatprep.mubr.bf16.mxu0 %v660
    %1868 = vmatmul.mubr.bf16.gmra.mrb[0].mxu0 %v498
    %v1869 = vpop.f32.mrb[0].mxu0
    %v1870 = vadd.f32 %v1827, %v1869
    %v1871 = vpop.f32.mrb[0].mxu0
    %v1872 = vadd.f32 %v1829, %v1871
    %v1873 = vpop.f32.mrb[0].mxu0
    %v1874 = vadd.f32 %v1831, %v1873
    %v1875 = vpop.f32.mrb[0].mxu0
    %v1876 = vadd.f32 %v1833, %v1875
    %1877 = vdwg.mxu0
    %1878 = vmatprep.subr.bf16.mxu0 %v1533
    %1879 = vmatpush1.bf16.msra.mxu0 %v1532
    %1880 = vmatprep.subr.bf16.mxu0 %v1535
    %1881 = vmatpush1.bf16.msra.mxu0 %v1534
    %1882 = vmatprep.subr.bf16.mxu0 %v1537
    %1883 = vmatpush1.bf16.msra.mxu0 %v1536
    %1884 = vmatprep.subr.bf16.mxu0 %v1539
    %1885 = vmatpush1.bf16.msra.mxu0 %v1538
    %1886 = vmatprep.subr.bf16.mxu0 %v1541
    %1887 = vmatpush1.bf16.msra.mxu0 %v1540
    %1888 = vmatprep.subr.bf16.mxu0 %v1543
    %1889 = vmatpush1.bf16.msra.mxu0 %v1542
    %1890 = vmatprep.subr.bf16.mxu0 %v1545
    %1891 = vmatpush1.bf16.msra.mxu0 %v1544
    %1892 = vmatprep.subr.bf16.mxu0 %v1547
    %1893 = vmatpush1.bf16.msra.mxu0 %v1546
    %1894 = vmatprep.subr.bf16.mxu0 %v1549
    %1895 = vmatpush1.bf16.msra.mxu0 %v1548
    %1896 = vmatprep.subr.bf16.mxu0 %v1551
    %1897 = vmatpush1.bf16.msra.mxu0 %v1550
    %1898 = vmatprep.subr.bf16.mxu0 %v1578
    %1899 = vmatpush1.bf16.msra.mxu0 %v1575
    %1900 = vmatprep.subr.bf16.mxu0 0
    %1901 = vmatpush1.bf16.msra.mxu0 0
    %1902 = vmatprep.subr.bf16.mxu0 0
    %1903 = vmatpush1.bf16.msra.mxu0 0
    %1904 = vmatprep.subr.bf16.mxu0 0
    %1905 = vmatpush1.bf16.msra.mxu0 0
    %1906 = vmatprep.subr.bf16.mxu0 0
    %1907 = vmatpush1.bf16.msra.mxu0 0
    %1908 = vmatprep.subr.bf16.mxu0 0
    %1909 = vmatpush1.bf16.msra.mxu0 0
    %1910 = vmatprep.mubr.bf16.mxu0 %v1731
    %1911 = vmatmul.mubr.bf16.gmra.mrb[0].mxu0 %v1727
    %v1912 = vpop.f32.mrb[0].mxu0
    %v1913 = vadd.f32 0.0, %v1912
    %v1914 = vpop.f32.mrb[0].mxu0
    %v1915 = vadd.f32 0.0, %v1914
    %v1916 = vpop.f32.mrb[0].mxu0
    %v1917 = vadd.f32 0.0, %v1916
    %v1918 = vpop.f32.mrb[0].mxu0
    %v1919 = vadd.f32 0.0, %v1918
    %1920 = vdwg.mxu0
    %v1921 = vadd.f32 %v1870, %v1913
    %v1922 = vadd.f32 %v1872, %v1915
    %v1923 = vadd.f32 %v1874, %v1917
    %v1924 = vadd.f32 %v1876, %v1919
    %v1925 = vadd.f32 %v1921, %v1080
    %v1926 = vadd.f32 %v1922, %v1084
    %v1927 = vadd.f32 %v1923, %v1080
    %v1928 = vadd.f32 %v1924, %v1084
    %v1929 = vmax.f32 %v1925, 0.0
    %v1930 = vmax.f32 %v1926, 0.0
    %v1931 = vmax.f32 %v1927, 0.0
    %v1932 = vmax.f32 %v1928, 0.0
    %v1933 = vmax.f32 %v1788, %v1929
    %v1934 = vmax.f32 %v1789, %v1930
    %v1935 = vmax.f32 %v1790, %v1931
    %v1936 = vmax.f32 %v1791, %v1932
    %v1937 = vpack.c.bf16 %v1933, %v1933
    %v1938 = vpack.c.bf16 %v1934, %v1934
    %v1939 = vld [vmem:[%s6] sm:$0xf]
    %v1940 = vld [vmem:[%s6 + $0x4] sm:$0xf]
    %v1941 = vld [vmem:[%s6 + $0x8] sm:$0xf]
    %v1942 = vld [vmem:[%s6 + $0xc] sm:$0xf]
    %v1943 = vld [vmem:[%s6 + $0x10] sm:$0xf]
    %v1944 = vld [vmem:[%s6 + $0x14] sm:$0xf]
    %v1945 = vld [vmem:[%s6 + $0x18] sm:$0xf]
    %v1946 = vld [vmem:[%s6 + $0x1c] sm:$0xf]
    %v1947 = vld [vmem:[%s6 + $0x20] sm:$0xf]
    %v1948 = vld [vmem:[%s6 + $0x24] sm:$0xf]
    %v1949 = vld [vmem:[%s6 + $0x28] sm:$0xf]
    %v1950 = vld [vmem:[%s6 + $0x2c] sm:$0xf]
    %v1951 = vld [vmem:[%s6 + $0x30] sm:$0xf]
    %v1952 = vld [vmem:[%s6 + $0x34] sm:$0xf]
    %v1953 = vld [vmem:[%s6 + $0x38] sm:$0xf]
    %v1954 = vld [vmem:[%s6 + $0x3c] sm:$0xf]
    %v1955 = vld [vmem:[%s6 + $0x40] sm:$0xf]
    %v1956 = vld [vmem:[%s6 + $0x44] sm:$0xf]
    %v1957 = vld [vmem:[%s6 + $0x48] sm:$0xf]
    %v1958 = vld [vmem:[%s6 + $0x4c] sm:$0xf]
    %v1959 = vld [vmem:[%s6 + $0x50] sm:$0xf]
    %s1960 = scalar_lea.vmem %s6, 84
    %v1961 = vld [vmem:[%s1960] sm:$0xf]
    %v1962 = vld [vmem:[%s1960 + $0x4] sm:$0xf]
    %v1963 = vld [vmem:[%s1960 + $0x8] sm:$0xf]
    %v1964 = vld [vmem:[%s1960 + $0xc] sm:$0xf]
    %v1965 = vld [vmem:[%s1960 + $0x10] sm:$0xf]
    %v1966 = vld [vmem:[%s1960 + $0x14] sm:$0xf]
    %v1967 = vld [vmem:[%s1960 + $0x18] sm:$0xf]
    %v1968 = vld [vmem:[%s1960 + $0x1c] sm:$0xf]
    %v1969 = vld [vmem:[%s1960 + $0x20] sm:$0xf]
    %v1970 = vld [vmem:[%s1960 + $0x24] sm:$0xf]
    %v1971 = vld [vmem:[%s1960 + $0x28] sm:$0xf]
    %v1972 = vld [vmem:[%s1960 + $0x2c] sm:$0xf]
    %v1973 = vld [vmem:[%s1960 + $0x30] sm:$0xf]
    %v1974 = vld [vmem:[%s1960 + $0x34] sm:$0xf]
    %v1975 = vld [vmem:[%s1960 + $0x38] sm:$0xf]
    %v1976 = vld [vmem:[%s1960 + $0x3c] sm:$0xf]
    %v1977 = vld [vmem:[%s1960 + $0x40] sm:$0xf]
    %v1978 = vld [vmem:[%s1960 + $0x44] sm:$0xf]
    %v1979 = vld [vmem:[%s1960 + $0x48] sm:$0xf]
    %v1980 = vld [vmem:[%s1960 + $0x4c] sm:$0xf]
    %v1981 = vld [vmem:[%s1960 + $0x50] sm:$0xf]
    %v1984 = vrot.slane %v1937, 1
    %v1985 = vrot.slane %v1938, 1
    %v2008 = vunpack.c.l.b16 %v1961
    %v2009 = vunpack.c.l.b16 %v1962
    %v2010 = vunpack.c.l.b16 %v1963
    %v2011 = vunpack.c.l.b16 %v1964
    %v2012 = vunpack.c.l.b16 %v1965
    %v2013 = vunpack.c.l.b16 %v1966
    %v2014 = vunpack.c.l.b16 %v1967
    %v2015 = vunpack.c.l.b16 %v1968
    %v2016 = vunpack.c.l.b16 %v1969
    %v2017 = vunpack.c.l.b16 %v1970
    %v2018 = vunpack.c.l.b16 %v1971
    %v2019 = vunpack.c.l.b16 %v1972
    %v2020 = vunpack.c.l.b16 %v1973
    %v2021 = vunpack.c.l.b16 %v1974
    %v2022 = vunpack.c.l.b16 %v1975
    %v2023 = vunpack.c.l.b16 %v1976
    %v2024 = vunpack.c.l.b16 %v1977
    %v2025 = vunpack.c.l.b16 %v1978
    %v2026 = vunpack.c.l.b16 %v1979
    %v2027 = vunpack.c.l.b16 %v1980
    %v2028 = vunpack.c.l.b16 %v1981
    %v2029 = vpack.c.b16 %v2009, %v2008
    %v2030 = vpack.c.b16 %v2011, %v2010
    %v2031 = vpack.c.b16 %v2013, %v2012
    %v2032 = vpack.c.b16 %v2015, %v2014
    %v2033 = vpack.c.b16 %v2017, %v2016
    %v2034 = vpack.c.b16 %v2019, %v2018
    %v2035 = vpack.c.b16 %v2021, %v2020
    %v2036 = vpack.c.b16 %v2023, %v2022
    %v2037 = vpack.c.b16 %v2025, %v2024
    %v2038 = vpack.c.b16 %v2027, %v2026
    %v2039 = vpack.c.b16 %v2028, %v2028
    %v2051 = vsel %vm658, %v1985, 0
    %v2054 = vsel %vm425, %v2039, 0
    %2056 = vmatprep.subr.bf16.mxu0 0
    %2057 = vmatpush1.bf16.msra.mxu0 %v2029
    %2058 = vmatprep.subr.bf16.mxu0 0
    %2059 = vmatpush1.bf16.msra.mxu0 %v2030
    %2060 = vmatprep.subr.bf16.mxu0 0
    %2061 = vmatpush1.bf16.msra.mxu0 %v2031
    %2062 = vmatprep.subr.bf16.mxu0 0
    %2063 = vmatpush1.bf16.msra.mxu0 %v2032
    %2064 = vmatprep.subr.bf16.mxu0 0
    %2065 = vmatpush1.bf16.msra.mxu0 %v2033
    %2066 = vmatprep.subr.bf16.mxu0 0
    %2067 = vmatpush1.bf16.msra.mxu0 %v2034
    %2068 = vmatprep.subr.bf16.mxu0 0
    %2069 = vmatpush1.bf16.msra.mxu0 %v2035
    %2070 = vmatprep.subr.bf16.mxu0 0
    %2071 = vmatpush1.bf16.msra.mxu0 %v2036
    %2072 = vmatprep.subr.bf16.mxu0 0
    %2073 = vmatpush1.bf16.msra.mxu0 %v2037
    %2074 = vmatprep.subr.bf16.mxu0 0
    %2075 = vmatpush1.bf16.msra.mxu0 %v2038
    %2076 = vmatprep.subr.bf16.mxu0 0
    %2077 = vmatpush1.bf16.msra.mxu0 %v2054
    %2078 = vmatprep.subr.bf16.mxu0 0
    %2079 = vmatpush1.bf16.msra.mxu0 0
    %2080 = vmatprep.subr.bf16.mxu0 0
    %2081 = vmatpush1.bf16.msra.mxu0 0
    %2082 = vmatprep.subr.bf16.mxu0 0
    %2083 = vmatpush1.bf16.msra.mxu0 0
    %2084 = vmatprep.subr.bf16.mxu0 0
    %2085 = vmatpush1.bf16.msra.mxu0 0
    %2086 = vmatprep.subr.bf16.mxu0 0
    %2087 = vmatpush1.bf16.msra.mxu0 0
    %2088 = vmatprep.mubr.bf16.mxu0 %v2051
    %2089 = vmatmul.mubr.bf16.gmra.mrb[0].mxu0 %v1984
    %v2090 = vpop.f32.mrb[0].mxu0
    %v2091 = vadd.f32 0.0, %v2090
    %v2092 = vpop.f32.mrb[0].mxu0
    %v2093 = vpop.f32.mrb[0].mxu0
    %v2094 = vpop.f32.mrb[0].mxu0
    %2095 = vdwg.mxu0
    %v2117 = vunpack.c.l.b16 %v1939
    %v2118 = vunpack.c.l.b16 %v1940
    %v2119 = vunpack.c.l.b16 %v1941
    %v2120 = vunpack.c.l.b16 %v1942
    %v2121 = vunpack.c.l.b16 %v1943
    %v2122 = vunpack.c.l.b16 %v1944
    %v2123 = vunpack.c.l.b16 %v1945
    %v2124 = vunpack.c.l.b16 %v1946
    %v2125 = vunpack.c.l.b16 %v1947
    %v2126 = vunpack.c.l.b16 %v1948
    %v2127 = vunpack.c.l.b16 %v1949
    %v2128 = vunpack.c.l.b16 %v1950
    %v2129 = vunpack.c.l.b16 %v1951
    %v2130 = vunpack.c.l.b16 %v1952
    %v2131 = vunpack.c.l.b16 %v1953
    %v2132 = vunpack.c.l.b16 %v1954
    %v2133 = vunpack.c.l.b16 %v1955
    %v2134 = vunpack.c.l.b16 %v1956
    %v2135 = vunpack.c.l.b16 %v1957
    %v2136 = vunpack.c.l.b16 %v1958
    %v2137 = vunpack.c.l.b16 %v1959
    %v2138 = vpack.c.b16 %v2118, %v2117
    %v2139 = vpack.c.b16 %v2120, %v2119
    %v2140 = vpack.c.b16 %v2122, %v2121
    %v2141 = vpack.c.b16 %v2124, %v2123
    %v2142 = vpack.c.b16 %v2126, %v2125
    %v2143 = vpack.c.b16 %v2128, %v2127
    %v2144 = vpack.c.b16 %v2130, %v2129
    %v2145 = vpack.c.b16 %v2132, %v2131
    %v2146 = vpack.c.b16 %v2134, %v2133
    %v2147 = vpack.c.b16 %v2136, %v2135
    %v2148 = vpack.c.b16 %v2137, %v2137
    %v2160 = vsel %vm658, %v1938, 0
    %v2163 = vsel %vm425, %v2148, 0
    %2165 = vmatprep.subr.bf16.mxu0 0
    %2166 = vmatpush1.bf16.msra.mxu0 %v2138
    %2167 = vmatprep.subr.bf16.mxu0 0
    %2168 = vmatpush1.bf16.msra.mxu0 %v2139
    %2169 = vmatprep.subr.bf16.mxu0 0
    %2170 = vmatpush1.bf16.msra.mxu0 %v2140
    %2171 = vmatprep.subr.bf16.mxu0 0
    %2172 = vmatpush1.bf16.msra.mxu0 %v2141
    %2173 = vmatprep.subr.bf16.mxu0 0
    %2174 = vmatpush1.bf16.msra.mxu0 %v2142
    %2175 = vmatprep.subr.bf16.mxu0 0
    %2176 = vmatpush1.bf16.msra.mxu0 %v2143
    %2177 = vmatprep.subr.bf16.mxu0 0
    %2178 = vmatpush1.bf16.msra.mxu0 %v2144
    %2179 = vmatprep.subr.bf16.mxu0 0
    %2180 = vmatpush1.bf16.msra.mxu0 %v2145
    %2181 = vmatprep.subr.bf16.mxu0 0
    %2182 = vmatpush1.bf16.msra.mxu0 %v2146
    %2183 = vmatprep.subr.bf16.mxu0 0
    %2184 = vmatpush1.bf16.msra.mxu0 %v2147
    %2185 = vmatprep.subr.bf16.mxu0 0
    %2186 = vmatpush1.bf16.msra.mxu0 %v2163
    %2187 = vmatprep.subr.bf16.mxu0 0
    %2188 = vmatpush1.bf16.msra.mxu0 0
    %2189 = vmatprep.subr.bf16.mxu0 0
    %2190 = vmatpush1.bf16.msra.mxu0 0
    %2191 = vmatprep.subr.bf16.mxu0 0
    %2192 = vmatpush1.bf16.msra.mxu0 0
    %2193 = vmatprep.subr.bf16.mxu0 0
    %2194 = vmatpush1.bf16.msra.mxu0 0
    %2195 = vmatprep.subr.bf16.mxu0 0
    %2196 = vmatpush1.bf16.msra.mxu0 0
    %2197 = vmatprep.mubr.bf16.mxu0 %v2160
    %2198 = vmatmul.mubr.bf16.gmra.mrb[0].mxu0 %v1937
    %v2199 = vpop.f32.mrb[0].mxu0
    %v2200 = vadd.f32 %v2091, %v2199
    %v2201 = vpop.f32.mrb[0].mxu0
    %v2202 = vpop.f32.mrb[0].mxu0
    %v2203 = vpop.f32.mrb[0].mxu0
    %2204 = vdwg.mxu0
    %s2205 = scalar_lea.vmem %s6, 168
    %v2206 = vld [vmem:[%s2205] sm:$0xf]
    %v2207 = vld [vmem:[%s2205 + $0x4] sm:$0xf]
    %v2208 = vld [vmem:[%s2205 + $0x8] sm:$0xf]
    %v2209 = vld [vmem:[%s2205 + $0xc] sm:$0xf]
    %v2210 = vld [vmem:[%s2205 + $0x10] sm:$0xf]
    %v2211 = vld [vmem:[%s2205 + $0x14] sm:$0xf]
    %v2212 = vld [vmem:[%s2205 + $0x18] sm:$0xf]
    %v2213 = vld [vmem:[%s2205 + $0x1c] sm:$0xf]
    %v2214 = vld [vmem:[%s2205 + $0x20] sm:$0xf]
    %v2215 = vld [vmem:[%s2205 + $0x24] sm:$0xf]
    %v2216 = vld [vmem:[%s2205 + $0x28] sm:$0xf]
    %v2217 = vld [vmem:[%s2205 + $0x2c] sm:$0xf]
    %v2218 = vld [vmem:[%s2205 + $0x30] sm:$0xf]
    %v2219 = vld [vmem:[%s2205 + $0x34] sm:$0xf]
    %v2220 = vld [vmem:[%s2205 + $0x38] sm:$0xf]
    %v2221 = vld [vmem:[%s2205 + $0x3c] sm:$0xf]
    %v2222 = vld [vmem:[%s2205 + $0x40] sm:$0xf]
    %v2223 = vld [vmem:[%s2205 + $0x44] sm:$0xf]
    %v2224 = vld [vmem:[%s2205 + $0x48] sm:$0xf]
    %v2225 = vld [vmem:[%s2205 + $0x4c] sm:$0xf]
    %v2226 = vld [vmem:[%s2205 + $0x50] sm:$0xf]
    %v2227 = vrot.slane %v1937, 2
    %v2228 = vrot.slane %v1938, 2
    %v2251 = vunpack.c.l.b16 %v2206
    %v2252 = vunpack.c.l.b16 %v2207
    %v2253 = vunpack.c.l.b16 %v2208
    %v2254 = vunpack.c.l.b16 %v2209
    %v2255 = vunpack.c.l.b16 %v2210
    %v2256 = vunpack.c.l.b16 %v2211
    %v2257 = vunpack.c.l.b16 %v2212
    %v2258 = vunpack.c.l.b16 %v2213
    %v2259 = vunpack.c.l.b16 %v2214
    %v2260 = vunpack.c.l.b16 %v2215
    %v2261 = vunpack.c.l.b16 %v2216
    %v2262 = vunpack.c.l.b16 %v2217
    %v2263 = vunpack.c.l.b16 %v2218
    %v2264 = vunpack.c.l.b16 %v2219
    %v2265 = vunpack.c.l.b16 %v2220
    %v2266 = vunpack.c.l.b16 %v2221
    %v2267 = vunpack.c.l.b16 %v2222
    %v2268 = vunpack.c.l.b16 %v2223
    %v2269 = vunpack.c.l.b16 %v2224
    %v2270 = vunpack.c.l.b16 %v2225
    %v2271 = vunpack.c.l.b16 %v2226
    %v2272 = vpack.c.b16 %v2252, %v2251
    %v2273 = vpack.c.b16 %v2254, %v2253
    %v2274 = vpack.c.b16 %v2256, %v2255
    %v2275 = vpack.c.b16 %v2258, %v2257
    %v2276 = vpack.c.b16 %v2260, %v2259
    %v2277 = vpack.c.b16 %v2262, %v2261
    %v2278 = vpack.c.b16 %v2264, %v2263
    %v2279 = vpack.c.b16 %v2266, %v2265
    %v2280 = vpack.c.b16 %v2268, %v2267
    %v2281 = vpack.c.b16 %v2270, %v2269
    %v2282 = vpack.c.b16 %v2271, %v2271
    %v2294 = vsel %vm658, %v2228, 0
    %v2297 = vsel %vm425, %v2282, 0
    %2299 = vmatprep.subr.bf16.mxu0 0
    %2300 = vmatpush1.bf16.msra.mxu0 %v2272
    %2301 = vmatprep.subr.bf16.mxu0 0
    %2302 = vmatpush1.bf16.msra.mxu0 %v2273
    %2303 = vmatprep.subr.bf16.mxu0 0
    %2304 = vmatpush1.bf16.msra.mxu0 %v2274
    %2305 = vmatprep.subr.bf16.mxu0 0
    %2306 = vmatpush1.bf16.msra.mxu0 %v2275
    %2307 = vmatprep.subr.bf16.mxu0 0
    %2308 = vmatpush1.bf16.msra.mxu0 %v2276
    %2309 = vmatprep.subr.bf16.mxu0 0
    %2310 = vmatpush1.bf16.msra.mxu0 %v2277
    %2311 = vmatprep.subr.bf16.mxu0 0
    %2312 = vmatpush1.bf16.msra.mxu0 %v2278
    %2313 = vmatprep.subr.bf16.mxu0 0
    %2314 = vmatpush1.bf16.msra.mxu0 %v2279
    %2315 = vmatprep.subr.bf16.mxu0 0
    %2316 = vmatpush1.bf16.msra.mxu0 %v2280
    %2317 = vmatprep.subr.bf16.mxu0 0
    %2318 = vmatpush1.bf16.msra.mxu0 %v2281
    %2319 = vmatprep.subr.bf16.mxu0 0
    %2320 = vmatpush1.bf16.msra.mxu0 %v2297
    %2321 = vmatprep.subr.bf16.mxu0 0
    %2322 = vmatpush1.bf16.msra.mxu0 0
    %2323 = vmatprep.subr.bf16.mxu0 0
    %2324 = vmatpush1.bf16.msra.mxu0 0
    %2325 = vmatprep.subr.bf16.mxu0 0
    %2326 = vmatpush1.bf16.msra.mxu0 0
    %2327 = vmatprep.subr.bf16.mxu0 0
    %2328 = vmatpush1.bf16.msra.mxu0 0
    %2329 = vmatprep.subr.bf16.mxu0 0
    %2330 = vmatpush1.bf16.msra.mxu0 0
    %2331 = vmatprep.mubr.bf16.mxu0 %v2294
    %2332 = vmatmul.mubr.bf16.gmra.mrb[0].mxu0 %v2227
    %v2333 = vpop.f32.mrb[0].mxu0
    %v2334 = vadd.f32 0.0, %v2333
    %v2335 = vpop.f32.mrb[0].mxu0
    %v2336 = vpop.f32.mrb[0].mxu0
    %v2337 = vpop.f32.mrb[0].mxu0
    %2338 = vdwg.mxu0
    %v2339 = vadd.f32 %v2200, %v2334
    %s2340 = scalar_lea.vmem %s6, 252
    %v2341 = vld [vmem:[%s2340] sm:$0xf]
    %v2342 = vld [vmem:[%s2340 + $0x4] sm:$0xf]
    %v2343 = vld [vmem:[%s2340 + $0x8] sm:$0xf]
    %v2344 = vld [vmem:[%s2340 + $0xc] sm:$0xf]
    %v2345 = vld [vmem:[%s2340 + $0x10] sm:$0xf]
    %v2346 = vld [vmem:[%s2340 + $0x14] sm:$0xf]
    %v2347 = vld [vmem:[%s2340 + $0x18] sm:$0xf]
    %v2348 = vld [vmem:[%s2340 + $0x1c] sm:$0xf]
    %v2349 = vld [vmem:[%s2340 + $0x20] sm:$0xf]
    %v2350 = vld [vmem:[%s2340 + $0x24] sm:$0xf]
    %v2351 = vld [vmem:[%s2340 + $0x28] sm:$0xf]
    %v2352 = vld [vmem:[%s2340 + $0x2c] sm:$0xf]
    %v2353 = vld [vmem:[%s2340 + $0x30] sm:$0xf]
    %v2354 = vld [vmem:[%s2340 + $0x34] sm:$0xf]
    %v2355 = vld [vmem:[%s2340 + $0x38] sm:$0xf]
    %v2356 = vld [vmem:[%s2340 + $0x3c] sm:$0xf]
    %v2357 = vld [vmem:[%s2340 + $0x40] sm:$0xf]
    %v2358 = vld [vmem:[%s2340 + $0x44] sm:$0xf]
    %v2359 = vld [vmem:[%s2340 + $0x48] sm:$0xf]
    %v2360 = vld [vmem:[%s2340 + $0x4c] sm:$0xf]
    %v2361 = vld [vmem:[%s2340 + $0x50] sm:$0xf]
    %v2362 = vrot.slane %v1937, 3
    %v2363 = vrot.slane %v1938, 3
    %v2386 = vunpack.c.l.b16 %v2341
    %v2387 = vunpack.c.l.b16 %v2342
    %v2388 = vunpack.c.l.b16 %v2343
    %v2389 = vunpack.c.l.b16 %v2344
    %v2390 = vunpack.c.l.b16 %v2345
    %v2391 = vunpack.c.l.b16 %v2346
    %v2392 = vunpack.c.l.b16 %v2347
    %v2393 = vunpack.c.l.b16 %v2348
    %v2394 = vunpack.c.l.b16 %v2349
    %v2395 = vunpack.c.l.b16 %v2350
    %v2396 = vunpack.c.l.b16 %v2351
    %v2397 = vunpack.c.l.b16 %v2352
    %v2398 = vunpack.c.l.b16 %v2353
    %v2399 = vunpack.c.l.b16 %v2354
    %v2400 = vunpack.c.l.b16 %v2355
    %v2401 = vunpack.c.l.b16 %v2356
    %v2402 = vunpack.c.l.b16 %v2357
    %v2403 = vunpack.c.l.b16 %v2358
    %v2404 = vunpack.c.l.b16 %v2359
    %v2405 = vunpack.c.l.b16 %v2360
    %v2406 = vunpack.c.l.b16 %v2361
    %v2407 = vpack.c.b16 %v2387, %v2386
    %v2408 = vpack.c.b16 %v2389, %v2388
    %v2409 = vpack.c.b16 %v2391, %v2390
    %v2410 = vpack.c.b16 %v2393, %v2392
    %v2411 = vpack.c.b16 %v2395, %v2394
    %v2412 = vpack.c.b16 %v2397, %v2396
    %v2413 = vpack.c.b16 %v2399, %v2398
    %v2414 = vpack.c.b16 %v2401, %v2400
    %v2415 = vpack.c.b16 %v2403, %v2402
    %v2416 = vpack.c.b16 %v2405, %v2404
    %v2417 = vpack.c.b16 %v2406, %v2406
    %v2429 = vsel %vm658, %v2363, 0
    %v2432 = vsel %vm425, %v2417, 0
    %2434 = vmatprep.subr.bf16.mxu0 0
    %2435 = vmatpush1.bf16.msra.mxu0 %v2407
    %2436 = vmatprep.subr.bf16.mxu0 0
    %2437 = vmatpush1.bf16.msra.mxu0 %v2408
    %2438 = vmatprep.subr.bf16.mxu0 0
    %2439 = vmatpush1.bf16.msra.mxu0 %v2409
    %2440 = vmatprep.subr.bf16.mxu0 0
    %2441 = vmatpush1.bf16.msra.mxu0 %v2410
    %2442 = vmatprep.subr.bf16.mxu0 0
    %2443 = vmatpush1.bf16.msra.mxu0 %v2411
    %2444 = vmatprep.subr.bf16.mxu0 0
    %2445 = vmatpush1.bf16.msra.mxu0 %v2412
    %2446 = vmatprep.subr.bf16.mxu0 0
    %2447 = vmatpush1.bf16.msra.mxu0 %v2413
    %2448 = vmatprep.subr.bf16.mxu0 0
    %2449 = vmatpush1.bf16.msra.mxu0 %v2414
    %2450 = vmatprep.subr.bf16.mxu0 0
    %2451 = vmatpush1.bf16.msra.mxu0 %v2415
    %2452 = vmatprep.subr.bf16.mxu0 0
    %2453 = vmatpush1.bf16.msra.mxu0 %v2416
    %2454 = vmatprep.subr.bf16.mxu0 0
    %2455 = vmatpush1.bf16.msra.mxu0 %v2432
    %2456 = vmatprep.subr.bf16.mxu0 0
    %2457 = vmatpush1.bf16.msra.mxu0 0
    %2458 = vmatprep.subr.bf16.mxu0 0
    %2459 = vmatpush1.bf16.msra.mxu0 0
    %2460 = vmatprep.subr.bf16.mxu0 0
    %2461 = vmatpush1.bf16.msra.mxu0 0
    %2462 = vmatprep.subr.bf16.mxu0 0
    %2463 = vmatpush1.bf16.msra.mxu0 0
    %2464 = vmatprep.subr.bf16.mxu0 0
    %2465 = vmatpush1.bf16.msra.mxu0 0
    %2466 = vmatprep.mubr.bf16.mxu0 %v2429
    %2467 = vmatmul.mubr.bf16.gmra.mrb[0].mxu0 %v2362
    %v2468 = vpop.f32.mrb[0].mxu0
    %v2469 = vadd.f32 0.0, %v2468
    %v2470 = vpop.f32.mrb[0].mxu0
    %v2471 = vpop.f32.mrb[0].mxu0
    %v2472 = vpop.f32.mrb[0].mxu0
    %2473 = vdwg.mxu0
    %v2474 = vadd.f32 %v2339, %v2469
    %v2475 = vpack.c.bf16 %v1935, %v1935
    %v2476 = vpack.c.bf16 %v1936, %v1936
    %s2477 = scalar_lea.vmem %s6, 336
    %v2478 = vld [vmem:[%s2477] sm:$0xf]
    %v2479 = vld [vmem:[%s2477 + $0x4] sm:$0xf]
    %v2480 = vld [vmem:[%s2477 + $0x8] sm:$0xf]
    %v2481 = vld [vmem:[%s2477 + $0xc] sm:$0xf]
    %v2482 = vld [vmem:[%s2477 + $0x10] sm:$0xf]
    %v2483 = vld [vmem:[%s2477 + $0x14] sm:$0xf]
    %v2484 = vld [vmem:[%s2477 + $0x18] sm:$0xf]
    %v2485 = vld [vmem:[%s2477 + $0x1c] sm:$0xf]
    %v2486 = vld [vmem:[%s2477 + $0x20] sm:$0xf]
    %v2487 = vld [vmem:[%s2477 + $0x24] sm:$0xf]
    %v2488 = vld [vmem:[%s2477 + $0x28] sm:$0xf]
    %v2489 = vld [vmem:[%s2477 + $0x2c] sm:$0xf]
    %v2490 = vld [vmem:[%s2477 + $0x30] sm:$0xf]
    %v2491 = vld [vmem:[%s2477 + $0x34] sm:$0xf]
    %v2492 = vld [vmem:[%s2477 + $0x38] sm:$0xf]
    %v2493 = vld [vmem:[%s2477 + $0x3c] sm:$0xf]
    %v2494 = vld [vmem:[%s2477 + $0x40] sm:$0xf]
    %v2495 = vld [vmem:[%s2477 + $0x44] sm:$0xf]
    %v2496 = vld [vmem:[%s2477 + $0x48] sm:$0xf]
    %v2497 = vld [vmem:[%s2477 + $0x4c] sm:$0xf]
    %v2498 = vld [vmem:[%s2477 + $0x50] sm:$0xf]
    %v2520 = vunpack.c.l.b16 %v2478
    %v2521 = vunpack.c.l.b16 %v2479
    %v2522 = vunpack.c.l.b16 %v2480
    %v2523 = vunpack.c.l.b16 %v2481
    %v2524 = vunpack.c.l.b16 %v2482
    %v2525 = vunpack.c.l.b16 %v2483
    %v2526 = vunpack.c.l.b16 %v2484
    %v2527 = vunpack.c.l.b16 %v2485
    %v2528 = vunpack.c.l.b16 %v2486
    %v2529 = vunpack.c.l.b16 %v2487
    %v2530 = vunpack.c.l.b16 %v2488
    %v2531 = vunpack.c.l.b16 %v2489
    %v2532 = vunpack.c.l.b16 %v2490
    %v2533 = vunpack.c.l.b16 %v2491
    %v2534 = vunpack.c.l.b16 %v2492
    %v2535 = vunpack.c.l.b16 %v2493
    %v2536 = vunpack.c.l.b16 %v2494
    %v2537 = vunpack.c.l.b16 %v2495
    %v2538 = vunpack.c.l.b16 %v2496
    %v2539 = vunpack.c.l.b16 %v2497
    %v2540 = vunpack.c.l.b16 %v2498
    %v2541 = vpack.c.b16 %v2521, %v2520
    %v2542 = vpack.c.b16 %v2523, %v2522
    %v2543 = vpack.c.b16 %v2525, %v2524
    %v2544 = vpack.c.b16 %v2527, %v2526
    %v2545 = vpack.c.b16 %v2529, %v2528
    %v2546 = vpack.c.b16 %v2531, %v2530
    %v2547 = vpack.c.b16 %v2533, %v2532
    %v2548 = vpack.c.b16 %v2535, %v2534
    %v2549 = vpack.c.b16 %v2537, %v2536
    %v2550 = vpack.c.b16 %v2539, %v2538
    %v2551 = vpack.c.b16 %v2540, %v2540
    %v2563 = vsel %vm658, %v2476, 0
    %v2566 = vsel %vm425, %v2551, 0
    %2568 = vmatprep.subr.bf16.mxu0 0
    %2569 = vmatpush1.bf16.msra.mxu0 %v2541
    %2570 = vmatprep.subr.bf16.mxu0 0
    %2571 = vmatpush1.bf16.msra.mxu0 %v2542
    %2572 = vmatprep.subr.bf16.mxu0 0
    %2573 = vmatpush1.bf16.msra.mxu0 %v2543
    %2574 = vmatprep.subr.bf16.mxu0 0
    %2575 = vmatpush1.bf16.msra.mxu0 %v2544
    %2576 = vmatprep.subr.bf16.mxu0 0
    %2577 = vmatpush1.bf16.msra.mxu0 %v2545
    %2578 = vmatprep.subr.bf16.mxu0 0
    %2579 = vmatpush1.bf16.msra.mxu0 %v2546
    %2580 = vmatprep.subr.bf16.mxu0 0
    %2581 = vmatpush1.bf16.msra.mxu0 %v2547
    %2582 = vmatprep.subr.bf16.mxu0 0
    %2583 = vmatpush1.bf16.msra.mxu0 %v2548
    %2584 = vmatprep.subr.bf16.mxu0 0
    %2585 = vmatpush1.bf16.msra.mxu0 %v2549
    %2586 = vmatprep.subr.bf16.mxu0 0
    %2587 = vmatpush1.bf16.msra.mxu0 %v2550
    %2588 = vmatprep.subr.bf16.mxu0 0
    %2589 = vmatpush1.bf16.msra.mxu0 %v2566
    %2590 = vmatprep.subr.bf16.mxu0 0
    %2591 = vmatpush1.bf16.msra.mxu0 0
    %2592 = vmatprep.subr.bf16.mxu0 0
    %2593 = vmatpush1.bf16.msra.mxu0 0
    %2594 = vmatprep.subr.bf16.mxu0 0
    %2595 = vmatpush1.bf16.msra.mxu0 0
    %2596 = vmatprep.subr.bf16.mxu0 0
    %2597 = vmatpush1.bf16.msra.mxu0 0
    %2598 = vmatprep.subr.bf16.mxu0 0
    %2599 = vmatpush1.bf16.msra.mxu0 0
    %2600 = vmatprep.mubr.bf16.mxu0 %v2563
    %2601 = vmatmul.mubr.bf16.gmra.mrb[0].mxu0 %v2475
    %v2602 = vpop.f32.mrb[0].mxu0
    %v2603 = vadd.f32 0.0, %v2602
    %v2604 = vpop.f32.mrb[0].mxu0
    %v2605 = vpop.f32.mrb[0].mxu0
    %v2606 = vpop.f32.mrb[0].mxu0
    %2607 = vdwg.mxu0
    %v2608 = vadd.f32 %v2474, %v2603
    %s2609 = scalar_lea.vmem %s6, 420
    %v2610 = vld [vmem:[%s2609] sm:$0xf]
    %v2611 = vld [vmem:[%s2609 + $0x4] sm:$0xf]
    %v2612 = vld [vmem:[%s2609 + $0x8] sm:$0xf]
    %v2613 = vld [vmem:[%s2609 + $0xc] sm:$0xf]
    %v2614 = vld [vmem:[%s2609 + $0x10] sm:$0xf]
    %v2615 = vld [vmem:[%s2609 + $0x14] sm:$0xf]
    %v2616 = vld [vmem:[%s2609 + $0x18] sm:$0xf]
    %v2617 = vld [vmem:[%s2609 + $0x1c] sm:$0xf]
    %v2618 = vld [vmem:[%s2609 + $0x20] sm:$0xf]
    %v2619 = vld [vmem:[%s2609 + $0x24] sm:$0xf]
    %v2620 = vld [vmem:[%s2609 + $0x28] sm:$0xf]
    %v2621 = vld [vmem:[%s2609 + $0x2c] sm:$0xf]
    %v2622 = vld [vmem:[%s2609 + $0x30] sm:$0xf]
    %v2623 = vld [vmem:[%s2609 + $0x34] sm:$0xf]
    %v2624 = vld [vmem:[%s2609 + $0x38] sm:$0xf]
    %v2625 = vld [vmem:[%s2609 + $0x3c] sm:$0xf]
    %v2626 = vld [vmem:[%s2609 + $0x40] sm:$0xf]
    %v2627 = vld [vmem:[%s2609 + $0x44] sm:$0xf]
    %v2628 = vld [vmem:[%s2609 + $0x48] sm:$0xf]
    %v2629 = vld [vmem:[%s2609 + $0x4c] sm:$0xf]
    %v2630 = vld [vmem:[%s2609 + $0x50] sm:$0xf]
    %v2633 = vrot.slane %v2475, 1
    %v2634 = vrot.slane %v2476, 1
    %v2657 = vunpack.c.l.b16 %v2610
    %v2658 = vunpack.c.l.b16 %v2611
    %v2659 = vunpack.c.l.b16 %v2612
    %v2660 = vunpack.c.l.b16 %v2613
    %v2661 = vunpack.c.l.b16 %v2614
    %v2662 = vunpack.c.l.b16 %v2615
    %v2663 = vunpack.c.l.b16 %v2616
    %v2664 = vunpack.c.l.b16 %v2617
    %v2665 = vunpack.c.l.b16 %v2618
    %v2666 = vunpack.c.l.b16 %v2619
    %v2667 = vunpack.c.l.b16 %v2620
    %v2668 = vunpack.c.l.b16 %v2621
    %v2669 = vunpack.c.l.b16 %v2622
    %v2670 = vunpack.c.l.b16 %v2623
    %v2671 = vunpack.c.l.b16 %v2624
    %v2672 = vunpack.c.l.b16 %v2625
    %v2673 = vunpack.c.l.b16 %v2626
    %v2674 = vunpack.c.l.b16 %v2627
    %v2675 = vunpack.c.l.b16 %v2628
    %v2676 = vunpack.c.l.b16 %v2629
    %v2677 = vunpack.c.l.b16 %v2630
    %v2678 = vpack.c.b16 %v2658, %v2657
    %v2679 = vpack.c.b16 %v2660, %v2659
    %v2680 = vpack.c.b16 %v2662, %v2661
    %v2681 = vpack.c.b16 %v2664, %v2663
    %v2682 = vpack.c.b16 %v2666, %v2665
    %v2683 = vpack.c.b16 %v2668, %v2667
    %v2684 = vpack.c.b16 %v2670, %v2669
    %v2685 = vpack.c.b16 %v2672, %v2671
    %v2686 = vpack.c.b16 %v2674, %v2673
    %v2687 = vpack.c.b16 %v2676, %v2675
    %v2688 = vpack.c.b16 %v2677, %v2677
    %v2700 = vsel %vm658, %v2634, 0
    %v2703 = vsel %vm425, %v2688, 0
    %2705 = vmatprep.subr.bf16.mxu0 0
    %2706 = vmatpush1.bf16.msra.mxu0 %v2678
    %2707 = vmatprep.subr.bf16.mxu0 0
    %2708 = vmatpush1.bf16.msra.mxu0 %v2679
    %2709 = vmatprep.subr.bf16.mxu0 0
    %2710 = vmatpush1.bf16.msra.mxu0 %v2680
    %2711 = vmatprep.subr.bf16.mxu0 0
    %2712 = vmatpush1.bf16.msra.mxu0 %v2681
    %2713 = vmatprep.subr.bf16.mxu0 0
    %2714 = vmatpush1.bf16.msra.mxu0 %v2682
    %2715 = vmatprep.subr.bf16.mxu0 0
    %2716 = vmatpush1.bf16.msra.mxu0 %v2683
    %2717 = vmatprep.subr.bf16.mxu0 0
    %2718 = vmatpush1.bf16.msra.mxu0 %v2684
    %2719 = vmatprep.subr.bf16.mxu0 0
    %2720 = vmatpush1.bf16.msra.mxu0 %v2685
    %2721 = vmatprep.subr.bf16.mxu0 0
    %2722 = vmatpush1.bf16.msra.mxu0 %v2686
    %2723 = vmatprep.subr.bf16.mxu0 0
    %2724 = vmatpush1.bf16.msra.mxu0 %v2687
    %2725 = vmatprep.subr.bf16.mxu0 0
    %2726 = vmatpush1.bf16.msra.mxu0 %v2703
    %2727 = vmatprep.subr.bf16.mxu0 0
    %2728 = vmatpush1.bf16.msra.mxu0 0
    %2729 = vmatprep.subr.bf16.mxu0 0
    %2730 = vmatpush1.bf16.msra.mxu0 0
    %2731 = vmatprep.subr.bf16.mxu0 0
    %2732 = vmatpush1.bf16.msra.mxu0 0
    %2733 = vmatprep.subr.bf16.mxu0 0
    %2734 = vmatpush1.bf16.msra.mxu0 0
    %2735 = vmatprep.subr.bf16.mxu0 0
    %2736 = vmatpush1.bf16.msra.mxu0 0
    %2737 = vmatprep.mubr.bf16.mxu0 %v2700
    %2738 = vmatmul.mubr.bf16.gmra.mrb[0].mxu0 %v2633
    %v2739 = vpop.f32.mrb[0].mxu0
    %v2740 = vadd.f32 0.0, %v2739
    %v2741 = vpop.f32.mrb[0].mxu0
    %v2742 = vpop.f32.mrb[0].mxu0
    %v2743 = vpop.f32.mrb[0].mxu0
    %2744 = vdwg.mxu0
    %v2745 = vadd.f32 %v2608, %v2740
    %s2746 = scalar_lea.vmem %s6, 504
    %v2747 = vld [vmem:[%s2746] sm:$0xf]
    %v2748 = vld [vmem:[%s2746 + $0x4] sm:$0xf]
    %v2749 = vld [vmem:[%s2746 + $0x8] sm:$0xf]
    %v2750 = vld [vmem:[%s2746 + $0xc] sm:$0xf]
    %v2751 = vld [vmem:[%s2746 + $0x10] sm:$0xf]
    %v2752 = vld [vmem:[%s2746 + $0x14] sm:$0xf]
    %v2753 = vld [vmem:[%s2746 + $0x18] sm:$0xf]
    %v2754 = vld [vmem:[%s2746 + $0x1c] sm:$0xf]
    %v2755 = vld [vmem:[%s2746 + $0x20] sm:$0xf]
    %v2756 = vld [vmem:[%s2746 + $0x24] sm:$0xf]
    %v2757 = vld [vmem:[%s2746 + $0x28] sm:$0xf]
    %v2758 = vld [vmem:[%s2746 + $0x2c] sm:$0xf]
    %v2759 = vld [vmem:[%s2746 + $0x30] sm:$0xf]
    %v2760 = vld [vmem:[%s2746 + $0x34] sm:$0xf]
    %v2761 = vld [vmem:[%s2746 + $0x38] sm:$0xf]
    %v2762 = vld [vmem:[%s2746 + $0x3c] sm:$0xf]
    %v2763 = vld [vmem:[%s2746 + $0x40] sm:$0xf]
    %v2764 = vld [vmem:[%s2746 + $0x44] sm:$0xf]
    %v2765 = vld [vmem:[%s2746 + $0x48] sm:$0xf]
    %v2766 = vld [vmem:[%s2746 + $0x4c] sm:$0xf]
    %v2767 = vld [vmem:[%s2746 + $0x50] sm:$0xf]
    %v2768 = vrot.slane %v2475, 2
    %v2769 = vrot.slane %v2476, 2
    %v2792 = vunpack.c.l.b16 %v2747
    %v2793 = vunpack.c.l.b16 %v2748
    %v2794 = vunpack.c.l.b16 %v2749
    %v2795 = vunpack.c.l.b16 %v2750
    %v2796 = vunpack.c.l.b16 %v2751
    %v2797 = vunpack.c.l.b16 %v2752
    %v2798 = vunpack.c.l.b16 %v2753
    %v2799 = vunpack.c.l.b16 %v2754
    %v2800 = vunpack.c.l.b16 %v2755
    %v2801 = vunpack.c.l.b16 %v2756
    %v2802 = vunpack.c.l.b16 %v2757
    %v2803 = vunpack.c.l.b16 %v2758
    %v2804 = vunpack.c.l.b16 %v2759
    %v2805 = vunpack.c.l.b16 %v2760
    %v2806 = vunpack.c.l.b16 %v2761
    %v2807 = vunpack.c.l.b16 %v2762
    %v2808 = vunpack.c.l.b16 %v2763
    %v2809 = vunpack.c.l.b16 %v2764
    %v2810 = vunpack.c.l.b16 %v2765
    %v2811 = vunpack.c.l.b16 %v2766
    %v2812 = vunpack.c.l.b16 %v2767
    %v2813 = vpack.c.b16 %v2793, %v2792
    %v2814 = vpack.c.b16 %v2795, %v2794
    %v2815 = vpack.c.b16 %v2797, %v2796
    %v2816 = vpack.c.b16 %v2799, %v2798
    %v2817 = vpack.c.b16 %v2801, %v2800
    %v2818 = vpack.c.b16 %v2803, %v2802
    %v2819 = vpack.c.b16 %v2805, %v2804
    %v2820 = vpack.c.b16 %v2807, %v2806
    %v2821 = vpack.c.b16 %v2809, %v2808
    %v2822 = vpack.c.b16 %v2811, %v2810
    %v2823 = vpack.c.b16 %v2812, %v2812
    %v2835 = vsel %vm658, %v2769, 0
    %v2838 = vsel %vm425, %v2823, 0
    %2840 = vmatprep.subr.bf16.mxu0 0
    %2841 = vmatpush1.bf16.msra.mxu0 %v2813
    %2842 = vmatprep.subr.bf16.mxu0 0
    %2843 = vmatpush1.bf16.msra.mxu0 %v2814
    %2844 = vmatprep.subr.bf16.mxu0 0
    %2845 = vmatpush1.bf16.msra.mxu0 %v2815
    %2846 = vmatprep.subr.bf16.mxu0 0
    %2847 = vmatpush1.bf16.msra.mxu0 %v2816
    %2848 = vmatprep.subr.bf16.mxu0 0
    %2849 = vmatpush1.bf16.msra.mxu0 %v2817
    %2850 = vmatprep.subr.bf16.mxu0 0
    %2851 = vmatpush1.bf16.msra.mxu0 %v2818
    %2852 = vmatprep.subr.bf16.mxu0 0
    %2853 = vmatpush1.bf16.msra.mxu0 %v2819
    %2854 = vmatprep.subr.bf16.mxu0 0
    %2855 = vmatpush1.bf16.msra.mxu0 %v2820
    %2856 = vmatprep.subr.bf16.mxu0 0
    %2857 = vmatpush1.bf16.msra.mxu0 %v2821
    %2858 = vmatprep.subr.bf16.mxu0 0
    %2859 = vmatpush1.bf16.msra.mxu0 %v2822
    %2860 = vmatprep.subr.bf16.mxu0 0
    %2861 = vmatpush1.bf16.msra.mxu0 %v2838
    %2862 = vmatprep.subr.bf16.mxu0 0
    %2863 = vmatpush1.bf16.msra.mxu0 0
    %2864 = vmatprep.subr.bf16.mxu0 0
    %2865 = vmatpush1.bf16.msra.mxu0 0
    %2866 = vmatprep.subr.bf16.mxu0 0
    %2867 = vmatpush1.bf16.msra.mxu0 0
    %2868 = vmatprep.subr.bf16.mxu0 0
    %2869 = vmatpush1.bf16.msra.mxu0 0
    %2870 = vmatprep.subr.bf16.mxu0 0
    %2871 = vmatpush1.bf16.msra.mxu0 0
    %2872 = vmatprep.mubr.bf16.mxu0 %v2835
    %2873 = vmatmul.mubr.bf16.gmra.mrb[0].mxu0 %v2768
    %v2874 = vpop.f32.mrb[0].mxu0
    %v2875 = vadd.f32 0.0, %v2874
    %v2876 = vpop.f32.mrb[0].mxu0
    %v2877 = vpop.f32.mrb[0].mxu0
    %v2878 = vpop.f32.mrb[0].mxu0
    %2879 = vdwg.mxu0
    %v2880 = vadd.f32 %v2745, %v2875
    %v2881 = vld [vmem:[%s7] sm:$0x1]
    %v2883 = vlaneseq
    %v2884 = vshrl.u32 %v2883, 7
    %v2885 = vsub.s32 0, %v2884
    %v2886 = vrot.slane %v2881, %v2885
    %v2888 = vadd.f32 %v2880, %v2886
    %v2889 = vmax.f32 %v2888, 0.0
    %v2890 = vpack.c.bf16 %v2889, %v2889
    %v2891 = vld [vmem:[%s8] sm:$0xf]
    %v2892 = vld [vmem:[%s8 + $0x4] sm:$0xf]
    %v2893 = vld [vmem:[%s8 + $0x8] sm:$0xf]
    %v2894 = vld [vmem:[%s8 + $0xc] sm:$0xf]
    %v2895 = vld [vmem:[%s8 + $0x10] sm:$0xf]
    %v2896 = vld [vmem:[%s8 + $0x14] sm:$0xf]
    %v2897 = vld [vmem:[%s8 + $0x18] sm:$0xf]
    %v2898 = vld [vmem:[%s8 + $0x1c] sm:$0xf]
    %v2899 = vld [vmem:[%s9] sm:$0x1]
    %v2901 = vlaneseq
    %v2902 = vshrl.u32 %v2901, 7
    %v2903 = vsub.s32 0, %v2902
    %v2904 = vrot.slane %v2899, %v2903
    %v2914 = vunpack.c.l.b16 %v2891
    %v2915 = vunpack.c.l.b16 %v2892
    %v2916 = vunpack.c.l.b16 %v2893
    %v2917 = vunpack.c.l.b16 %v2894
    %v2918 = vunpack.c.l.b16 %v2895
    %v2919 = vunpack.c.l.b16 %v2896
    %v2920 = vunpack.c.l.b16 %v2897
    %v2921 = vunpack.c.l.b16 %v2898
    %v2922 = vpack.c.b16 %v2915, %v2914
    %v2923 = vpack.c.b16 %v2917, %v2916
    %v2924 = vpack.c.b16 %v2919, %v2918
    %v2925 = vpack.c.b16 %v2921, %v2920
    %vm2930 = vcmask 523264
    %v2932 = vsel %vm2930, %v2890, 0
    %2934 = vmatprep.subr.bf16.mxu0 0
    %2935 = vmatpush1.bf16.msra.mxu0 %v2922
    %2936 = vmatprep.subr.bf16.mxu0 0
    %2937 = vmatpush1.bf16.msra.mxu0 %v2923
    %2938 = vmatprep.subr.bf16.mxu0 0
    %2939 = vmatpush1.bf16.msra.mxu0 %v2924
    %2940 = vmatprep.subr.bf16.mxu0 0
    %2941 = vmatpush1.bf16.msra.mxu0 %v2925
    %2942 = vmatprep.subr.bf16.mxu0 0
    %2943 = vmatpush1.bf16.msra.mxu0 0
    %2944 = vmatprep.subr.bf16.mxu0 0
    %2945 = vmatpush1.bf16.msra.mxu0 0
    %2946 = vmatprep.subr.bf16.mxu0 0
    %2947 = vmatpush1.bf16.msra.mxu0 0
    %2948 = vmatprep.subr.bf16.mxu0 0
    %2949 = vmatpush1.bf16.msra.mxu0 0
    %2950 = vmatprep.subr.bf16.mxu0 0
    %2951 = vmatpush1.bf16.msra.mxu0 0
    %2952 = vmatprep.subr.bf16.mxu0 0
    %2953 = vmatpush1.bf16.msra.mxu0 0
    %2954 = vmatprep.subr.bf16.mxu0 0
    %2955 = vmatpush1.bf16.msra.mxu0 0
    %2956 = vmatprep.subr.bf16.mxu0 0
    %2957 = vmatpush1.bf16.msra.mxu0 0
    %2958 = vmatprep.subr.bf16.mxu0 0
    %2959 = vmatpush1.bf16.msra.mxu0 0
    %2960 = vmatprep.subr.bf16.mxu0 0
    %2961 = vmatpush1.bf16.msra.mxu0 0
    %2962 = vmatprep.subr.bf16.mxu0 0
    %2963 = vmatpush1.bf16.msra.mxu0 0
    %2964 = vmatprep.subr.bf16.mxu0 0
    %2965 = vmatpush1.bf16.msra.mxu0 0
    %2966 = vmatprep.mubr.bf16.mxu0 0
    %2967 = vmatmul.mubr.bf16.gmra.mrb[0].mxu0 %v2932
    %v2968 = vpop.f32.mrb[0].mxu0
    %v2969 = vadd.f32 %v2904, %v2968
    %v2970 = vpop.f32.mrb[0].mxu0
    %v2971 = vpop.f32.mrb[0].mxu0
    %v2972 = vpop.f32.mrb[0].mxu0
    %2973 = vdwg.mxu0
    %2974 = vst [vmem:[#allocation2] sm:$0x3] %v2969
    // Predicated region
    $region42: #{network_forward.1} parent=1 // pred_check
      _
    $region43: #{network_forward.1} parent=1 // pred_check_branch
      %2976 = sbr.rel (0) target = $region45
    $region44: #{network_forward.1} parent=1 // pred_region
      %s2978 = ssub.s32 32, 32
      %2979 = vsyncadd [#allocation3], %s2978
      %s2981 = sshll.u32 [#allocation2], 4
      %s2982 = int_to_ptr.vmem [resolvable:$true] %s2981
      %2984 = dma.vmem_to_hbm [thread:$0]  %s2982, 32, %s10, [#allocation3]
    $region45: #{network_forward.1} parent=1 // pred_fallthru
      _
    // Predicated region
    $region46: #{network_forward.1} parent=1 // pred_check
      _
    $region47: #{network_forward.1} parent=1 // pred_check_branch
      %2986 = sbr.rel (0) target = $region49
    $region48: #{network_forward.1} parent=1 // pred_region
      %2987 = dma.done [#allocation3], 32
    $region49: #{network_forward.1} parent=1 // pred_fallthru
      _
    %2988 = vsyncpa [#allocation3], 1

</llo_original>
